<compile_context>
chip_gen: v7x
topology: tpu7x:2x2x1
jax: 0.10.0
libtpu: 0.0.40
codegen_flags: <defaults>
</compile_context>

<pallas_src>
import jax
import jax.numpy as jnp
from jax.experimental import pallas as pl
from jax.experimental.pallas import tpu as pltpu

# -------- small config consistent with PromptSAT.__init__ --------
EMBED_NUM     = 16    # number of attribute vectors
EMBED_DIM     = 32    # attribute embedding dim (prompt output dim)
PROMPT_NUM_S  = 3
PROMPT_NUM_M  = 4
PROJ_HIDD     = 32    # transformer d_model
PROMPT_L      = 2     # prompt_len_per_layer
PROMPT_LAYERS = 3
NHEAD         = 4
N_LAYERS      = 1     # nn.TransformerEncoder num_layers
DIM_FF        = 2048  # PyTorch TransformerEncoderLayer default dim_feedforward
SEQ           = PROMPT_NUM_S + PROMPT_NUM_M + 1
HEAD_DIM      = PROJ_HIDD // NHEAD
PROJ_OUT      = PROMPT_L * PROMPT_LAYERS * EMBED_NUM    # 96  (softmax dim)
OUT_DIM       = PROMPT_L * PROMPT_LAYERS * EMBED_DIM    # 192 (lane-dense out)
LN_EPS        = 1e-5


def _layer_norm(x, g, b):
    mu = jnp.mean(x, axis=-1, keepdims=True)
    var = jnp.mean((x - mu) ** 2, axis=-1, keepdims=True)   # biased, like torch
    return (x - mu) * jax.lax.rsqrt(var + LN_EPS) * g + b


def _rep(w, b_blk):
    """Tile a per-head tensor (NHEAD, ...) across the b_blk sequences
    of the current batch block (leading-dim broadcast only; no relayout)."""
    if b_blk == 1:
        return w
    return jnp.broadcast_to(w[None], (b_blk,) + w.shape).reshape(
        (b_blk * w.shape[0],) + w.shape[1:])


# ---------------- fused Pallas kernel ----------------

def _make_fused_kernel(b_blk):
    bn = b_blk * NHEAD

    def kernel(h_ref,
               wq_ref, wk_ref, wv_ref, bq_ref, bk_ref, bv_ref,
               wo_ref, bo_ref, ln1g_ref, ln1b_ref,
               w1_ref, b1_ref, w2_ref, b2_ref, ln2g_ref, ln2b_ref,
               wp_ref, bp_ref, attr_ref, out_ref):
        S, H = SEQ, PROJ_HIDD
        scale = 1.0 / (HEAD_DIM ** 0.5)

        h = h_ref[...]                                        # (Bb, S, H)

        for l in range(N_LAYERS):                             # static unroll
            # ---- multi-head self-attention, heads batched in one dot ----
            hh = jnp.broadcast_to(h[:, None], (b_blk, NHEAD, S, H)
                                  ).reshape(bn, S, H)         # (Bb*NH, S, H)
            wq = _rep(wq_ref[l], b_blk); wk = _rep(wk_ref[l], b_blk)
            wv = _rep(wv_ref[l], b_blk); wo = _rep(wo_ref[l], b_blk)
            bq = _rep(bq_ref[l], b_blk); bk = _rep(bk_ref[l], b_blk)
            bv = _rep(bv_ref[l], b_blk)

            q = jnp.einsum('nsh,nhd->nsd', hh, wq,
                           preferred_element_type=jnp.float32) + bq
            k = jnp.einsum('nsh,nhd->nsd', hh, wk,
                           preferred_element_type=jnp.float32) + bk
            v = jnp.einsum('nsh,nhd->nsd', hh, wv,
                           preferred_element_type=jnp.float32) + bv

            s = jnp.einsum('nqd,nkd->nqk', q * scale, k,
                           preferred_element_type=jnp.float32)  # (BN, S, S)
            s = s - jnp.max(s, axis=-1, keepdims=True)
            e = jnp.exp(s)
            p = e * pl.reciprocal(jnp.sum(e, axis=-1, keepdims=True),
                                  approx=True)
            ctx = jnp.einsum('nqk,nkd->nqd', p, v,
                             preferred_element_type=jnp.float32)  # (BN, S, D)
            # concat-free output projection: sum_h ctx_h @ Wo_h
            oh = jnp.einsum('nqd,ndh->nqh', ctx, wo,
                            preferred_element_type=jnp.float32)   # (BN, S, H)
            attn = jnp.sum(oh.reshape(b_blk, NHEAD, S, H), axis=1) + bo_ref[l]

            # ---- residual + LN + ReLU FFN, token-flattened (Bb*S, H) ----
            xt = h.reshape(b_blk * S, H) + attn.reshape(b_blk * S, H)
            y = _layer_norm(xt, ln1g_ref[l], ln1b_ref[l])
            h1 = jnp.maximum(
                jnp.dot(y.astype(jnp.bfloat16), w1_ref[l],
                        preferred_element_type=jnp.float32) + b1_ref[l], 0.0)
            ffn = jnp.dot(h1.astype(jnp.bfloat16), w2_ref[l],
                          preferred_element_type=jnp.float32) + b2_ref[l]
            z = _layer_norm(y + ffn, ln2g_ref[l], ln2b_ref[l])
            h = z.reshape(b_blk, S, H)

        # ---- cls projection + softmax + prompt mixing (still in VMEM) ----
        cls_out = h[:, 0, :]                                   # (Bb, H)
        logits = jnp.dot(cls_out, wp_ref[...],
                         preferred_element_type=jnp.float32) + bp_ref[...]
        logits = logits - jnp.max(logits, axis=-1, keepdims=True)
        ec = jnp.exp(logits)
        coef = ec * pl.reciprocal(jnp.sum(ec, axis=-1, keepdims=True),
                                  approx=True)                 # (Bb, O*M)
        # coef @ block_diag(attributes) == einsum('bom,mv->bov'), but written
        # as one MXU matmul with a lane-dense (Bb, O*EMBED_DIM) result.
        out_ref[0] = jnp.dot(coef, attr_ref[...],
                             preferred_element_type=jnp.float32)

    return kernel


# ---------------- wrapper ----------------

_WEIGHT_KEYS = ('wq_h', 'wk_h', 'wv_h', 'bq_h', 'bk_h', 'bv_h', 'wo_h', 'bo',
                'ln1_g', 'ln1_b', 'w1', 'b1', 'w2', 'b2', 'ln2_g', 'ln2_b',
                'wp', 'bp', 'attr_block')


def prompt_sat_forward(x, params):
    B = x.shape[0]
    # >=2 parallel batch blocks when possible (v7x has 2 TensorCores); each
    # block still flattens its Bb*S tokens into the MXU M dimension.
    b_blk = B // 2 if (B >= 2 and B % 2 == 0) else 1
    n_blocks = B // b_blk

    # tiny glue (a couple of KB): cls-token concat + positional embedding
    cls = jnp.broadcast_to(params['cls_token'], (B, 1, PROJ_HIDD))
    h = jnp.concatenate([cls, x], axis=1) + params['props_pe']

    weights = [params[k] for k in _WEIGHT_KEYS]
    # Full-array blocks with a constant index_map -> weights stay resident in
    # VMEM across grid steps.  NOTE: if the model is scaled up, switch these
    # to pipeline_mode=pl.Buffered(1) to single-buffer the resident weights.
    w_specs = [pl.BlockSpec(w.shape, lambda b, n=w.ndim: (0,) * n)
               for w in weights]

    out = pl.pallas_call(
        _make_fused_kernel(b_blk),
        out_shape=jax.ShapeDtypeStruct((n_blocks, b_blk, OUT_DIM), jnp.float32),
        grid=(n_blocks,),
        in_specs=[pl.BlockSpec((b_blk, SEQ, PROJ_HIDD), lambda b: (b, 0, 0))]
                 + w_specs,
        out_specs=pl.BlockSpec((1, b_blk, OUT_DIM), lambda b: (b, 0, 0)),
        compiler_params=pltpu.CompilerParams(
            dimension_semantics=("parallel",)),
    )(h, *weights)

    prompts = out.reshape(B, PROMPT_L * PROMPT_LAYERS, EMBED_DIM)
    if PROMPT_LAYERS > 1:
        prompts = prompts.reshape(B, PROMPT_LAYERS, PROMPT_L, EMBED_DIM)
    return prompts


# ---------------- deterministic parameter init ----------------

def init_params(key):
    ks = jax.random.split(key, 5 + N_LAYERS)

    def nrm(k, shape, std=0.02, dtype=jnp.float32):
        return (std * jax.random.normal(k, shape)).astype(dtype)

    n_slots = PROMPT_L * PROMPT_LAYERS
    attributes = nrm(ks[2], (EMBED_NUM, EMBED_DIM))

    params = {
        'cls_token':  nrm(ks[0], (1, 1, PROJ_HIDD)),
        'props_pe':   nrm(ks[1], (1, SEQ, PROJ_HIDD)),
        'attributes': attributes,   # kept for reference; kernel uses attr_block
        # block-diagonal expansion of `attributes`: (O*M, O*V); makes the
        # prompt einsum a single lane-dense matmul inside the kernel.
        'attr_block': jnp.kron(jnp.eye(n_slots, dtype=jnp.float32), attributes),
        # projection head, pre-transposed: (H, O*M); bias kept 2D
        'wp': nrm(ks[3], (PROJ_HIDD, PROJ_OUT)),
        'bp': nrm(ks[4], (1, PROJ_OUT)),
    }

    wq, wk, wv, bq, bk, bv, wo, bo, w1, b1, w2, b2 = ([] for _ in range(12))
    for li in range(N_LAYERS):
        lk = jax.random.split(ks[5 + li], 12)
        # attention weights in head-split, pre-transposed layouts so the
        # kernel never reshapes/slices the lane dimension
        wq.append(nrm(lk[0], (NHEAD, PROJ_HIDD, HEAD_DIM)))
        wk.append(nrm(lk[1], (NHEAD, PROJ_HIDD, HEAD_DIM)))
        wv.append(nrm(lk[2], (NHEAD, PROJ_HIDD, HEAD_DIM)))
        bq.append(nrm(lk[3], (NHEAD, 1, HEAD_DIM)))
        bk.append(nrm(lk[4], (NHEAD, 1, HEAD_DIM)))
        bv.append(nrm(lk[5], (NHEAD, 1, HEAD_DIM)))
        wo.append(nrm(lk[6], (NHEAD, HEAD_DIM, PROJ_HIDD)))
        bo.append(nrm(lk[7], (1, PROJ_HIDD)))
        # FFN weights in bf16 (f32 accumulation inside the kernel)
        w1.append(nrm(lk[8], (PROJ_HIDD, DIM_FF), dtype=jnp.bfloat16))
        b1.append(nrm(lk[9], (1, DIM_FF)))
        w2.append(nrm(lk[10], (DIM_FF, PROJ_HIDD), dtype=jnp.bfloat16))
        b2.append(nrm(lk[11], (1, PROJ_HIDD)))

    stk = lambda xs: jnp.stack(xs, axis=0)   # leading N_LAYERS axis
    params.update({
        'wq_h': stk(wq), 'wk_h': stk(wk), 'wv_h': stk(wv),
        'bq_h': stk(bq), 'bk_h': stk(bk), 'bv_h': stk(bv),
        'wo_h': stk(wo), 'bo': stk(bo),
        'ln1_g': jnp.ones((N_LAYERS, 1, PROJ_HIDD), jnp.float32),
        'ln1_b': jnp.zeros((N_LAYERS, 1, PROJ_HIDD), jnp.float32),
        'w1': stk(w1), 'b1': stk(b1), 'w2': stk(w2), 'b2': stk(b2),
        'ln2_g': jnp.ones((N_LAYERS, 1, PROJ_HIDD), jnp.float32),
        'ln2_b': jnp.zeros((N_LAYERS, 1, PROJ_HIDD), jnp.float32),
    })
    return params


if __name__ == "__main__":
    key = jax.random.PRNGKey(0)
    pkey, xkey = jax.random.split(key)
    params = init_params(pkey)

    B = 2
    # forward input x: (B, prompt_num_s + prompt_num_m, proj_hidd_dim)
    x = jax.random.normal(xkey, (B, PROMPT_NUM_S + PROMPT_NUM_M, PROJ_HIDD),
                          dtype=jnp.float32)

    out = jax.jit(prompt_sat_forward)(x, params)
    out = jax.block_until_ready(out)

    expected = (B, PROMPT_LAYERS, PROMPT_L, EMBED_DIM)
    assert out.shape == expected, (out.shape, expected)
    assert bool(jnp.all(jnp.isfinite(out)))
    print("KERNEL_OK")
</pallas_src>

<mosaic_0001>
module attributes {stable_mosaic.version = 11 : i64} {
  func.func @kernel(%arg0: i32, %arg1: memref<1x8x32xf32, #tpu.memory_space<vmem>>, %arg2: memref<1x4x32x8xf32, #tpu.memory_space<vmem>>, %arg3: memref<1x4x32x8xf32, #tpu.memory_space<vmem>>, %arg4: memref<1x4x32x8xf32, #tpu.memory_space<vmem>>, %arg5: memref<1x4x1x8xf32, #tpu.memory_space<vmem>>, %arg6: memref<1x4x1x8xf32, #tpu.memory_space<vmem>>, %arg7: memref<1x4x1x8xf32, #tpu.memory_space<vmem>>, %arg8: memref<1x4x8x32xf32, #tpu.memory_space<vmem>>, %arg9: memref<1x1x32xf32, #tpu.memory_space<vmem>>, %arg10: memref<1x1x32xf32, #tpu.memory_space<vmem>>, %arg11: memref<1x1x32xf32, #tpu.memory_space<vmem>>, %arg12: memref<1x32x2048xbf16, #tpu.memory_space<vmem>>, %arg13: memref<1x1x2048xf32, #tpu.memory_space<vmem>>, %arg14: memref<1x2048x32xbf16, #tpu.memory_space<vmem>>, %arg15: memref<1x1x32xf32, #tpu.memory_space<vmem>>, %arg16: memref<1x1x32xf32, #tpu.memory_space<vmem>>, %arg17: memref<1x1x32xf32, #tpu.memory_space<vmem>>, %arg18: memref<32x96xf32, #tpu.memory_space<vmem>>, %arg19: memref<1x96xf32, #tpu.memory_space<vmem>>, %arg20: memref<96x192xf32, #tpu.memory_space<vmem>>, %arg21: memref<1x1x192xf32, #tpu.memory_space<vmem>>) attributes {dimension_semantics = [#tpu.dimension_semantics<parallel>], iteration_bounds = array<i64: 2>, scalar_prefetch = 0 : i64, scratch_operands = 0 : i64, tpu.core_type = #tpu.core_type<tc>, window_params = [{transform_indices = @transform_0, window_bounds = array<i64: 1, 8, 32>}, {pipeline_mode = #tpu.pipeline_mode<synchronous>, transform_indices = @transform_1, window_bounds = array<i64: 1, 4, 32, 8>}, {pipeline_mode = #tpu.pipeline_mode<synchronous>, transform_indices = @transform_2, window_bounds = array<i64: 1, 4, 32, 8>}, {pipeline_mode = #tpu.pipeline_mode<synchronous>, transform_indices = @transform_3, window_bounds = array<i64: 1, 4, 32, 8>}, {pipeline_mode = #tpu.pipeline_mode<synchronous>, transform_indices = @transform_4, window_bounds = array<i64: 1, 4, 1, 8>}, {pipeline_mode = #tpu.pipeline_mode<synchronous>, transform_indices = @transform_5, window_bounds = array<i64: 1, 4, 1, 8>}, {pipeline_mode = #tpu.pipeline_mode<synchronous>, transform_indices = @transform_6, window_bounds = array<i64: 1, 4, 1, 8>}, {pipeline_mode = #tpu.pipeline_mode<synchronous>, transform_indices = @transform_7, window_bounds = array<i64: 1, 4, 8, 32>}, {pipeline_mode = #tpu.pipeline_mode<synchronous>, transform_indices = @transform_8, window_bounds = array<i64: 1, 1, 32>}, {pipeline_mode = #tpu.pipeline_mode<synchronous>, transform_indices = @transform_9, window_bounds = array<i64: 1, 1, 32>}, {pipeline_mode = #tpu.pipeline_mode<synchronous>, transform_indices = @transform_10, window_bounds = array<i64: 1, 1, 32>}, {pipeline_mode = #tpu.pipeline_mode<synchronous>, transform_indices = @transform_11, window_bounds = array<i64: 1, 32, 2048>}, {pipeline_mode = #tpu.pipeline_mode<synchronous>, transform_indices = @transform_12, window_bounds = array<i64: 1, 1, 2048>}, {pipeline_mode = #tpu.pipeline_mode<synchronous>, transform_indices = @transform_13, window_bounds = array<i64: 1, 2048, 32>}, {pipeline_mode = #tpu.pipeline_mode<synchronous>, transform_indices = @transform_14, window_bounds = array<i64: 1, 1, 32>}, {pipeline_mode = #tpu.pipeline_mode<synchronous>, transform_indices = @transform_15, window_bounds = array<i64: 1, 1, 32>}, {pipeline_mode = #tpu.pipeline_mode<synchronous>, transform_indices = @transform_16, window_bounds = array<i64: 1, 1, 32>}, {pipeline_mode = #tpu.pipeline_mode<synchronous>, transform_indices = @transform_17, window_bounds = array<i64: 32, 96>}, {pipeline_mode = #tpu.pipeline_mode<synchronous>, transform_indices = @transform_18, window_bounds = array<i64: 1, 96>}, {pipeline_mode = #tpu.pipeline_mode<synchronous>, transform_indices = @transform_19, window_bounds = array<i64: 96, 192>}, {transform_indices = @transform_20, window_bounds = array<i64: 1, 1, 192>}]} {
    %c0 = arith.constant 0 : index
    %c0_0 = arith.constant 0 : index
    %c0_1 = arith.constant 0 : index
    %0 = vector.load %arg1[%c0, %c0_0, %c0_1] : memref<1x8x32xf32, #tpu.memory_space<vmem>>, vector<1x8x32xf32>
    %1 = vector.shape_cast %0 : vector<1x8x32xf32> to vector<1x1x8x32xf32>
    %2 = vector.shape_cast %1 : vector<1x1x8x32xf32> to vector<1x1x8x32xf32>
    %3 = vector.broadcast %2 : vector<1x1x8x32xf32> to vector<1x4x8x32xf32>
    %4 = vector.shape_cast %3 : vector<1x4x8x32xf32> to vector<4x8x32xf32>
    %c0_2 = arith.constant 0 : index
    %c0_3 = arith.constant 0 : index
    %c0_4 = arith.constant 0 : index
    %c0_5 = arith.constant 0 : index
    %5 = vector.load %arg2[%c0_2, %c0_3, %c0_4, %c0_5] : memref<1x4x32x8xf32, #tpu.memory_space<vmem>>, vector<1x4x32x8xf32>
    %6 = vector.shape_cast %5 : vector<1x4x32x8xf32> to vector<4x32x8xf32>
    %c0_6 = arith.constant 0 : index
    %c0_7 = arith.constant 0 : index
    %c0_8 = arith.constant 0 : index
    %c0_9 = arith.constant 0 : index
    %7 = vector.load %arg3[%c0_6, %c0_7, %c0_8, %c0_9] : memref<1x4x32x8xf32, #tpu.memory_space<vmem>>, vector<1x4x32x8xf32>
    %8 = vector.shape_cast %7 : vector<1x4x32x8xf32> to vector<4x32x8xf32>
    %c0_10 = arith.constant 0 : index
    %c0_11 = arith.constant 0 : index
    %c0_12 = arith.constant 0 : index
    %c0_13 = arith.constant 0 : index
    %9 = vector.load %arg4[%c0_10, %c0_11, %c0_12, %c0_13] : memref<1x4x32x8xf32, #tpu.memory_space<vmem>>, vector<1x4x32x8xf32>
    %10 = vector.shape_cast %9 : vector<1x4x32x8xf32> to vector<4x32x8xf32>
    %c0_14 = arith.constant 0 : index
    %c0_15 = arith.constant 0 : index
    %c0_16 = arith.constant 0 : index
    %c0_17 = arith.constant 0 : index
    %11 = vector.load %arg8[%c0_14, %c0_15, %c0_16, %c0_17] : memref<1x4x8x32xf32, #tpu.memory_space<vmem>>, vector<1x4x8x32xf32>
    %12 = vector.shape_cast %11 : vector<1x4x8x32xf32> to vector<4x8x32xf32>
    %c0_18 = arith.constant 0 : index
    %c0_19 = arith.constant 0 : index
    %c0_20 = arith.constant 0 : index
    %c0_21 = arith.constant 0 : index
    %13 = vector.load %arg5[%c0_18, %c0_19, %c0_20, %c0_21] : memref<1x4x1x8xf32, #tpu.memory_space<vmem>>, vector<1x4x1x8xf32>
    %14 = vector.shape_cast %13 : vector<1x4x1x8xf32> to vector<4x1x8xf32>
    %c0_22 = arith.constant 0 : index
    %c0_23 = arith.constant 0 : index
    %c0_24 = arith.constant 0 : index
    %c0_25 = arith.constant 0 : index
    %15 = vector.load %arg6[%c0_22, %c0_23, %c0_24, %c0_25] : memref<1x4x1x8xf32, #tpu.memory_space<vmem>>, vector<1x4x1x8xf32>
    %16 = vector.shape_cast %15 : vector<1x4x1x8xf32> to vector<4x1x8xf32>
    %c0_26 = arith.constant 0 : index
    %c0_27 = arith.constant 0 : index
    %c0_28 = arith.constant 0 : index
    %c0_29 = arith.constant 0 : index
    %17 = vector.load %arg7[%c0_26, %c0_27, %c0_28, %c0_29] : memref<1x4x1x8xf32, #tpu.memory_space<vmem>>, vector<1x4x1x8xf32>
    %18 = vector.shape_cast %17 : vector<1x4x1x8xf32> to vector<4x1x8xf32>
    "tpu.trace_start"() <{level = 10 : i32, message = "nsh,nhd->nsd"}> : () -> ()
    %cst = arith.constant dense<0.000000e+00> : vector<4x8x8xf32>
    %19 = tpu.matmul %4, %6, %cst {dimension_numbers = #tpu.dot_dimension_numbers<[2], [1], [1], [2], [0, 0, 0, 1, 1, 2], [0], [0]>} : vector<4x8x32xf32>, vector<4x32x8xf32>, vector<4x8x8xf32> -> vector<4x8x8xf32>
    "tpu.trace_stop"() : () -> ()
    %20 = vector.broadcast %14 : vector<4x1x8xf32> to vector<4x8x8xf32>
    %21 = arith.addf %19, %20 : vector<4x8x8xf32>
    "tpu.trace_start"() <{level = 10 : i32, message = "nsh,nhd->nsd"}> : () -> ()
    %cst_30 = arith.constant dense<0.000000e+00> : vector<4x8x8xf32>
    %22 = tpu.matmul %4, %8, %cst_30 {dimension_numbers = #tpu.dot_dimension_numbers<[2], [1], [1], [2], [0, 0, 0, 1, 1, 2], [0], [0]>} : vector<4x8x32xf32>, vector<4x32x8xf32>, vector<4x8x8xf32> -> vector<4x8x8xf32>
    "tpu.trace_stop"() : () -> ()
    %23 = vector.broadcast %16 : vector<4x1x8xf32> to vector<4x8x8xf32>
    %24 = arith.addf %22, %23 : vector<4x8x8xf32>
    "tpu.trace_start"() <{level = 10 : i32, message = "nsh,nhd->nsd"}> : () -> ()
    %cst_31 = arith.constant dense<0.000000e+00> : vector<4x8x8xf32>
    %25 = tpu.matmul %4, %10, %cst_31 {dimension_numbers = #tpu.dot_dimension_numbers<[2], [1], [1], [2], [0, 0, 0, 1, 1, 2], [0], [0]>} : vector<4x8x32xf32>, vector<4x32x8xf32>, vector<4x8x8xf32> -> vector<4x8x8xf32>
    "tpu.trace_stop"() : () -> ()
    %26 = vector.broadcast %18 : vector<4x1x8xf32> to vector<4x8x8xf32>
    %27 = arith.addf %25, %26 : vector<4x8x8xf32>
    %cst_32 = arith.constant 0.353553385 : f32
    %28 = vector.broadcast %cst_32 : f32 to vector<4x8x8xf32>
    %29 = arith.mulf %21, %28 : vector<4x8x8xf32>
    "tpu.trace_start"() <{level = 10 : i32, message = "nqd,nkd->nqk"}> : () -> ()
    %cst_33 = arith.constant dense<0.000000e+00> : vector<4x8x8xf32>
    %30 = tpu.matmul %29, %24, %cst_33 {dimension_numbers = #tpu.dot_dimension_numbers<[2], [2], [1], [1], [0, 0, 0, 1, 1, 1], [0], [0]>} : vector<4x8x8xf32>, vector<4x8x8xf32>, vector<4x8x8xf32> -> vector<4x8x8xf32>
    "tpu.trace_stop"() : () -> ()
    %cst_34 = arith.constant dense<0xFF800000> : vector<4x8xf32>
    %31 = vector.multi_reduction <maximumf>, %30, %cst_34 [2] : vector<4x8x8xf32> to vector<4x8xf32>
    %32 = vector.shape_cast %31 : vector<4x8xf32> to vector<4x8x1xf32>
    %33 = vector.broadcast %32 : vector<4x8x1xf32> to vector<4x8x8xf32>
    %34 = arith.subf %30, %33 : vector<4x8x8xf32>
    %35 = math.exp %34 : vector<4x8x8xf32>
    %cst_35 = arith.constant dense<0.000000e+00> : vector<4x8xf32>
    %36 = vector.multi_reduction <add>, %35, %cst_35 [2] : vector<4x8x8xf32> to vector<4x8xf32>
    %37 = vector.shape_cast %36 : vector<4x8xf32> to vector<4x8x1xf32>
    %38 = tpu.reciprocal %37 {approx = true} : vector<4x8x1xf32> -> vector<4x8x1xf32>
    %39 = vector.broadcast %38 : vector<4x8x1xf32> to vector<4x8x8xf32>
    %40 = arith.mulf %35, %39 : vector<4x8x8xf32>
    "tpu.trace_start"() <{level = 10 : i32, message = "nqk,nkd->nqd"}> : () -> ()
    %cst_36 = arith.constant dense<0.000000e+00> : vector<4x8x8xf32>
    %41 = tpu.matmul %40, %27, %cst_36 {dimension_numbers = #tpu.dot_dimension_numbers<[2], [1], [1], [2], [0, 0, 0, 1, 1, 2], [0], [0]>} : vector<4x8x8xf32>, vector<4x8x8xf32>, vector<4x8x8xf32> -> vector<4x8x8xf32>
    "tpu.trace_stop"() : () -> ()
    "tpu.trace_start"() <{level = 10 : i32, message = "nqd,ndh->nqh"}> : () -> ()
    %cst_37 = arith.constant dense<0.000000e+00> : vector<4x8x32xf32>
    %42 = tpu.matmul %41, %12, %cst_37 {dimension_numbers = #tpu.dot_dimension_numbers<[2], [1], [1], [2], [0, 0, 0, 1, 1, 2], [0], [0]>} : vector<4x8x8xf32>, vector<4x8x32xf32>, vector<4x8x32xf32> -> vector<4x8x32xf32>
    "tpu.trace_stop"() : () -> ()
    %43 = vector.shape_cast %42 : vector<4x8x32xf32> to vector<1x4x8x32xf32>
    %cst_38 = arith.constant dense<0.000000e+00> : vector<1x8x32xf32>
    %44 = vector.multi_reduction <add>, %43, %cst_38 [1] : vector<1x4x8x32xf32> to vector<1x8x32xf32>
    %c0_39 = arith.constant 0 : index
    %c0_40 = arith.constant 0 : index
    %c0_41 = arith.constant 0 : index
    %45 = vector.load %arg9[%c0_39, %c0_40, %c0_41] : memref<1x1x32xf32, #tpu.memory_space<vmem>>, vector<1x1x32xf32>
    %46 = vector.shape_cast %45 : vector<1x1x32xf32> to vector<1x32xf32>
    %47 = vector.shape_cast %46 : vector<1x32xf32> to vector<1x1x32xf32>
    %48 = vector.broadcast %47 : vector<1x1x32xf32> to vector<1x8x32xf32>
    %49 = arith.addf %44, %48 : vector<1x8x32xf32>
    %50 = vector.shape_cast %0 : vector<1x8x32xf32> to vector<8x32xf32>
    %51 = vector.shape_cast %49 : vector<1x8x32xf32> to vector<8x32xf32>
    %52 = arith.addf %50, %51 : vector<8x32xf32>
    %c0_42 = arith.constant 0 : index
    %c0_43 = arith.constant 0 : index
    %c0_44 = arith.constant 0 : index
    %53 = vector.load %arg10[%c0_42, %c0_43, %c0_44] : memref<1x1x32xf32, #tpu.memory_space<vmem>>, vector<1x1x32xf32>
    %54 = vector.shape_cast %53 : vector<1x1x32xf32> to vector<1x32xf32>
    %c0_45 = arith.constant 0 : index
    %c0_46 = arith.constant 0 : index
    %c0_47 = arith.constant 0 : index
    %55 = vector.load %arg11[%c0_45, %c0_46, %c0_47] : memref<1x1x32xf32, #tpu.memory_space<vmem>>, vector<1x1x32xf32>
    %56 = vector.shape_cast %55 : vector<1x1x32xf32> to vector<1x32xf32>
    %cst_48 = arith.constant dense<0.000000e+00> : vector<8xf32>
    %57 = vector.multi_reduction <add>, %52, %cst_48 [1] : vector<8x32xf32> to vector<8xf32>
    %58 = vector.shape_cast %57 : vector<8xf32> to vector<8x1xf32>
    %cst_49 = arith.constant 3.200000e+01 : f32
    %59 = vector.broadcast %cst_49 : f32 to vector<8x1xf32>
    %60 = arith.divf %58, %59 : vector<8x1xf32>
    %61 = vector.broadcast %60 : vector<8x1xf32> to vector<8x32xf32>
    %62 = arith.subf %52, %61 : vector<8x32xf32>
    %63 = arith.mulf %62, %62 : vector<8x32xf32>
    %cst_50 = arith.constant dense<0.000000e+00> : vector<8xf32>
    %64 = vector.multi_reduction <add>, %63, %cst_50 [1] : vector<8x32xf32> to vector<8xf32>
    %65 = vector.shape_cast %64 : vector<8xf32> to vector<8x1xf32>
    %cst_51 = arith.constant 3.200000e+01 : f32
    %66 = vector.broadcast %cst_51 : f32 to vector<8x1xf32>
    %67 = arith.divf %65, %66 : vector<8x1xf32>
    %68 = vector.broadcast %60 : vector<8x1xf32> to vector<8x32xf32>
    %69 = arith.subf %52, %68 : vector<8x32xf32>
    %cst_52 = arith.constant 9.99999974E-6 : f32
    %70 = vector.broadcast %cst_52 : f32 to vector<8x1xf32>
    %71 = arith.addf %67, %70 : vector<8x1xf32>
    %72 = math.rsqrt %71 : vector<8x1xf32>
    %73 = vector.broadcast %72 : vector<8x1xf32> to vector<8x32xf32>
    %74 = arith.mulf %69, %73 : vector<8x32xf32>
    %75 = vector.broadcast %54 : vector<1x32xf32> to vector<8x32xf32>
    %76 = arith.mulf %74, %75 : vector<8x32xf32>
    %77 = vector.broadcast %56 : vector<1x32xf32> to vector<8x32xf32>
    %78 = arith.addf %76, %77 : vector<8x32xf32>
    %79 = arith.truncf %78 : vector<8x32xf32> to vector<8x32xbf16>
    %c0_53 = arith.constant 0 : index
    %c0_54 = arith.constant 0 : index
    %c0_55 = arith.constant 0 : index
    %80 = vector.load %arg12[%c0_53, %c0_54, %c0_55] : memref<1x32x2048xbf16, #tpu.memory_space<vmem>>, vector<1x32x2048xbf16>
    %81 = vector.shape_cast %80 : vector<1x32x2048xbf16> to vector<32x2048xbf16>
    %cst_56 = arith.constant dense<0.000000e+00> : vector<8x2048xf32>
    %82 = tpu.matmul %79, %81, %cst_56 {dimension_numbers = #tpu.dot_dimension_numbers<[1], [0], [0], [1], [0, 0, 1, 1], [], []>} : vector<8x32xbf16>, vector<32x2048xbf16>, vector<8x2048xf32> -> vector<8x2048xf32>
    %c0_57 = arith.constant 0 : index
    %c0_58 = arith.constant 0 : index
    %c0_59 = arith.constant 0 : index
    %83 = vector.load %arg13[%c0_57, %c0_58, %c0_59] : memref<1x1x2048xf32, #tpu.memory_space<vmem>>, vector<1x1x2048xf32>
    %84 = vector.shape_cast %83 : vector<1x1x2048xf32> to vector<1x2048xf32>
    %85 = vector.broadcast %84 : vector<1x2048xf32> to vector<8x2048xf32>
    %86 = arith.addf %82, %85 : vector<8x2048xf32>
    %cst_60 = arith.constant 0.000000e+00 : f32
    %87 = vector.broadcast %cst_60 : f32 to vector<8x2048xf32>
    %88 = arith.maximumf %86, %87 : vector<8x2048xf32>
    %89 = arith.truncf %88 : vector<8x2048xf32> to vector<8x2048xbf16>
    %c0_61 = arith.constant 0 : index
    %c0_62 = arith.constant 0 : index
    %c0_63 = arith.constant 0 : index
    %90 = vector.load %arg14[%c0_61, %c0_62, %c0_63] : memref<1x2048x32xbf16, #tpu.memory_space<vmem>>, vector<1x2048x32xbf16>
    %91 = vector.shape_cast %90 : vector<1x2048x32xbf16> to vector<2048x32xbf16>
    %cst_64 = arith.constant dense<0.000000e+00> : vector<8x32xf32>
    %92 = tpu.matmul %89, %91, %cst_64 {dimension_numbers = #tpu.dot_dimension_numbers<[1], [0], [0], [1], [0, 0, 1, 1], [], []>} : vector<8x2048xbf16>, vector<2048x32xbf16>, vector<8x32xf32> -> vector<8x32xf32>
    %c0_65 = arith.constant 0 : index
    %c0_66 = arith.constant 0 : index
    %c0_67 = arith.constant 0 : index
    %93 = vector.load %arg15[%c0_65, %c0_66, %c0_67] : memref<1x1x32xf32, #tpu.memory_space<vmem>>, vector<1x1x32xf32>
    %94 = vector.shape_cast %93 : vector<1x1x32xf32> to vector<1x32xf32>
    %95 = vector.broadcast %94 : vector<1x32xf32> to vector<8x32xf32>
    %96 = arith.addf %92, %95 : vector<8x32xf32>
    %97 = arith.addf %78, %96 : vector<8x32xf32>
    %c0_68 = arith.constant 0 : index
    %c0_69 = arith.constant 0 : index
    %c0_70 = arith.constant 0 : index
    %98 = vector.load %arg16[%c0_68, %c0_69, %c0_70] : memref<1x1x32xf32, #tpu.memory_space<vmem>>, vector<1x1x32xf32>
    %99 = vector.shape_cast %98 : vector<1x1x32xf32> to vector<1x32xf32>
    %c0_71 = arith.constant 0 : index
    %c0_72 = arith.constant 0 : index
    %c0_73 = arith.constant 0 : index
    %100 = vector.load %arg17[%c0_71, %c0_72, %c0_73] : memref<1x1x32xf32, #tpu.memory_space<vmem>>, vector<1x1x32xf32>
    %101 = vector.shape_cast %100 : vector<1x1x32xf32> to vector<1x32xf32>
    %cst_74 = arith.constant dense<0.000000e+00> : vector<8xf32>
    %102 = vector.multi_reduction <add>, %97, %cst_74 [1] : vector<8x32xf32> to vector<8xf32>
    %103 = vector.shape_cast %102 : vector<8xf32> to vector<8x1xf32>
    %cst_75 = arith.constant 3.200000e+01 : f32
    %104 = vector.broadcast %cst_75 : f32 to vector<8x1xf32>
    %105 = arith.divf %103, %104 : vector<8x1xf32>
    %106 = vector.broadcast %105 : vector<8x1xf32> to vector<8x32xf32>
    %107 = arith.subf %97, %106 : vector<8x32xf32>
    %108 = arith.mulf %107, %107 : vector<8x32xf32>
    %cst_76 = arith.constant dense<0.000000e+00> : vector<8xf32>
    %109 = vector.multi_reduction <add>, %108, %cst_76 [1] : vector<8x32xf32> to vector<8xf32>
    %110 = vector.shape_cast %109 : vector<8xf32> to vector<8x1xf32>
    %cst_77 = arith.constant 3.200000e+01 : f32
    %111 = vector.broadcast %cst_77 : f32 to vector<8x1xf32>
    %112 = arith.divf %110, %111 : vector<8x1xf32>
    %113 = vector.broadcast %105 : vector<8x1xf32> to vector<8x32xf32>
    %114 = arith.subf %97, %113 : vector<8x32xf32>
    %cst_78 = arith.constant 9.99999974E-6 : f32
    %115 = vector.broadcast %cst_78 : f32 to vector<8x1xf32>
    %116 = arith.addf %112, %115 : vector<8x1xf32>
    %117 = math.rsqrt %116 : vector<8x1xf32>
    %118 = vector.broadcast %117 : vector<8x1xf32> to vector<8x32xf32>
    %119 = arith.mulf %114, %118 : vector<8x32xf32>
    %120 = vector.broadcast %99 : vector<1x32xf32> to vector<8x32xf32>
    %121 = arith.mulf %119, %120 : vector<8x32xf32>
    %122 = vector.broadcast %101 : vector<1x32xf32> to vector<8x32xf32>
    %123 = arith.addf %121, %122 : vector<8x32xf32>
    %124 = vector.shape_cast %123 : vector<8x32xf32> to vector<1x8x32xf32>
    %125 = vector.extract_strided_slice %124 {offsets = [0, 0, 0], sizes = [1, 1, 32], strides = [1, 1, 1]} : vector<1x8x32xf32> to vector<1x1x32xf32>
    %126 = vector.shape_cast %125 : vector<1x1x32xf32> to vector<1x32xf32>
    %c0_79 = arith.constant 0 : index
    %c0_80 = arith.constant 0 : index
    %127 = vector.load %arg18[%c0_79, %c0_80] : memref<32x96xf32, #tpu.memory_space<vmem>>, vector<32x96xf32>
    %cst_81 = arith.constant dense<0.000000e+00> : vector<1x96xf32>
    %128 = tpu.matmul %126, %127, %cst_81 {dimension_numbers = #tpu.dot_dimension_numbers<[1], [0], [0], [1], [0, 0, 1, 1], [], []>} : vector<1x32xf32>, vector<32x96xf32>, vector<1x96xf32> -> vector<1x96xf32>
    %c0_82 = arith.constant 0 : index
    %c0_83 = arith.constant 0 : index
    %129 = vector.load %arg19[%c0_82, %c0_83] : memref<1x96xf32, #tpu.memory_space<vmem>>, vector<1x96xf32>
    %130 = arith.addf %128, %129 : vector<1x96xf32>
    %cst_84 = arith.constant dense<0xFF800000> : vector<1xf32>
    %131 = vector.multi_reduction <maximumf>, %130, %cst_84 [1] : vector<1x96xf32> to vector<1xf32>
    %132 = vector.shape_cast %131 : vector<1xf32> to vector<1x1xf32>
    %133 = vector.broadcast %132 : vector<1x1xf32> to vector<1x96xf32>
    %134 = arith.subf %130, %133 : vector<1x96xf32>
    %135 = math.exp %134 : vector<1x96xf32>
    %cst_85 = arith.constant dense<0.000000e+00> : vector<1xf32>
    %136 = vector.multi_reduction <add>, %135, %cst_85 [1] : vector<1x96xf32> to vector<1xf32>
    %137 = vector.shape_cast %136 : vector<1xf32> to vector<1x1xf32>
    %138 = tpu.reciprocal %137 {approx = true} : vector<1x1xf32> -> vector<1x1xf32>
    %139 = vector.broadcast %138 : vector<1x1xf32> to vector<1x96xf32>
    %140 = arith.mulf %135, %139 : vector<1x96xf32>
    %c0_86 = arith.constant 0 : index
    %c0_87 = arith.constant 0 : index
    %141 = vector.load %arg20[%c0_86, %c0_87] : memref<96x192xf32, #tpu.memory_space<vmem>>, vector<96x192xf32>
    %cst_88 = arith.constant dense<0.000000e+00> : vector<1x192xf32>
    %142 = tpu.matmul %140, %141, %cst_88 {dimension_numbers = #tpu.dot_dimension_numbers<[1], [0], [0], [1], [0, 0, 1, 1], [], []>} : vector<1x96xf32>, vector<96x192xf32>, vector<1x192xf32> -> vector<1x192xf32>
    %c0_89 = arith.constant 0 : index
    %c0_90 = arith.constant 0 : index
    %c0_91 = arith.constant 0 : index
    %143 = vector.load %arg21[%c0_89, %c0_90, %c0_91] : memref<1x1x192xf32, #tpu.memory_space<vmem>>, vector<1x1x192xf32>
    %144 = vector.shape_cast %143 : vector<1x1x192xf32> to vector<1x192xf32>
    %145 = vector.shape_cast %142 : vector<1x192xf32> to vector<1x1x192xf32>
    tpu.vector_store %arg21[%c0_89, %c0_90, %c0_91], %145 {strides = array<i32>} : memref<1x1x192xf32, #tpu.memory_space<vmem>>, vector<1x1x192xf32>,
    return
  }
  func.func @transform_0(%arg0: i32) -> (i32, i32, i32) {
    %c0_i32 = arith.constant 0 : i32
    %c0_i32_0 = arith.constant 0 : i32
    %c0_i32_1 = arith.constant 0 : i32
    return %arg0, %c0_i32, %c0_i32_0 : i32, i32, i32
  }
  func.func @transform_1(%arg0: i32) -> (i32, i32, i32, i32) {
    %c0_i32 = arith.constant 0 : i32
    %c0_i32_0 = arith.constant 0 : i32
    %c0_i32_1 = arith.constant 0 : i32
    %c0_i32_2 = arith.constant 0 : i32
    %c0_i32_3 = arith.constant 0 : i32
    return %c0_i32, %c0_i32_0, %c0_i32_1, %c0_i32_2 : i32, i32, i32, i32
  }
  func.func @transform_2(%arg0: i32) -> (i32, i32, i32, i32) {
    %c0_i32 = arith.constant 0 : i32
    %c0_i32_0 = arith.constant 0 : i32
    %c0_i32_1 = arith.constant 0 : i32
    %c0_i32_2 = arith.constant 0 : i32
    %c0_i32_3 = arith.constant 0 : i32
    return %c0_i32, %c0_i32_0, %c0_i32_1, %c0_i32_2 : i32, i32, i32, i32
  }
  func.func @transform_3(%arg0: i32) -> (i32, i32, i32, i32) {
    %c0_i32 = arith.constant 0 : i32
    %c0_i32_0 = arith.constant 0 : i32
    %c0_i32_1 = arith.constant 0 : i32
    %c0_i32_2 = arith.constant 0 : i32
    %c0_i32_3 = arith.constant 0 : i32
    return %c0_i32, %c0_i32_0, %c0_i32_1, %c0_i32_2 : i32, i32, i32, i32
  }
  func.func @transform_4(%arg0: i32) -> (i32, i32, i32, i32) {
    %c0_i32 = arith.constant 0 : i32
    %c0_i32_0 = arith.constant 0 : i32
    %c0_i32_1 = arith.constant 0 : i32
    %c0_i32_2 = arith.constant 0 : i32
    %c0_i32_3 = arith.constant 0 : i32
    return %c0_i32, %c0_i32_0, %c0_i32_1, %c0_i32_2 : i32, i32, i32, i32
  }
  func.func @transform_5(%arg0: i32) -> (i32, i32, i32, i32) {
    %c0_i32 = arith.constant 0 : i32
    %c0_i32_0 = arith.constant 0 : i32
    %c0_i32_1 = arith.constant 0 : i32
    %c0_i32_2 = arith.constant 0 : i32
    %c0_i32_3 = arith.constant 0 : i32
    return %c0_i32, %c0_i32_0, %c0_i32_1, %c0_i32_2 : i32, i32, i32, i32
  }
  func.func @transform_6(%arg0: i32) -> (i32, i32, i32, i32) {
    %c0_i32 = arith.constant 0 : i32
    %c0_i32_0 = arith.constant 0 : i32
    %c0_i32_1 = arith.constant 0 : i32
    %c0_i32_2 = arith.constant 0 : i32
    %c0_i32_3 = arith.constant 0 : i32
    return %c0_i32, %c0_i32_0, %c0_i32_1, %c0_i32_2 : i32, i32, i32, i32
  }
  func.func @transform_7(%arg0: i32) -> (i32, i32, i32, i32) {
    %c0_i32 = arith.constant 0 : i32
    %c0_i32_0 = arith.constant 0 : i32
    %c0_i32_1 = arith.constant 0 : i32
    %c0_i32_2 = arith.constant 0 : i32
    %c0_i32_3 = arith.constant 0 : i32
    return %c0_i32, %c0_i32_0, %c0_i32_1, %c0_i32_2 : i32, i32, i32, i32
  }
  func.func @transform_8(%arg0: i32) -> (i32, i32, i32) {
    %c0_i32 = arith.constant 0 : i32
    %c0_i32_0 = arith.constant 0 : i32
    %c0_i32_1 = arith.constant 0 : i32
    %c0_i32_2 = arith.constant 0 : i32
    return %c0_i32, %c0_i32_0, %c0_i32_1 : i32, i32, i32
  }
  func.func @transform_9(%arg0: i32) -> (i32, i32, i32) {
    %c0_i32 = arith.constant 0 : i32
    %c0_i32_0 = arith.constant 0 : i32
    %c0_i32_1 = arith.constant 0 : i32
    %c0_i32_2 = arith.constant 0 : i32
    return %c0_i32, %c0_i32_0, %c0_i32_1 : i32, i32, i32
  }
  func.func @transform_10(%arg0: i32) -> (i32, i32, i32) {
    %c0_i32 = arith.constant 0 : i32
    %c0_i32_0 = arith.constant 0 : i32
    %c0_i32_1 = arith.constant 0 : i32
    %c0_i32_2 = arith.constant 0 : i32
    return %c0_i32, %c0_i32_0, %c0_i32_1 : i32, i32, i32
  }
  func.func @transform_11(%arg0: i32) -> (i32, i32, i32) {
    %c0_i32 = arith.constant 0 : i32
    %c0_i32_0 = arith.constant 0 : i32
    %c0_i32_1 = arith.constant 0 : i32
    %c0_i32_2 = arith.constant 0 : i32
    return %c0_i32, %c0_i32_0, %c0_i32_1 : i32, i32, i32
  }
  func.func @transform_12(%arg0: i32) -> (i32, i32, i32) {
    %c0_i32 = arith.constant 0 : i32
    %c0_i32_0 = arith.constant 0 : i32
    %c0_i32_1 = arith.constant 0 : i32
    %c0_i32_2 = arith.constant 0 : i32
    return %c0_i32, %c0_i32_0, %c0_i32_1 : i32, i32, i32
  }
  func.func @transform_13(%arg0: i32) -> (i32, i32, i32) {
    %c0_i32 = arith.constant 0 : i32
    %c0_i32_0 = arith.constant 0 : i32
    %c0_i32_1 = arith.constant 0 : i32
    %c0_i32_2 = arith.constant 0 : i32
    return %c0_i32, %c0_i32_0, %c0_i32_1 : i32, i32, i32
  }
  func.func @transform_14(%arg0: i32) -> (i32, i32, i32) {
    %c0_i32 = arith.constant 0 : i32
    %c0_i32_0 = arith.constant 0 : i32
    %c0_i32_1 = arith.constant 0 : i32
    %c0_i32_2 = arith.constant 0 : i32
    return %c0_i32, %c0_i32_0, %c0_i32_1 : i32, i32, i32
  }
  func.func @transform_15(%arg0: i32) -> (i32, i32, i32) {
    %c0_i32 = arith.constant 0 : i32
    %c0_i32_0 = arith.constant 0 : i32
    %c0_i32_1 = arith.constant 0 : i32
    %c0_i32_2 = arith.constant 0 : i32
    return %c0_i32, %c0_i32_0, %c0_i32_1 : i32, i32, i32
  }
  func.func @transform_16(%arg0: i32) -> (i32, i32, i32) {
    %c0_i32 = arith.constant 0 : i32
    %c0_i32_0 = arith.constant 0 : i32
    %c0_i32_1 = arith.constant 0 : i32
    %c0_i32_2 = arith.constant 0 : i32
    return %c0_i32, %c0_i32_0, %c0_i32_1 : i32, i32, i32
  }
  func.func @transform_17(%arg0: i32) -> (i32, i32) {
    %c0_i32 = arith.constant 0 : i32
    %c0_i32_0 = arith.constant 0 : i32
    %c0_i32_1 = arith.constant 0 : i32
    return %c0_i32, %c0_i32_0 : i32, i32
  }
  func.func @transform_18(%arg0: i32) -> (i32, i32) {
    %c0_i32 = arith.constant 0 : i32
    %c0_i32_0 = arith.constant 0 : i32
    %c0_i32_1 = arith.constant 0 : i32
    return %c0_i32, %c0_i32_0 : i32, i32
  }
  func.func @transform_19(%arg0: i32) -> (i32, i32) {
    %c0_i32 = arith.constant 0 : i32
    %c0_i32_0 = arith.constant 0 : i32
    %c0_i32_1 = arith.constant 0 : i32
    return %c0_i32, %c0_i32_0 : i32, i32
  }
  func.func @transform_20(%arg0: i32) -> (i32, i32, i32) {
    %c0_i32 = arith.constant 0 : i32
    %c0_i32_0 = arith.constant 0 : i32
    %c0_i32_1 = arith.constant 0 : i32
    return %arg0, %c0_i32, %c0_i32_0 : i32, i32, i32
  }
}

</mosaic_0001>

<llo_original>
// kernel: prompt_sat_forward.1
$region0: #{prompt_sat_forward.1}
  #allocation0 [shape = 'u32[]', space=smem, size = 0x4, offset = 0x4, fixed_abs, tag = 'smem constant byte address 0x4 - core index']
  #allocation1 [shape = 'u32[144,128]{1,0:T(1,128)}', space=vmem, size = 0x12000, scoped, tag = 'internal scratch']
  %s0 = inlined_call_operand.vmem [shape: f32[2,8,32], index: 0, kind: input, shape index: {}]
  %s1 = inlined_call_operand.vmem [shape: f32[1,4,32,8], index: 1, kind: input, shape index: {}]
  %s2 = inlined_call_operand.vmem [shape: f32[1,4,32,8], index: 2, kind: input, shape index: {}]
  %s3 = inlined_call_operand.vmem [shape: f32[1,4,32,8], index: 3, kind: input, shape index: {}]
  %s4 = inlined_call_operand.vmem [shape: f32[1,4,1,8], index: 4, kind: input, shape index: {}]
  %s5 = inlined_call_operand.vmem [shape: f32[1,4,1,8], index: 5, kind: input, shape index: {}]
  %s6 = inlined_call_operand.vmem [shape: f32[1,4,1,8], index: 6, kind: input, shape index: {}]
  %s7 = inlined_call_operand.vmem [shape: f32[1,4,8,32], index: 7, kind: input, shape index: {}]
  %s8 = inlined_call_operand.vmem [shape: f32[1,1,32], index: 8, kind: input, shape index: {}]
  %s9 = inlined_call_operand.vmem [shape: f32[1,1,32], index: 9, kind: input, shape index: {}]
  %s10 = inlined_call_operand.vmem [shape: f32[1,1,32], index: 10, kind: input, shape index: {}]
  %s11 = inlined_call_operand.vmem [shape: bf16[1,32,2048], index: 11, kind: input, shape index: {}]
  %s12 = inlined_call_operand.vmem [shape: f32[1,1,2048], index: 12, kind: input, shape index: {}]
  %s13 = inlined_call_operand.vmem [shape: bf16[1,2048,32], index: 13, kind: input, shape index: {}]
  %s14 = inlined_call_operand.vmem [shape: f32[1,1,32], index: 14, kind: input, shape index: {}]
  %s15 = inlined_call_operand.vmem [shape: f32[1,1,32], index: 15, kind: input, shape index: {}]
  %s16 = inlined_call_operand.vmem [shape: f32[1,1,32], index: 16, kind: input, shape index: {}]
  %s17 = inlined_call_operand.vmem [shape: f32[32,96], index: 17, kind: input, shape index: {}]
  %s18 = inlined_call_operand.vmem [shape: f32[1,96], index: 18, kind: input, shape index: {}]
  %s19 = inlined_call_operand.vmem [shape: f32[96,192], index: 19, kind: input, shape index: {}]
  %s20 = inlined_call_operand.vmem [shape: f32[2,1,192], index: 20, kind: output, shape index: {}]
  %s21 = sld [smem:[#allocation0]]
  $region113: #{prompt_sat_forward.1} parent=0
    _
  %s23 = ssub.s32 1, %s21
  %s24 = scalar_select 0, %s23, %s21
  loop: start=0, step=1, limit=4
  $region2: #{prompt_sat_forward.1} parent=0 // loop_pre_header
    _
  $region3: #{prompt_sat_forward.1} parent=0 // loop_header
    %s26 = sphi 0, %s30
    %p27 = scmp.ge.s32.totalorder %s26, 4
    %s36 = sphi 0, %s38
    %s39 = sphi 0, %s36
    %s40 = sphi 0, %s39
    %s56 = sphi 0, %s40
    %s60 = sphi 0, %s60
    %s62 = sphi 0, %s60
    %s63 = sphi 0, %s62
    %s77 = sphi 0, %s63
    %s81 = sphi 0, %s81
    %s83 = sphi 0, %s81
    %s84 = sphi 0, %s83
    %s98 = sphi 0, %s84
    %s102 = sphi 0, %s102
    %s104 = sphi 0, %s102
    %s105 = sphi 0, %s104
    %s119 = sphi 0, %s105
    %s123 = sphi 0, %s123
    %s125 = sphi 0, %s123
    %s126 = sphi 0, %s125
    %s140 = sphi 0, %s126
    %s144 = sphi 0, %s144
    %s146 = sphi 0, %s144
    %s147 = sphi 0, %s146
    %s161 = sphi 0, %s147
    %s165 = sphi 0, %s165
    %s167 = sphi 0, %s165
    %s168 = sphi 0, %s167
    %s182 = sphi 0, %s168
    %s186 = sphi 0, %s186
    %s188 = sphi 0, %s186
    %s189 = sphi 0, %s188
    %s203 = sphi 0, %s189
    %s207 = sphi 0, %s207
    %s209 = sphi 0, %s207
    %s210 = sphi 0, %s209
    %s224 = sphi 0, %s210
    %s228 = sphi 0, %s228
    %s230 = sphi 0, %s228
    %s231 = sphi 0, %s230
    %s245 = sphi 0, %s231
    %s249 = sphi 0, %s249
    %s251 = sphi 0, %s249
    %s252 = sphi 0, %s251
    %s266 = sphi 0, %s252
    %s270 = sphi 0, %s270
    %s272 = sphi 0, %s270
    %s273 = sphi 0, %s272
    %s287 = sphi 0, %s273
    %s291 = sphi 0, %s291
    %s293 = sphi 0, %s291
    %s294 = sphi 0, %s293
    %s308 = sphi 0, %s294
    %s312 = sphi 0, %s312
    %s314 = sphi 0, %s312
    %s315 = sphi 0, %s314
    %s329 = sphi 0, %s315
    %s333 = sphi 0, %s333
    %s335 = sphi 0, %s333
    %s336 = sphi 0, %s335
    %s350 = sphi 0, %s336
    %s354 = sphi 0, %s354
    %s356 = sphi 0, %s354
    %s357 = sphi 0, %s356
    %s371 = sphi 0, %s357
    %s375 = sphi 0, %s375
    %s377 = sphi 0, %s375
    %s378 = sphi 0, %s377
    %s392 = sphi 0, %s378
    %s396 = sphi 0, %s396
    %s398 = sphi 0, %s396
    %s399 = sphi 0, %s398
    %s413 = sphi 0, %s399
    %s417 = sphi 0, %s417
    %s419 = sphi 0, %s417
    %s420 = sphi 0, %s419
    %s434 = sphi 0, %s420
    %s438 = sphi 0, %s438
    %s440 = sphi 0, %s438
    %s441 = sphi 0, %s440
    %s455 = sphi 0, %s441
    %s461 = sphi 0, %s463
    %s464 = sphi 0, %s461
    %s465 = sphi 0, %s464
    %s481 = sphi 0, %s465
  $region4: #{prompt_sat_forward.1} parent=0 // loop_header_branch
    %29 = sbr.rel (%p27) target = $region8
  $region5: #{prompt_sat_forward.1} parent=0 // loop_body
    %s31 = ssub.s32 %s26, 1
    %s32 = ssub.s32 %s26, 2
    %s33 = sadd.s32 %s26, 1
    %s34 = ssub.s32 %s26, %s33
    %p35 = scmp.eq.s32.totalorder %s34, 0
    %s37 = sadd.s32 %s36, 1
    %s38 = scalar_select %p35, %s36, %s37
    %p41 = pneg %p35
    %p42 = scmp.eq.s32.totalorder %s26, 1
    %p43 = por %p41, %p42
    %p44 = scmp.ne.s32.totalorder %s36, %s39
    %p45 = scmp.eq.s32.totalorder %s26, 0
    %p46 = por %p44, %p45
    %p47 = scmp.ne.s32.totalorder %s36, %s39
    %p48 = scmp.eq.s32.totalorder %s31, 1
    %p49 = por %p47, %p48
    %p50 = scmp.ne.s32.totalorder %s39, %s40
    %p51 = scmp.eq.s32.totalorder %s31, 0
    %p52 = por %p50, %p51
    %p53 = scmp.ne.s32.totalorder %s39, %s40
    %p54 = scmp.eq.s32.totalorder %s32, 1
    %p55 = por %p53, %p54
    %p57 = scmp.ne.s32.totalorder %s40, %s56
    %p58 = scmp.eq.s32.totalorder %s32, 0
    %p59 = por %p57, %p58
    %s61 = sadd.s32 %s60, 1
    %p64 = scmp.eq.s32.totalorder %s26, 1
    %p65 = scmp.ne.s32.totalorder %s60, %s62
    %p66 = scmp.eq.s32.totalorder %s26, 0
    %p67 = por %p65, %p66
    %p68 = scmp.ne.s32.totalorder %s60, %s62
    %p69 = scmp.eq.s32.totalorder %s31, 1
    %p70 = por %p68, %p69
    %p71 = scmp.ne.s32.totalorder %s62, %s63
    %p72 = scmp.eq.s32.totalorder %s31, 0
    %p73 = por %p71, %p72
    %p74 = scmp.ne.s32.totalorder %s62, %s63
    %p75 = scmp.eq.s32.totalorder %s32, 1
    %p76 = por %p74, %p75
    %p78 = scmp.ne.s32.totalorder %s63, %s77
    %p79 = scmp.eq.s32.totalorder %s32, 0
    %p80 = por %p78, %p79
    %s82 = sadd.s32 %s81, 1
    %p85 = scmp.eq.s32.totalorder %s26, 1
    %p86 = scmp.ne.s32.totalorder %s81, %s83
    %p87 = scmp.eq.s32.totalorder %s26, 0
    %p88 = por %p86, %p87
    %p89 = scmp.ne.s32.totalorder %s81, %s83
    %p90 = scmp.eq.s32.totalorder %s31, 1
    %p91 = por %p89, %p90
    %p92 = scmp.ne.s32.totalorder %s83, %s84
    %p93 = scmp.eq.s32.totalorder %s31, 0
    %p94 = por %p92, %p93
    %p95 = scmp.ne.s32.totalorder %s83, %s84
    %p96 = scmp.eq.s32.totalorder %s32, 1
    %p97 = por %p95, %p96
    %p99 = scmp.ne.s32.totalorder %s84, %s98
    %p100 = scmp.eq.s32.totalorder %s32, 0
    %p101 = por %p99, %p100
    %s103 = sadd.s32 %s102, 1
    %p106 = scmp.eq.s32.totalorder %s26, 1
    %p107 = scmp.ne.s32.totalorder %s102, %s104
    %p108 = scmp.eq.s32.totalorder %s26, 0
    %p109 = por %p107, %p108
    %p110 = scmp.ne.s32.totalorder %s102, %s104
    %p111 = scmp.eq.s32.totalorder %s31, 1
    %p112 = por %p110, %p111
    %p113 = scmp.ne.s32.totalorder %s104, %s105
    %p114 = scmp.eq.s32.totalorder %s31, 0
    %p115 = por %p113, %p114
    %p116 = scmp.ne.s32.totalorder %s104, %s105
    %p117 = scmp.eq.s32.totalorder %s32, 1
    %p118 = por %p116, %p117
    %p120 = scmp.ne.s32.totalorder %s105, %s119
    %p121 = scmp.eq.s32.totalorder %s32, 0
    %p122 = por %p120, %p121
    %s124 = sadd.s32 %s123, 1
    %p127 = scmp.eq.s32.totalorder %s26, 1
    %p128 = scmp.ne.s32.totalorder %s123, %s125
    %p129 = scmp.eq.s32.totalorder %s26, 0
    %p130 = por %p128, %p129
    %p131 = scmp.ne.s32.totalorder %s123, %s125
    %p132 = scmp.eq.s32.totalorder %s31, 1
    %p133 = por %p131, %p132
    %p134 = scmp.ne.s32.totalorder %s125, %s126
    %p135 = scmp.eq.s32.totalorder %s31, 0
    %p136 = por %p134, %p135
    %p137 = scmp.ne.s32.totalorder %s125, %s126
    %p138 = scmp.eq.s32.totalorder %s32, 1
    %p139 = por %p137, %p138
    %p141 = scmp.ne.s32.totalorder %s126, %s140
    %p142 = scmp.eq.s32.totalorder %s32, 0
    %p143 = por %p141, %p142
    %s145 = sadd.s32 %s144, 1
    %p148 = scmp.eq.s32.totalorder %s26, 1
    %p149 = scmp.ne.s32.totalorder %s144, %s146
    %p150 = scmp.eq.s32.totalorder %s26, 0
    %p151 = por %p149, %p150
    %p152 = scmp.ne.s32.totalorder %s144, %s146
    %p153 = scmp.eq.s32.totalorder %s31, 1
    %p154 = por %p152, %p153
    %p155 = scmp.ne.s32.totalorder %s146, %s147
    %p156 = scmp.eq.s32.totalorder %s31, 0
    %p157 = por %p155, %p156
    %p158 = scmp.ne.s32.totalorder %s146, %s147
    %p159 = scmp.eq.s32.totalorder %s32, 1
    %p160 = por %p158, %p159
    %p162 = scmp.ne.s32.totalorder %s147, %s161
    %p163 = scmp.eq.s32.totalorder %s32, 0
    %p164 = por %p162, %p163
    %s166 = sadd.s32 %s165, 1
    %p169 = scmp.eq.s32.totalorder %s26, 1
    %p170 = scmp.ne.s32.totalorder %s165, %s167
    %p171 = scmp.eq.s32.totalorder %s26, 0
    %p172 = por %p170, %p171
    %p173 = scmp.ne.s32.totalorder %s165, %s167
    %p174 = scmp.eq.s32.totalorder %s31, 1
    %p175 = por %p173, %p174
    %p176 = scmp.ne.s32.totalorder %s167, %s168
    %p177 = scmp.eq.s32.totalorder %s31, 0
    %p178 = por %p176, %p177
    %p179 = scmp.ne.s32.totalorder %s167, %s168
    %p180 = scmp.eq.s32.totalorder %s32, 1
    %p181 = por %p179, %p180
    %p183 = scmp.ne.s32.totalorder %s168, %s182
    %p184 = scmp.eq.s32.totalorder %s32, 0
    %p185 = por %p183, %p184
    %s187 = sadd.s32 %s186, 1
    %p190 = scmp.eq.s32.totalorder %s26, 1
    %p191 = scmp.ne.s32.totalorder %s186, %s188
    %p192 = scmp.eq.s32.totalorder %s26, 0
    %p193 = por %p191, %p192
    %p194 = scmp.ne.s32.totalorder %s186, %s188
    %p195 = scmp.eq.s32.totalorder %s31, 1
    %p196 = por %p194, %p195
    %p197 = scmp.ne.s32.totalorder %s188, %s189
    %p198 = scmp.eq.s32.totalorder %s31, 0
    %p199 = por %p197, %p198
    %p200 = scmp.ne.s32.totalorder %s188, %s189
    %p201 = scmp.eq.s32.totalorder %s32, 1
    %p202 = por %p200, %p201
    %p204 = scmp.ne.s32.totalorder %s189, %s203
    %p205 = scmp.eq.s32.totalorder %s32, 0
    %p206 = por %p204, %p205
    %s208 = sadd.s32 %s207, 1
    %p211 = scmp.eq.s32.totalorder %s26, 1
    %p212 = scmp.ne.s32.totalorder %s207, %s209
    %p213 = scmp.eq.s32.totalorder %s26, 0
    %p214 = por %p212, %p213
    %p215 = scmp.ne.s32.totalorder %s207, %s209
    %p216 = scmp.eq.s32.totalorder %s31, 1
    %p217 = por %p215, %p216
    %p218 = scmp.ne.s32.totalorder %s209, %s210
    %p219 = scmp.eq.s32.totalorder %s31, 0
    %p220 = por %p218, %p219
    %p221 = scmp.ne.s32.totalorder %s209, %s210
    %p222 = scmp.eq.s32.totalorder %s32, 1
    %p223 = por %p221, %p222
    %p225 = scmp.ne.s32.totalorder %s210, %s224
    %p226 = scmp.eq.s32.totalorder %s32, 0
    %p227 = por %p225, %p226
    %s229 = sadd.s32 %s228, 1
    %p232 = scmp.eq.s32.totalorder %s26, 1
    %p233 = scmp.ne.s32.totalorder %s228, %s230
    %p234 = scmp.eq.s32.totalorder %s26, 0
    %p235 = por %p233, %p234
    %p236 = scmp.ne.s32.totalorder %s228, %s230
    %p237 = scmp.eq.s32.totalorder %s31, 1
    %p238 = por %p236, %p237
    %p239 = scmp.ne.s32.totalorder %s230, %s231
    %p240 = scmp.eq.s32.totalorder %s31, 0
    %p241 = por %p239, %p240
    %p242 = scmp.ne.s32.totalorder %s230, %s231
    %p243 = scmp.eq.s32.totalorder %s32, 1
    %p244 = por %p242, %p243
    %p246 = scmp.ne.s32.totalorder %s231, %s245
    %p247 = scmp.eq.s32.totalorder %s32, 0
    %p248 = por %p246, %p247
    %s250 = sadd.s32 %s249, 1
    %p253 = scmp.eq.s32.totalorder %s26, 1
    %p254 = scmp.ne.s32.totalorder %s249, %s251
    %p255 = scmp.eq.s32.totalorder %s26, 0
    %p256 = por %p254, %p255
    %p257 = scmp.ne.s32.totalorder %s249, %s251
    %p258 = scmp.eq.s32.totalorder %s31, 1
    %p259 = por %p257, %p258
    %p260 = scmp.ne.s32.totalorder %s251, %s252
    %p261 = scmp.eq.s32.totalorder %s31, 0
    %p262 = por %p260, %p261
    %p263 = scmp.ne.s32.totalorder %s251, %s252
    %p264 = scmp.eq.s32.totalorder %s32, 1
    %p265 = por %p263, %p264
    %p267 = scmp.ne.s32.totalorder %s252, %s266
    %p268 = scmp.eq.s32.totalorder %s32, 0
    %p269 = por %p267, %p268
    %s271 = sadd.s32 %s270, 1
    %p274 = scmp.eq.s32.totalorder %s26, 1
    %p275 = scmp.ne.s32.totalorder %s270, %s272
    %p276 = scmp.eq.s32.totalorder %s26, 0
    %p277 = por %p275, %p276
    %p278 = scmp.ne.s32.totalorder %s270, %s272
    %p279 = scmp.eq.s32.totalorder %s31, 1
    %p280 = por %p278, %p279
    %p281 = scmp.ne.s32.totalorder %s272, %s273
    %p282 = scmp.eq.s32.totalorder %s31, 0
    %p283 = por %p281, %p282
    %p284 = scmp.ne.s32.totalorder %s272, %s273
    %p285 = scmp.eq.s32.totalorder %s32, 1
    %p286 = por %p284, %p285
    %p288 = scmp.ne.s32.totalorder %s273, %s287
    %p289 = scmp.eq.s32.totalorder %s32, 0
    %p290 = por %p288, %p289
    %s292 = sadd.s32 %s291, 1
    %p295 = scmp.eq.s32.totalorder %s26, 1
    %p296 = scmp.ne.s32.totalorder %s291, %s293
    %p297 = scmp.eq.s32.totalorder %s26, 0
    %p298 = por %p296, %p297
    %p299 = scmp.ne.s32.totalorder %s291, %s293
    %p300 = scmp.eq.s32.totalorder %s31, 1
    %p301 = por %p299, %p300
    %p302 = scmp.ne.s32.totalorder %s293, %s294
    %p303 = scmp.eq.s32.totalorder %s31, 0
    %p304 = por %p302, %p303
    %p305 = scmp.ne.s32.totalorder %s293, %s294
    %p306 = scmp.eq.s32.totalorder %s32, 1
    %p307 = por %p305, %p306
    %p309 = scmp.ne.s32.totalorder %s294, %s308
    %p310 = scmp.eq.s32.totalorder %s32, 0
    %p311 = por %p309, %p310
    %s313 = sadd.s32 %s312, 1
    %p316 = scmp.eq.s32.totalorder %s26, 1
    %p317 = scmp.ne.s32.totalorder %s312, %s314
    %p318 = scmp.eq.s32.totalorder %s26, 0
    %p319 = por %p317, %p318
    %p320 = scmp.ne.s32.totalorder %s312, %s314
    %p321 = scmp.eq.s32.totalorder %s31, 1
    %p322 = por %p320, %p321
    %p323 = scmp.ne.s32.totalorder %s314, %s315
    %p324 = scmp.eq.s32.totalorder %s31, 0
    %p325 = por %p323, %p324
    %p326 = scmp.ne.s32.totalorder %s314, %s315
    %p327 = scmp.eq.s32.totalorder %s32, 1
    %p328 = por %p326, %p327
    %p330 = scmp.ne.s32.totalorder %s315, %s329
    %p331 = scmp.eq.s32.totalorder %s32, 0
    %p332 = por %p330, %p331
    %s334 = sadd.s32 %s333, 1
    %p337 = scmp.eq.s32.totalorder %s26, 1
    %p338 = scmp.ne.s32.totalorder %s333, %s335
    %p339 = scmp.eq.s32.totalorder %s26, 0
    %p340 = por %p338, %p339
    %p341 = scmp.ne.s32.totalorder %s333, %s335
    %p342 = scmp.eq.s32.totalorder %s31, 1
    %p343 = por %p341, %p342
    %p344 = scmp.ne.s32.totalorder %s335, %s336
    %p345 = scmp.eq.s32.totalorder %s31, 0
    %p346 = por %p344, %p345
    %p347 = scmp.ne.s32.totalorder %s335, %s336
    %p348 = scmp.eq.s32.totalorder %s32, 1
    %p349 = por %p347, %p348
    %p351 = scmp.ne.s32.totalorder %s336, %s350
    %p352 = scmp.eq.s32.totalorder %s32, 0
    %p353 = por %p351, %p352
    %s355 = sadd.s32 %s354, 1
    %p358 = scmp.eq.s32.totalorder %s26, 1
    %p359 = scmp.ne.s32.totalorder %s354, %s356
    %p360 = scmp.eq.s32.totalorder %s26, 0
    %p361 = por %p359, %p360
    %p362 = scmp.ne.s32.totalorder %s354, %s356
    %p363 = scmp.eq.s32.totalorder %s31, 1
    %p364 = por %p362, %p363
    %p365 = scmp.ne.s32.totalorder %s356, %s357
    %p366 = scmp.eq.s32.totalorder %s31, 0
    %p367 = por %p365, %p366
    %p368 = scmp.ne.s32.totalorder %s356, %s357
    %p369 = scmp.eq.s32.totalorder %s32, 1
    %p370 = por %p368, %p369
    %p372 = scmp.ne.s32.totalorder %s357, %s371
    %p373 = scmp.eq.s32.totalorder %s32, 0
    %p374 = por %p372, %p373
    %s376 = sadd.s32 %s375, 1
    %p379 = scmp.eq.s32.totalorder %s26, 1
    %p380 = scmp.ne.s32.totalorder %s375, %s377
    %p381 = scmp.eq.s32.totalorder %s26, 0
    %p382 = por %p380, %p381
    %p383 = scmp.ne.s32.totalorder %s375, %s377
    %p384 = scmp.eq.s32.totalorder %s31, 1
    %p385 = por %p383, %p384
    %p386 = scmp.ne.s32.totalorder %s377, %s378
    %p387 = scmp.eq.s32.totalorder %s31, 0
    %p388 = por %p386, %p387
    %p389 = scmp.ne.s32.totalorder %s377, %s378
    %p390 = scmp.eq.s32.totalorder %s32, 1
    %p391 = por %p389, %p390
    %p393 = scmp.ne.s32.totalorder %s378, %s392
    %p394 = scmp.eq.s32.totalorder %s32, 0
    %p395 = por %p393, %p394
    %s397 = sadd.s32 %s396, 1
    %p400 = scmp.eq.s32.totalorder %s26, 1
    %p401 = scmp.ne.s32.totalorder %s396, %s398
    %p402 = scmp.eq.s32.totalorder %s26, 0
    %p403 = por %p401, %p402
    %p404 = scmp.ne.s32.totalorder %s396, %s398
    %p405 = scmp.eq.s32.totalorder %s31, 1
    %p406 = por %p404, %p405
    %p407 = scmp.ne.s32.totalorder %s398, %s399
    %p408 = scmp.eq.s32.totalorder %s31, 0
    %p409 = por %p407, %p408
    %p410 = scmp.ne.s32.totalorder %s398, %s399
    %p411 = scmp.eq.s32.totalorder %s32, 1
    %p412 = por %p410, %p411
    %p414 = scmp.ne.s32.totalorder %s399, %s413
    %p415 = scmp.eq.s32.totalorder %s32, 0
    %p416 = por %p414, %p415
    %s418 = sadd.s32 %s417, 1
    %p421 = scmp.eq.s32.totalorder %s26, 1
    %p422 = scmp.ne.s32.totalorder %s417, %s419
    %p423 = scmp.eq.s32.totalorder %s26, 0
    %p424 = por %p422, %p423
    %p425 = scmp.ne.s32.totalorder %s417, %s419
    %p426 = scmp.eq.s32.totalorder %s31, 1
    %p427 = por %p425, %p426
    %p428 = scmp.ne.s32.totalorder %s419, %s420
    %p429 = scmp.eq.s32.totalorder %s31, 0
    %p430 = por %p428, %p429
    %p431 = scmp.ne.s32.totalorder %s419, %s420
    %p432 = scmp.eq.s32.totalorder %s32, 1
    %p433 = por %p431, %p432
    %p435 = scmp.ne.s32.totalorder %s420, %s434
    %p436 = scmp.eq.s32.totalorder %s32, 0
    %p437 = por %p435, %p436
    %s439 = sadd.s32 %s438, 1
    %p442 = scmp.eq.s32.totalorder %s26, 1
    %p443 = scmp.ne.s32.totalorder %s438, %s440
    %p444 = scmp.eq.s32.totalorder %s26, 0
    %p445 = por %p443, %p444
    %p446 = scmp.ne.s32.totalorder %s438, %s440
    %p447 = scmp.eq.s32.totalorder %s31, 1
    %p448 = por %p446, %p447
    %p449 = scmp.ne.s32.totalorder %s440, %s441
    %p450 = scmp.eq.s32.totalorder %s31, 0
    %p451 = por %p449, %p450
    %p452 = scmp.ne.s32.totalorder %s440, %s441
    %p453 = scmp.eq.s32.totalorder %s32, 1
    %p454 = por %p452, %p453
    %p456 = scmp.ne.s32.totalorder %s441, %s455
    %p457 = scmp.eq.s32.totalorder %s32, 0
    %p458 = por %p456, %p457
    %s459 = ssub.s32 %s26, %s33
    %p460 = scmp.eq.s32.totalorder %s459, 0
    %s462 = sadd.s32 %s461, 1
    %s463 = scalar_select %p460, %s461, %s462
    %p466 = pneg %p460
    %p467 = scmp.eq.s32.totalorder %s26, 1
    %p468 = por %p466, %p467
    %p469 = scmp.ne.s32.totalorder %s461, %s464
    %p470 = scmp.eq.s32.totalorder %s26, 0
    %p471 = por %p469, %p470
    %p472 = scmp.ne.s32.totalorder %s461, %s464
    %p473 = scmp.eq.s32.totalorder %s31, 1
    %p474 = por %p472, %p473
    %p475 = scmp.ne.s32.totalorder %s464, %s465
    %p476 = scmp.eq.s32.totalorder %s31, 0
    %p477 = por %p475, %p476
    %p478 = scmp.ne.s32.totalorder %s464, %s465
    %p479 = scmp.eq.s32.totalorder %s32, 1
    %p480 = por %p478, %p479
    %p482 = scmp.ne.s32.totalorder %s465, %s481
    %p483 = scmp.eq.s32.totalorder %s32, 0
    %p484 = por %p482, %p483
    %p485 = scmp.le.s32.totalorder 1, %s26
    %p486 = scmp.lt.s32.totalorder %s26, 3
    %p487 = pnand %p485, %p486
    %p488 = pneg %p487
    // Predicated region
    $region9: #{prompt_sat_forward.1} parent=5 // pred_check
      _
    $region10: #{prompt_sat_forward.1} parent=5 // pred_check_branch
      %490 = sbr.rel (%p487) target = $region12
    $region11: #{prompt_sat_forward.1} parent=5 // pred_region
      %s491 = ssub.s32 %s26, 1
      // Predicated region
      $region13: #{prompt_sat_forward.1} parent=11 // pred_check
        %p492 = pneg %p73
      $region14: #{prompt_sat_forward.1} parent=11 // pred_check_branch
        %494 = sbr.rel (%p492) target = $region16
      $region15: #{prompt_sat_forward.1} parent=11 // pred_region
        _
      $region16: #{prompt_sat_forward.1} parent=11 // pred_fallthru
        _
      // Predicated region
      $region17: #{prompt_sat_forward.1} parent=11 // pred_check
        %p495 = pneg %p94
      $region18: #{prompt_sat_forward.1} parent=11 // pred_check_branch
        %497 = sbr.rel (%p495) target = $region20
      $region19: #{prompt_sat_forward.1} parent=11 // pred_region
        _
      $region20: #{prompt_sat_forward.1} parent=11 // pred_fallthru
        _
      // Predicated region
      $region21: #{prompt_sat_forward.1} parent=11 // pred_check
        %p498 = pneg %p115
      $region22: #{prompt_sat_forward.1} parent=11 // pred_check_branch
        %500 = sbr.rel (%p498) target = $region24
      $region23: #{prompt_sat_forward.1} parent=11 // pred_region
        _
      $region24: #{prompt_sat_forward.1} parent=11 // pred_fallthru
        _
      // Predicated region
      $region25: #{prompt_sat_forward.1} parent=11 // pred_check
        %p501 = pneg %p136
      $region26: #{prompt_sat_forward.1} parent=11 // pred_check_branch
        %503 = sbr.rel (%p501) target = $region28
      $region27: #{prompt_sat_forward.1} parent=11 // pred_region
        _
      $region28: #{prompt_sat_forward.1} parent=11 // pred_fallthru
        _
      // Predicated region
      $region29: #{prompt_sat_forward.1} parent=11 // pred_check
        %p504 = pneg %p157
      $region30: #{prompt_sat_forward.1} parent=11 // pred_check_branch
        %506 = sbr.rel (%p504) target = $region32
      $region31: #{prompt_sat_forward.1} parent=11 // pred_region
        _
      $region32: #{prompt_sat_forward.1} parent=11 // pred_fallthru
        _
      // Predicated region
      $region33: #{prompt_sat_forward.1} parent=11 // pred_check
        %p507 = pneg %p178
      $region34: #{prompt_sat_forward.1} parent=11 // pred_check_branch
        %509 = sbr.rel (%p507) target = $region36
      $region35: #{prompt_sat_forward.1} parent=11 // pred_region
        _
      $region36: #{prompt_sat_forward.1} parent=11 // pred_fallthru
        _
      // Predicated region
      $region37: #{prompt_sat_forward.1} parent=11 // pred_check
        %p510 = pneg %p199
      $region38: #{prompt_sat_forward.1} parent=11 // pred_check_branch
        %512 = sbr.rel (%p510) target = $region40
      $region39: #{prompt_sat_forward.1} parent=11 // pred_region
        _
      $region40: #{prompt_sat_forward.1} parent=11 // pred_fallthru
        _
      // Predicated region
      $region41: #{prompt_sat_forward.1} parent=11 // pred_check
        %p513 = pneg %p220
      $region42: #{prompt_sat_forward.1} parent=11 // pred_check_branch
        %515 = sbr.rel (%p513) target = $region44
      $region43: #{prompt_sat_forward.1} parent=11 // pred_region
        _
      $region44: #{prompt_sat_forward.1} parent=11 // pred_fallthru
        _
      // Predicated region
      $region45: #{prompt_sat_forward.1} parent=11 // pred_check
        %p516 = pneg %p241
      $region46: #{prompt_sat_forward.1} parent=11 // pred_check_branch
        %518 = sbr.rel (%p516) target = $region48
      $region47: #{prompt_sat_forward.1} parent=11 // pred_region
        _
      $region48: #{prompt_sat_forward.1} parent=11 // pred_fallthru
        _
      // Predicated region
      $region49: #{prompt_sat_forward.1} parent=11 // pred_check
        %p519 = pneg %p262
      $region50: #{prompt_sat_forward.1} parent=11 // pred_check_branch
        %521 = sbr.rel (%p519) target = $region52
      $region51: #{prompt_sat_forward.1} parent=11 // pred_region
        _
      $region52: #{prompt_sat_forward.1} parent=11 // pred_fallthru
        _
      // Predicated region
      $region53: #{prompt_sat_forward.1} parent=11 // pred_check
        %p522 = pneg %p283
      $region54: #{prompt_sat_forward.1} parent=11 // pred_check_branch
        %524 = sbr.rel (%p522) target = $region56
      $region55: #{prompt_sat_forward.1} parent=11 // pred_region
        _
      $region56: #{prompt_sat_forward.1} parent=11 // pred_fallthru
        _
      // Predicated region
      $region57: #{prompt_sat_forward.1} parent=11 // pred_check
        %p525 = pneg %p304
      $region58: #{prompt_sat_forward.1} parent=11 // pred_check_branch
        %527 = sbr.rel (%p525) target = $region60
      $region59: #{prompt_sat_forward.1} parent=11 // pred_region
        _
      $region60: #{prompt_sat_forward.1} parent=11 // pred_fallthru
        _
      // Predicated region
      $region61: #{prompt_sat_forward.1} parent=11 // pred_check
        %p528 = pneg %p325
      $region62: #{prompt_sat_forward.1} parent=11 // pred_check_branch
        %530 = sbr.rel (%p528) target = $region64
      $region63: #{prompt_sat_forward.1} parent=11 // pred_region
        _
      $region64: #{prompt_sat_forward.1} parent=11 // pred_fallthru
        _
      // Predicated region
      $region65: #{prompt_sat_forward.1} parent=11 // pred_check
        %p531 = pneg %p346
      $region66: #{prompt_sat_forward.1} parent=11 // pred_check_branch
        %533 = sbr.rel (%p531) target = $region68
      $region67: #{prompt_sat_forward.1} parent=11 // pred_region
        _
      $region68: #{prompt_sat_forward.1} parent=11 // pred_fallthru
        _
      // Predicated region
      $region69: #{prompt_sat_forward.1} parent=11 // pred_check
        %p534 = pneg %p367
      $region70: #{prompt_sat_forward.1} parent=11 // pred_check_branch
        %536 = sbr.rel (%p534) target = $region72
      $region71: #{prompt_sat_forward.1} parent=11 // pred_region
        _
      $region72: #{prompt_sat_forward.1} parent=11 // pred_fallthru
        _
      // Predicated region
      $region73: #{prompt_sat_forward.1} parent=11 // pred_check
        %p537 = pneg %p388
      $region74: #{prompt_sat_forward.1} parent=11 // pred_check_branch
        %539 = sbr.rel (%p537) target = $region76
      $region75: #{prompt_sat_forward.1} parent=11 // pred_region
        _
      $region76: #{prompt_sat_forward.1} parent=11 // pred_fallthru
        _
      // Predicated region
      $region77: #{prompt_sat_forward.1} parent=11 // pred_check
        %p540 = pneg %p409
      $region78: #{prompt_sat_forward.1} parent=11 // pred_check_branch
        %542 = sbr.rel (%p540) target = $region80
      $region79: #{prompt_sat_forward.1} parent=11 // pred_region
        _
      $region80: #{prompt_sat_forward.1} parent=11 // pred_fallthru
        _
      // Predicated region
      $region81: #{prompt_sat_forward.1} parent=11 // pred_check
        %p543 = pneg %p430
      $region82: #{prompt_sat_forward.1} parent=11 // pred_check_branch
        %545 = sbr.rel (%p543) target = $region84
      $region83: #{prompt_sat_forward.1} parent=11 // pred_region
        _
      $region84: #{prompt_sat_forward.1} parent=11 // pred_fallthru
        _
      // Predicated region
      $region85: #{prompt_sat_forward.1} parent=11 // pred_check
        %p546 = pneg %p451
      $region86: #{prompt_sat_forward.1} parent=11 // pred_check_branch
        %548 = sbr.rel (%p546) target = $region88
      $region87: #{prompt_sat_forward.1} parent=11 // pred_region
        _
      $region88: #{prompt_sat_forward.1} parent=11 // pred_fallthru
        _
    $region12: #{prompt_sat_forward.1} parent=5 // pred_fallthru
      _
    %p549 = scmp.lt.s32.totalorder %s26, 2
    // Predicated region
    $region89: #{prompt_sat_forward.1} parent=5 // pred_check
      %p550 = pneg %p549
    $region90: #{prompt_sat_forward.1} parent=5 // pred_check_branch
      %552 = sbr.rel (%p550) target = $region92
    $region91: #{prompt_sat_forward.1} parent=5 // pred_region
      // Predicated region
      $region93: #{prompt_sat_forward.1} parent=91 // pred_check
        %p553 = pneg %p46
      $region94: #{prompt_sat_forward.1} parent=91 // pred_check_branch
        %555 = sbr.rel (%p553) target = $region96
      $region95: #{prompt_sat_forward.1} parent=91 // pred_region
        %p556 = scmp.lt.s32.totalorder %s26, 1
        %s557 = scalar_select %p556, %s26, 1
        %s558 = smul.addr %s557, 8
        %s559 = scalar_lea.vmem %s0, %s558
      $region96: #{prompt_sat_forward.1} parent=91 // pred_fallthru
        _
    $region92: #{prompt_sat_forward.1} parent=5 // pred_fallthru
      _
    %p560 = scmp.le.s32.totalorder 1, %s26
    %p561 = scmp.lt.s32.totalorder %s26, 3
    %p562 = pnand %p560, %p561
    %p563 = pneg %p562
    // Predicated region
    $region97: #{prompt_sat_forward.1} parent=5 // pred_check
      _
    $region98: #{prompt_sat_forward.1} parent=5 // pred_check_branch
      %565 = sbr.rel (%p562) target = $region100
    $region99: #{prompt_sat_forward.1} parent=5 // pred_region
      %s566 = ssub.s32 %s26, 1
      %p567 = scmp.lt.s32.totalorder %s31, 1
      %s568 = scalar_select %p567, %s31, 1
      %s569 = smul.addr %s568, 8
      %s570 = scalar_lea.vmem %s0, %s569
      %p571 = pneg %p52
      %p572 = pneg %p49
      %p573 = pneg %p73
      %p574 = pneg %p70
      %p575 = pneg %p94
      %p576 = pneg %p91
      %p577 = pneg %p115
      %p578 = pneg %p112
      %p579 = pneg %p136
      %p580 = pneg %p133
      %p581 = pneg %p157
      %p582 = pneg %p154
      %p583 = pneg %p178
      %p584 = pneg %p175
      %p585 = pneg %p199
      %p586 = pneg %p196
      %p587 = pneg %p220
      %p588 = pneg %p217
      %p589 = pneg %p241
      %p590 = pneg %p238
      %p591 = pneg %p262
      %p592 = pneg %p259
      %p593 = pneg %p283
      %p594 = pneg %p280
      %p595 = pneg %p304
      %p596 = pneg %p301
      %p597 = pneg %p325
      %p598 = pneg %p322
      %p599 = pneg %p346
      %p600 = pneg %p343
      %p601 = pneg %p367
      %p602 = pneg %p364
      %p603 = pneg %p388
      %p604 = pneg %p385
      %p605 = pneg %p409
      %p606 = pneg %p406
      %p607 = pneg %p430
      %p608 = pneg %p427
      %p609 = pneg %p451
      %p610 = pneg %p448
      %p611 = pneg %p477
      %p612 = pneg %p474
      %p613 = scmp.lt.s32.totalorder %s31, 1
      %s614 = scalar_select %p613, %s31, 1
      %s615 = smul.addr %s614, 2
      %s616 = scalar_lea.vmem %s20, %s615
      %p617 = scmp.lt.s32.totalorder %s31, 1
      %s618 = scalar_select %p617, %s31, 1
      %s619 = smul.addr %s618, 8
      %s620 = scalar_lea.vmem %s0, %s619
      %p621 = scmp.lt.s32.totalorder %s31, 1
      %s622 = scalar_select %p621, %s31, 1
      %s623 = smul.addr %s622, 2
      %s624 = scalar_lea.vmem %s20, %s623
      %v626 = vld [vmem:[%s620] sm:$0xff]
      %v627 = vld [vmem:[%s1] sm:$0xff]
      %v628 = vld [vmem:[%s1 + $0x8] sm:$0xff]
      %v629 = vld [vmem:[%s1 + $0x10] sm:$0xff]
      %v630 = vld [vmem:[%s1 + $0x18] sm:$0xff]
      %v631 = vld [vmem:[%s1 + $0x20] sm:$0xff]
      %v632 = vld [vmem:[%s1 + $0x28] sm:$0xff]
      %v633 = vld [vmem:[%s1 + $0x30] sm:$0xff]
      %v634 = vld [vmem:[%s1 + $0x38] sm:$0xff]
      %v635 = vld [vmem:[%s1 + $0x40] sm:$0xff]
      %v636 = vld [vmem:[%s1 + $0x48] sm:$0xff]
      %v637 = vld [vmem:[%s1 + $0x50] sm:$0xff]
      %v638 = vld [vmem:[%s1 + $0x58] sm:$0xff]
      %v639 = vld [vmem:[%s1 + $0x60] sm:$0xff]
      %v640 = vld [vmem:[%s1 + $0x68] sm:$0xff]
      %v641 = vld [vmem:[%s1 + $0x70] sm:$0xff]
      %v642 = vld [vmem:[%s1 + $0x78] sm:$0xff]
      %v643 = vld [vmem:[%s2] sm:$0xff]
      %v644 = vld [vmem:[%s2 + $0x8] sm:$0xff]
      %v645 = vld [vmem:[%s2 + $0x10] sm:$0xff]
      %v646 = vld [vmem:[%s2 + $0x18] sm:$0xff]
      %v647 = vld [vmem:[%s2 + $0x20] sm:$0xff]
      %v648 = vld [vmem:[%s2 + $0x28] sm:$0xff]
      %v649 = vld [vmem:[%s2 + $0x30] sm:$0xff]
      %v650 = vld [vmem:[%s2 + $0x38] sm:$0xff]
      %v651 = vld [vmem:[%s2 + $0x40] sm:$0xff]
      %v652 = vld [vmem:[%s2 + $0x48] sm:$0xff]
      %v653 = vld [vmem:[%s2 + $0x50] sm:$0xff]
      %v654 = vld [vmem:[%s2 + $0x58] sm:$0xff]
      %v655 = vld [vmem:[%s2 + $0x60] sm:$0xff]
      %v656 = vld [vmem:[%s2 + $0x68] sm:$0xff]
      %v657 = vld [vmem:[%s2 + $0x70] sm:$0xff]
      %v658 = vld [vmem:[%s2 + $0x78] sm:$0xff]
      %v659 = vld [vmem:[%s3] sm:$0xff]
      %v660 = vld [vmem:[%s3 + $0x8] sm:$0xff]
      %v661 = vld [vmem:[%s3 + $0x10] sm:$0xff]
      %v662 = vld [vmem:[%s3 + $0x18] sm:$0xff]
      %v663 = vld [vmem:[%s3 + $0x20] sm:$0xff]
      %v664 = vld [vmem:[%s3 + $0x28] sm:$0xff]
      %v665 = vld [vmem:[%s3 + $0x30] sm:$0xff]
      %v666 = vld [vmem:[%s3 + $0x38] sm:$0xff]
      %v667 = vld [vmem:[%s3 + $0x40] sm:$0xff]
      %v668 = vld [vmem:[%s3 + $0x48] sm:$0xff]
      %v669 = vld [vmem:[%s3 + $0x50] sm:$0xff]
      %v670 = vld [vmem:[%s3 + $0x58] sm:$0xff]
      %v671 = vld [vmem:[%s3 + $0x60] sm:$0xff]
      %v672 = vld [vmem:[%s3 + $0x68] sm:$0xff]
      %v673 = vld [vmem:[%s3 + $0x70] sm:$0xff]
      %v674 = vld [vmem:[%s3 + $0x78] sm:$0xff]
      %v675 = vld [vmem:[%s7] sm:$0xff]
      %v676 = vld [vmem:[%s7 + $0x8] sm:$0xff]
      %v677 = vld [vmem:[%s7 + $0x10] sm:$0xff]
      %v678 = vld [vmem:[%s7 + $0x18] sm:$0xff]
      %v679 = vld [vmem:[%s4] sm:$0x1]
      %v680 = vld [vmem:[%s4 + $0x1] sm:$0x1]
      %v681 = vld [vmem:[%s4 + $0x2] sm:$0x1]
      %v682 = vld [vmem:[%s4 + $0x3] sm:$0x1]
      %v683 = vld [vmem:[%s5] sm:$0x1]
      %v684 = vld [vmem:[%s5 + $0x1] sm:$0x1]
      %v685 = vld [vmem:[%s5 + $0x2] sm:$0x1]
      %v686 = vld [vmem:[%s5 + $0x3] sm:$0x1]
      %v687 = vld [vmem:[%s6] sm:$0x1]
      %v688 = vld [vmem:[%s6 + $0x1] sm:$0x1]
      %v689 = vld [vmem:[%s6 + $0x2] sm:$0x1]
      %v690 = vld [vmem:[%s6 + $0x3] sm:$0x1]
      %v695 = vlaneseq
      %v696 = vshrl.u32 %v695, 7
      %v697 = vsub.s32 0, %v696
      %v698 = vrot.slane %v679, %v697
      %v699 = vlaneseq
      %v700 = vshrl.u32 %v699, 7
      %v701 = vsub.s32 0, %v700
      %v702 = vrot.slane %v680, %v701
      %v703 = vlaneseq
      %v704 = vshrl.u32 %v703, 7
      %v705 = vsub.s32 0, %v704
      %v706 = vrot.slane %v681, %v705
      %v707 = vlaneseq
      %v708 = vshrl.u32 %v707, 7
      %v709 = vsub.s32 0, %v708
      %v710 = vrot.slane %v682, %v709
      %vm715 = vcmask 261120
      %v717 = vsel %vm715, %v626, 0
      %719 = vmatprep.subr.mxu0 0.0
      %720 = vmatpush1.msra.mxu0 %v627
      %721 = vmatprep.subr.mxu0 0.0
      %722 = vmatpush1.msra.mxu0 %v628
      %723 = vmatprep.subr.mxu0 0.0
      %724 = vmatpush1.msra.mxu0 %v629
      %725 = vmatprep.subr.mxu0 0.0
      %726 = vmatpush1.msra.mxu0 %v630
      %727 = vmatprep.subr.mxu0 0.0
      %728 = vmatpush1.msra.mxu0 0.0
      %729 = vmatprep.subr.mxu0 0.0
      %730 = vmatpush1.msra.mxu0 0.0
      %731 = vmatprep.subr.mxu0 0.0
      %732 = vmatpush1.msra.mxu0 0.0
      %733 = vmatprep.subr.mxu0 0.0
      %734 = vmatpush1.msra.mxu0 0.0
      %735 = vmatprep.subr.mxu0 0.0
      %736 = vmatpush1.msra.mxu0 0.0
      %737 = vmatprep.subr.mxu0 0.0
      %738 = vmatpush1.msra.mxu0 0.0
      %739 = vmatprep.subr.mxu0 0.0
      %740 = vmatpush1.msra.mxu0 0.0
      %741 = vmatprep.subr.mxu0 0.0
      %742 = vmatpush1.msra.mxu0 0.0
      %743 = vmatprep.subr.mxu0 0.0
      %744 = vmatpush1.msra.mxu0 0.0
      %745 = vmatprep.subr.mxu0 0.0
      %746 = vmatpush1.msra.mxu0 0.0
      %747 = vmatprep.subr.mxu0 0.0
      %748 = vmatpush1.msra.mxu0 0.0
      %749 = vmatprep.subr.mxu0 0.0
      %750 = vmatpush1.msra.mxu0 0.0
      %751 = vmatprep.subr.mxu0 0.0
      %752 = vmatpush1.msra.mxu0 0.0
      %753 = vmatprep.subr.mxu0 0.0
      %754 = vmatpush1.msra.mxu0 0.0
      %755 = vmatprep.subr.mxu0 0.0
      %756 = vmatpush1.msra.mxu0 0.0
      %757 = vmatprep.subr.mxu0 0.0
      %758 = vmatpush1.msra.mxu0 0.0
      %759 = vmatprep.subr.mxu0 0.0
      %760 = vmatpush1.msra.mxu0 0.0
      %761 = vmatprep.subr.mxu0 0.0
      %762 = vmatpush1.msra.mxu0 0.0
      %763 = vmatprep.subr.mxu0 0.0
      %764 = vmatpush1.msra.mxu0 0.0
      %765 = vmatprep.subr.mxu0 0.0
      %766 = vmatpush1.msra.mxu0 0.0
      %767 = vmatprep.subr.mxu0 0.0
      %768 = vmatpush1.msra.mxu0 0.0
      %769 = vmatprep.subr.mxu0 0.0
      %770 = vmatpush1.msra.mxu0 0.0
      %771 = vmatprep.subr.mxu0 0.0
      %772 = vmatpush1.msra.mxu0 0.0
      %773 = vmatprep.subr.mxu0 0.0
      %774 = vmatpush1.msra.mxu0 0.0
      %775 = vmatprep.subr.mxu0 0.0
      %776 = vmatpush1.msra.mxu0 0.0
      %777 = vmatprep.subr.mxu0 0.0
      %778 = vmatpush1.msra.mxu0 0.0
      %779 = vmatprep.subr.mxu0 0.0
      %780 = vmatpush1.msra.mxu0 0.0
      %781 = vmatprep.subr.mxu0 0.0
      %782 = vmatpush1.msra.mxu0 0.0
      %783 = vmatprep.mubr.f32.mxu0 0.0
      %784 = vmatmul.mubr.f32.gmra.mrb[0].mxu0 %v717
      %v785 = vpop.f32.mrb[0].mxu0
      %v786 = vadd.f32 %v698, %v785
      %v787 = vpop.f32.mrb[0].mxu0
      %788 = vdwg.mxu0
      %789 = vmatprep.subr.mxu0 0.0
      %790 = vmatpush1.msra.mxu0 %v631
      %791 = vmatprep.subr.mxu0 0.0
      %792 = vmatpush1.msra.mxu0 %v632
      %793 = vmatprep.subr.mxu0 0.0
      %794 = vmatpush1.msra.mxu0 %v633
      %795 = vmatprep.subr.mxu0 0.0
      %796 = vmatpush1.msra.mxu0 %v634
      %797 = vmatprep.subr.mxu0 0.0
      %798 = vmatpush1.msra.mxu0 0.0
      %799 = vmatprep.subr.mxu0 0.0
      %800 = vmatpush1.msra.mxu0 0.0
      %801 = vmatprep.subr.mxu0 0.0
      %802 = vmatpush1.msra.mxu0 0.0
      %803 = vmatprep.subr.mxu0 0.0
      %804 = vmatpush1.msra.mxu0 0.0
      %805 = vmatprep.subr.mxu0 0.0
      %806 = vmatpush1.msra.mxu0 0.0
      %807 = vmatprep.subr.mxu0 0.0
      %808 = vmatpush1.msra.mxu0 0.0
      %809 = vmatprep.subr.mxu0 0.0
      %810 = vmatpush1.msra.mxu0 0.0
      %811 = vmatprep.subr.mxu0 0.0
      %812 = vmatpush1.msra.mxu0 0.0
      %813 = vmatprep.subr.mxu0 0.0
      %814 = vmatpush1.msra.mxu0 0.0
      %815 = vmatprep.subr.mxu0 0.0
      %816 = vmatpush1.msra.mxu0 0.0
      %817 = vmatprep.subr.mxu0 0.0
      %818 = vmatpush1.msra.mxu0 0.0
      %819 = vmatprep.subr.mxu0 0.0
      %820 = vmatpush1.msra.mxu0 0.0
      %821 = vmatprep.subr.mxu0 0.0
      %822 = vmatpush1.msra.mxu0 0.0
      %823 = vmatprep.subr.mxu0 0.0
      %824 = vmatpush1.msra.mxu0 0.0
      %825 = vmatprep.subr.mxu0 0.0
      %826 = vmatpush1.msra.mxu0 0.0
      %827 = vmatprep.subr.mxu0 0.0
      %828 = vmatpush1.msra.mxu0 0.0
      %829 = vmatprep.subr.mxu0 0.0
      %830 = vmatpush1.msra.mxu0 0.0
      %831 = vmatprep.subr.mxu0 0.0
      %832 = vmatpush1.msra.mxu0 0.0
      %833 = vmatprep.subr.mxu0 0.0
      %834 = vmatpush1.msra.mxu0 0.0
      %835 = vmatprep.subr.mxu0 0.0
      %836 = vmatpush1.msra.mxu0 0.0
      %837 = vmatprep.subr.mxu0 0.0
      %838 = vmatpush1.msra.mxu0 0.0
      %839 = vmatprep.subr.mxu0 0.0
      %840 = vmatpush1.msra.mxu0 0.0
      %841 = vmatprep.subr.mxu0 0.0
      %842 = vmatpush1.msra.mxu0 0.0
      %843 = vmatprep.subr.mxu0 0.0
      %844 = vmatpush1.msra.mxu0 0.0
      %845 = vmatprep.subr.mxu0 0.0
      %846 = vmatpush1.msra.mxu0 0.0
      %847 = vmatprep.subr.mxu0 0.0
      %848 = vmatpush1.msra.mxu0 0.0
      %849 = vmatprep.subr.mxu0 0.0
      %850 = vmatpush1.msra.mxu0 0.0
      %851 = vmatprep.subr.mxu0 0.0
      %852 = vmatpush1.msra.mxu0 0.0
      %853 = vmatprep.mubr.f32.mxu0 0.0
      %854 = vmatmul.mubr.f32.gmra.mrb[0].mxu0 %v717
      %v855 = vpop.f32.mrb[0].mxu0
      %v856 = vadd.f32 %v702, %v855
      %v857 = vpop.f32.mrb[0].mxu0
      %858 = vdwg.mxu0
      %859 = vmatprep.subr.mxu0 0.0
      %860 = vmatpush1.msra.mxu0 %v635
      %861 = vmatprep.subr.mxu0 0.0
      %862 = vmatpush1.msra.mxu0 %v636
      %863 = vmatprep.subr.mxu0 0.0
      %864 = vmatpush1.msra.mxu0 %v637
      %865 = vmatprep.subr.mxu0 0.0
      %866 = vmatpush1.msra.mxu0 %v638
      %867 = vmatprep.subr.mxu0 0.0
      %868 = vmatpush1.msra.mxu0 0.0
      %869 = vmatprep.subr.mxu0 0.0
      %870 = vmatpush1.msra.mxu0 0.0
      %871 = vmatprep.subr.mxu0 0.0
      %872 = vmatpush1.msra.mxu0 0.0
      %873 = vmatprep.subr.mxu0 0.0
      %874 = vmatpush1.msra.mxu0 0.0
      %875 = vmatprep.subr.mxu0 0.0
      %876 = vmatpush1.msra.mxu0 0.0
      %877 = vmatprep.subr.mxu0 0.0
      %878 = vmatpush1.msra.mxu0 0.0
      %879 = vmatprep.subr.mxu0 0.0
      %880 = vmatpush1.msra.mxu0 0.0
      %881 = vmatprep.subr.mxu0 0.0
      %882 = vmatpush1.msra.mxu0 0.0
      %883 = vmatprep.subr.mxu0 0.0
      %884 = vmatpush1.msra.mxu0 0.0
      %885 = vmatprep.subr.mxu0 0.0
      %886 = vmatpush1.msra.mxu0 0.0
      %887 = vmatprep.subr.mxu0 0.0
      %888 = vmatpush1.msra.mxu0 0.0
      %889 = vmatprep.subr.mxu0 0.0
      %890 = vmatpush1.msra.mxu0 0.0
      %891 = vmatprep.subr.mxu0 0.0
      %892 = vmatpush1.msra.mxu0 0.0
      %893 = vmatprep.subr.mxu0 0.0
      %894 = vmatpush1.msra.mxu0 0.0
      %895 = vmatprep.subr.mxu0 0.0
      %896 = vmatpush1.msra.mxu0 0.0
      %897 = vmatprep.subr.mxu0 0.0
      %898 = vmatpush1.msra.mxu0 0.0
      %899 = vmatprep.subr.mxu0 0.0
      %900 = vmatpush1.msra.mxu0 0.0
      %901 = vmatprep.subr.mxu0 0.0
      %902 = vmatpush1.msra.mxu0 0.0
      %903 = vmatprep.subr.mxu0 0.0
      %904 = vmatpush1.msra.mxu0 0.0
      %905 = vmatprep.subr.mxu0 0.0
      %906 = vmatpush1.msra.mxu0 0.0
      %907 = vmatprep.subr.mxu0 0.0
      %908 = vmatpush1.msra.mxu0 0.0
      %909 = vmatprep.subr.mxu0 0.0
      %910 = vmatpush1.msra.mxu0 0.0
      %911 = vmatprep.subr.mxu0 0.0
      %912 = vmatpush1.msra.mxu0 0.0
      %913 = vmatprep.subr.mxu0 0.0
      %914 = vmatpush1.msra.mxu0 0.0
      %915 = vmatprep.subr.mxu0 0.0
      %916 = vmatpush1.msra.mxu0 0.0
      %917 = vmatprep.subr.mxu0 0.0
      %918 = vmatpush1.msra.mxu0 0.0
      %919 = vmatprep.subr.mxu0 0.0
      %920 = vmatpush1.msra.mxu0 0.0
      %921 = vmatprep.subr.mxu0 0.0
      %922 = vmatpush1.msra.mxu0 0.0
      %923 = vmatprep.mubr.f32.mxu0 0.0
      %924 = vmatmul.mubr.f32.gmra.mrb[0].mxu0 %v717
      %v925 = vpop.f32.mrb[0].mxu0
      %v926 = vadd.f32 %v706, %v925
      %v927 = vpop.f32.mrb[0].mxu0
      %928 = vdwg.mxu0
      %929 = vmatprep.subr.mxu0 0.0
      %930 = vmatpush1.msra.mxu0 %v639
      %931 = vmatprep.subr.mxu0 0.0
      %932 = vmatpush1.msra.mxu0 %v640
      %933 = vmatprep.subr.mxu0 0.0
      %934 = vmatpush1.msra.mxu0 %v641
      %935 = vmatprep.subr.mxu0 0.0
      %936 = vmatpush1.msra.mxu0 %v642
      %937 = vmatprep.subr.mxu0 0.0
      %938 = vmatpush1.msra.mxu0 0.0
      %939 = vmatprep.subr.mxu0 0.0
      %940 = vmatpush1.msra.mxu0 0.0
      %941 = vmatprep.subr.mxu0 0.0
      %942 = vmatpush1.msra.mxu0 0.0
      %943 = vmatprep.subr.mxu0 0.0
      %944 = vmatpush1.msra.mxu0 0.0
      %945 = vmatprep.subr.mxu0 0.0
      %946 = vmatpush1.msra.mxu0 0.0
      %947 = vmatprep.subr.mxu0 0.0
      %948 = vmatpush1.msra.mxu0 0.0
      %949 = vmatprep.subr.mxu0 0.0
      %950 = vmatpush1.msra.mxu0 0.0
      %951 = vmatprep.subr.mxu0 0.0
      %952 = vmatpush1.msra.mxu0 0.0
      %953 = vmatprep.subr.mxu0 0.0
      %954 = vmatpush1.msra.mxu0 0.0
      %955 = vmatprep.subr.mxu0 0.0
      %956 = vmatpush1.msra.mxu0 0.0
      %957 = vmatprep.subr.mxu0 0.0
      %958 = vmatpush1.msra.mxu0 0.0
      %959 = vmatprep.subr.mxu0 0.0
      %960 = vmatpush1.msra.mxu0 0.0
      %961 = vmatprep.subr.mxu0 0.0
      %962 = vmatpush1.msra.mxu0 0.0
      %963 = vmatprep.subr.mxu0 0.0
      %964 = vmatpush1.msra.mxu0 0.0
      %965 = vmatprep.subr.mxu0 0.0
      %966 = vmatpush1.msra.mxu0 0.0
      %967 = vmatprep.subr.mxu0 0.0
      %968 = vmatpush1.msra.mxu0 0.0
      %969 = vmatprep.subr.mxu0 0.0
      %970 = vmatpush1.msra.mxu0 0.0
      %971 = vmatprep.subr.mxu0 0.0
      %972 = vmatpush1.msra.mxu0 0.0
      %973 = vmatprep.subr.mxu0 0.0
      %974 = vmatpush1.msra.mxu0 0.0
      %975 = vmatprep.subr.mxu0 0.0
      %976 = vmatpush1.msra.mxu0 0.0
      %977 = vmatprep.subr.mxu0 0.0
      %978 = vmatpush1.msra.mxu0 0.0
      %979 = vmatprep.subr.mxu0 0.0
      %980 = vmatpush1.msra.mxu0 0.0
      %981 = vmatprep.subr.mxu0 0.0
      %982 = vmatpush1.msra.mxu0 0.0
      %983 = vmatprep.subr.mxu0 0.0
      %984 = vmatpush1.msra.mxu0 0.0
      %985 = vmatprep.subr.mxu0 0.0
      %986 = vmatpush1.msra.mxu0 0.0
      %987 = vmatprep.subr.mxu0 0.0
      %988 = vmatpush1.msra.mxu0 0.0
      %989 = vmatprep.subr.mxu0 0.0
      %990 = vmatpush1.msra.mxu0 0.0
      %991 = vmatprep.subr.mxu0 0.0
      %992 = vmatpush1.msra.mxu0 0.0
      %993 = vmatprep.mubr.f32.mxu0 0.0
      %994 = vmatmul.mubr.f32.gmra.mrb[0].mxu0 %v717
      %v995 = vpop.f32.mrb[0].mxu0
      %v996 = vadd.f32 %v710, %v995
      %v997 = vpop.f32.mrb[0].mxu0
      %998 = vdwg.mxu0
      %v1003 = vlaneseq
      %v1004 = vshrl.u32 %v1003, 7
      %v1005 = vsub.s32 0, %v1004
      %v1006 = vrot.slane %v683, %v1005
      %v1007 = vlaneseq
      %v1008 = vshrl.u32 %v1007, 7
      %v1009 = vsub.s32 0, %v1008
      %v1010 = vrot.slane %v684, %v1009
      %v1011 = vlaneseq
      %v1012 = vshrl.u32 %v1011, 7
      %v1013 = vsub.s32 0, %v1012
      %v1014 = vrot.slane %v685, %v1013
      %v1015 = vlaneseq
      %v1016 = vshrl.u32 %v1015, 7
      %v1017 = vsub.s32 0, %v1016
      %v1018 = vrot.slane %v686, %v1017
      %1023 = vmatprep.subr.mxu0 0.0
      %1024 = vmatpush1.msra.mxu0 %v643
      %1025 = vmatprep.subr.mxu0 0.0
      %1026 = vmatpush1.msra.mxu0 %v644
      %1027 = vmatprep.subr.mxu0 0.0
      %1028 = vmatpush1.msra.mxu0 %v645
      %1029 = vmatprep.subr.mxu0 0.0
      %1030 = vmatpush1.msra.mxu0 %v646
      %1031 = vmatprep.subr.mxu0 0.0
      %1032 = vmatpush1.msra.mxu0 0.0
      %1033 = vmatprep.subr.mxu0 0.0
      %1034 = vmatpush1.msra.mxu0 0.0
      %1035 = vmatprep.subr.mxu0 0.0
      %1036 = vmatpush1.msra.mxu0 0.0
      %1037 = vmatprep.subr.mxu0 0.0
      %1038 = vmatpush1.msra.mxu0 0.0
      %1039 = vmatprep.subr.mxu0 0.0
      %1040 = vmatpush1.msra.mxu0 0.0
      %1041 = vmatprep.subr.mxu0 0.0
      %1042 = vmatpush1.msra.mxu0 0.0
      %1043 = vmatprep.subr.mxu0 0.0
      %1044 = vmatpush1.msra.mxu0 0.0
      %1045 = vmatprep.subr.mxu0 0.0
      %1046 = vmatpush1.msra.mxu0 0.0
      %1047 = vmatprep.subr.mxu0 0.0
      %1048 = vmatpush1.msra.mxu0 0.0
      %1049 = vmatprep.subr.mxu0 0.0
      %1050 = vmatpush1.msra.mxu0 0.0
      %1051 = vmatprep.subr.mxu0 0.0
      %1052 = vmatpush1.msra.mxu0 0.0
      %1053 = vmatprep.subr.mxu0 0.0
      %1054 = vmatpush1.msra.mxu0 0.0
      %1055 = vmatprep.subr.mxu0 0.0
      %1056 = vmatpush1.msra.mxu0 0.0
      %1057 = vmatprep.subr.mxu0 0.0
      %1058 = vmatpush1.msra.mxu0 0.0
      %1059 = vmatprep.subr.mxu0 0.0
      %1060 = vmatpush1.msra.mxu0 0.0
      %1061 = vmatprep.subr.mxu0 0.0
      %1062 = vmatpush1.msra.mxu0 0.0
      %1063 = vmatprep.subr.mxu0 0.0
      %1064 = vmatpush1.msra.mxu0 0.0
      %1065 = vmatprep.subr.mxu0 0.0
      %1066 = vmatpush1.msra.mxu0 0.0
      %1067 = vmatprep.subr.mxu0 0.0
      %1068 = vmatpush1.msra.mxu0 0.0
      %1069 = vmatprep.subr.mxu0 0.0
      %1070 = vmatpush1.msra.mxu0 0.0
      %1071 = vmatprep.subr.mxu0 0.0
      %1072 = vmatpush1.msra.mxu0 0.0
      %1073 = vmatprep.subr.mxu0 0.0
      %1074 = vmatpush1.msra.mxu0 0.0
      %1075 = vmatprep.subr.mxu0 0.0
      %1076 = vmatpush1.msra.mxu0 0.0
      %1077 = vmatprep.subr.mxu0 0.0
      %1078 = vmatpush1.msra.mxu0 0.0
      %1079 = vmatprep.subr.mxu0 0.0
      %1080 = vmatpush1.msra.mxu0 0.0
      %1081 = vmatprep.subr.mxu0 0.0
      %1082 = vmatpush1.msra.mxu0 0.0
      %1083 = vmatprep.subr.mxu0 0.0
      %1084 = vmatpush1.msra.mxu0 0.0
      %1085 = vmatprep.subr.mxu0 0.0
      %1086 = vmatpush1.msra.mxu0 0.0
      %1087 = vmatprep.mubr.f32.mxu0 0.0
      %1088 = vmatmul.mubr.f32.gmra.mrb[0].mxu0 %v717
      %v1089 = vpop.f32.mrb[0].mxu0
      %v1090 = vadd.f32 %v1006, %v1089
      %v1091 = vpop.f32.mrb[0].mxu0
      %1092 = vdwg.mxu0
      %1093 = vmatprep.subr.mxu0 0.0
      %1094 = vmatpush1.msra.mxu0 %v647
      %1095 = vmatprep.subr.mxu0 0.0
      %1096 = vmatpush1.msra.mxu0 %v648
      %1097 = vmatprep.subr.mxu0 0.0
      %1098 = vmatpush1.msra.mxu0 %v649
      %1099 = vmatprep.subr.mxu0 0.0
      %1100 = vmatpush1.msra.mxu0 %v650
      %1101 = vmatprep.subr.mxu0 0.0
      %1102 = vmatpush1.msra.mxu0 0.0
      %1103 = vmatprep.subr.mxu0 0.0
      %1104 = vmatpush1.msra.mxu0 0.0
      %1105 = vmatprep.subr.mxu0 0.0
      %1106 = vmatpush1.msra.mxu0 0.0
      %1107 = vmatprep.subr.mxu0 0.0
      %1108 = vmatpush1.msra.mxu0 0.0
      %1109 = vmatprep.subr.mxu0 0.0
      %1110 = vmatpush1.msra.mxu0 0.0
      %1111 = vmatprep.subr.mxu0 0.0
      %1112 = vmatpush1.msra.mxu0 0.0
      %1113 = vmatprep.subr.mxu0 0.0
      %1114 = vmatpush1.msra.mxu0 0.0
      %1115 = vmatprep.subr.mxu0 0.0
      %1116 = vmatpush1.msra.mxu0 0.0
      %1117 = vmatprep.subr.mxu0 0.0
      %1118 = vmatpush1.msra.mxu0 0.0
      %1119 = vmatprep.subr.mxu0 0.0
      %1120 = vmatpush1.msra.mxu0 0.0
      %1121 = vmatprep.subr.mxu0 0.0
      %1122 = vmatpush1.msra.mxu0 0.0
      %1123 = vmatprep.subr.mxu0 0.0
      %1124 = vmatpush1.msra.mxu0 0.0
      %1125 = vmatprep.subr.mxu0 0.0
      %1126 = vmatpush1.msra.mxu0 0.0
      %1127 = vmatprep.subr.mxu0 0.0
      %1128 = vmatpush1.msra.mxu0 0.0
      %1129 = vmatprep.subr.mxu0 0.0
      %1130 = vmatpush1.msra.mxu0 0.0
      %1131 = vmatprep.subr.mxu0 0.0
      %1132 = vmatpush1.msra.mxu0 0.0
      %1133 = vmatprep.subr.mxu0 0.0
      %1134 = vmatpush1.msra.mxu0 0.0
      %1135 = vmatprep.subr.mxu0 0.0
      %1136 = vmatpush1.msra.mxu0 0.0
      %1137 = vmatprep.subr.mxu0 0.0
      %1138 = vmatpush1.msra.mxu0 0.0
      %1139 = vmatprep.subr.mxu0 0.0
      %1140 = vmatpush1.msra.mxu0 0.0
      %1141 = vmatprep.subr.mxu0 0.0
      %1142 = vmatpush1.msra.mxu0 0.0
      %1143 = vmatprep.subr.mxu0 0.0
      %1144 = vmatpush1.msra.mxu0 0.0
      %1145 = vmatprep.subr.mxu0 0.0
      %1146 = vmatpush1.msra.mxu0 0.0
      %1147 = vmatprep.subr.mxu0 0.0
      %1148 = vmatpush1.msra.mxu0 0.0
      %1149 = vmatprep.subr.mxu0 0.0
      %1150 = vmatpush1.msra.mxu0 0.0
      %1151 = vmatprep.subr.mxu0 0.0
      %1152 = vmatpush1.msra.mxu0 0.0
      %1153 = vmatprep.subr.mxu0 0.0
      %1154 = vmatpush1.msra.mxu0 0.0
      %1155 = vmatprep.subr.mxu0 0.0
      %1156 = vmatpush1.msra.mxu0 0.0
      %1157 = vmatprep.mubr.f32.mxu0 0.0
      %1158 = vmatmul.mubr.f32.gmra.mrb[0].mxu0 %v717
      %v1159 = vpop.f32.mrb[0].mxu0
      %v1160 = vadd.f32 %v1010, %v1159
      %v1161 = vpop.f32.mrb[0].mxu0
      %1162 = vdwg.mxu0
      %1163 = vmatprep.subr.mxu0 0.0
      %1164 = vmatpush1.msra.mxu0 %v651
      %1165 = vmatprep.subr.mxu0 0.0
      %1166 = vmatpush1.msra.mxu0 %v652
      %1167 = vmatprep.subr.mxu0 0.0
      %1168 = vmatpush1.msra.mxu0 %v653
      %1169 = vmatprep.subr.mxu0 0.0
      %1170 = vmatpush1.msra.mxu0 %v654
      %1171 = vmatprep.subr.mxu0 0.0
      %1172 = vmatpush1.msra.mxu0 0.0
      %1173 = vmatprep.subr.mxu0 0.0
      %1174 = vmatpush1.msra.mxu0 0.0
      %1175 = vmatprep.subr.mxu0 0.0
      %1176 = vmatpush1.msra.mxu0 0.0
      %1177 = vmatprep.subr.mxu0 0.0
      %1178 = vmatpush1.msra.mxu0 0.0
      %1179 = vmatprep.subr.mxu0 0.0
      %1180 = vmatpush1.msra.mxu0 0.0
      %1181 = vmatprep.subr.mxu0 0.0
      %1182 = vmatpush1.msra.mxu0 0.0
      %1183 = vmatprep.subr.mxu0 0.0
      %1184 = vmatpush1.msra.mxu0 0.0
      %1185 = vmatprep.subr.mxu0 0.0
      %1186 = vmatpush1.msra.mxu0 0.0
      %1187 = vmatprep.subr.mxu0 0.0
      %1188 = vmatpush1.msra.mxu0 0.0
      %1189 = vmatprep.subr.mxu0 0.0
      %1190 = vmatpush1.msra.mxu0 0.0
      %1191 = vmatprep.subr.mxu0 0.0
      %1192 = vmatpush1.msra.mxu0 0.0
      %1193 = vmatprep.subr.mxu0 0.0
      %1194 = vmatpush1.msra.mxu0 0.0
      %1195 = vmatprep.subr.mxu0 0.0
      %1196 = vmatpush1.msra.mxu0 0.0
      %1197 = vmatprep.subr.mxu0 0.0
      %1198 = vmatpush1.msra.mxu0 0.0
      %1199 = vmatprep.subr.mxu0 0.0
      %1200 = vmatpush1.msra.mxu0 0.0
      %1201 = vmatprep.subr.mxu0 0.0
      %1202 = vmatpush1.msra.mxu0 0.0
      %1203 = vmatprep.subr.mxu0 0.0
      %1204 = vmatpush1.msra.mxu0 0.0
      %1205 = vmatprep.subr.mxu0 0.0
      %1206 = vmatpush1.msra.mxu0 0.0
      %1207 = vmatprep.subr.mxu0 0.0
      %1208 = vmatpush1.msra.mxu0 0.0
      %1209 = vmatprep.subr.mxu0 0.0
      %1210 = vmatpush1.msra.mxu0 0.0
      %1211 = vmatprep.subr.mxu0 0.0
      %1212 = vmatpush1.msra.mxu0 0.0
      %1213 = vmatprep.subr.mxu0 0.0
      %1214 = vmatpush1.msra.mxu0 0.0
      %1215 = vmatprep.subr.mxu0 0.0
      %1216 = vmatpush1.msra.mxu0 0.0
      %1217 = vmatprep.subr.mxu0 0.0
      %1218 = vmatpush1.msra.mxu0 0.0
      %1219 = vmatprep.subr.mxu0 0.0
      %1220 = vmatpush1.msra.mxu0 0.0
      %1221 = vmatprep.subr.mxu0 0.0
      %1222 = vmatpush1.msra.mxu0 0.0
      %1223 = vmatprep.subr.mxu0 0.0
      %1224 = vmatpush1.msra.mxu0 0.0
      %1225 = vmatprep.subr.mxu0 0.0
      %1226 = vmatpush1.msra.mxu0 0.0
      %1227 = vmatprep.mubr.f32.mxu0 0.0
      %1228 = vmatmul.mubr.f32.gmra.mrb[0].mxu0 %v717
      %v1229 = vpop.f32.mrb[0].mxu0
      %v1230 = vadd.f32 %v1014, %v1229
      %v1231 = vpop.f32.mrb[0].mxu0
      %1232 = vdwg.mxu0
      %1233 = vmatprep.subr.mxu0 0.0
      %1234 = vmatpush1.msra.mxu0 %v655
      %1235 = vmatprep.subr.mxu0 0.0
      %1236 = vmatpush1.msra.mxu0 %v656
      %1237 = vmatprep.subr.mxu0 0.0
      %1238 = vmatpush1.msra.mxu0 %v657
      %1239 = vmatprep.subr.mxu0 0.0
      %1240 = vmatpush1.msra.mxu0 %v658
      %1241 = vmatprep.subr.mxu0 0.0
      %1242 = vmatpush1.msra.mxu0 0.0
      %1243 = vmatprep.subr.mxu0 0.0
      %1244 = vmatpush1.msra.mxu0 0.0
      %1245 = vmatprep.subr.mxu0 0.0
      %1246 = vmatpush1.msra.mxu0 0.0
      %1247 = vmatprep.subr.mxu0 0.0
      %1248 = vmatpush1.msra.mxu0 0.0
      %1249 = vmatprep.subr.mxu0 0.0
      %1250 = vmatpush1.msra.mxu0 0.0
      %1251 = vmatprep.subr.mxu0 0.0
      %1252 = vmatpush1.msra.mxu0 0.0
      %1253 = vmatprep.subr.mxu0 0.0
      %1254 = vmatpush1.msra.mxu0 0.0
      %1255 = vmatprep.subr.mxu0 0.0
      %1256 = vmatpush1.msra.mxu0 0.0
      %1257 = vmatprep.subr.mxu0 0.0
      %1258 = vmatpush1.msra.mxu0 0.0
      %1259 = vmatprep.subr.mxu0 0.0
      %1260 = vmatpush1.msra.mxu0 0.0
      %1261 = vmatprep.subr.mxu0 0.0
      %1262 = vmatpush1.msra.mxu0 0.0
      %1263 = vmatprep.subr.mxu0 0.0
      %1264 = vmatpush1.msra.mxu0 0.0
      %1265 = vmatprep.subr.mxu0 0.0
      %1266 = vmatpush1.msra.mxu0 0.0
      %1267 = vmatprep.subr.mxu0 0.0
      %1268 = vmatpush1.msra.mxu0 0.0
      %1269 = vmatprep.subr.mxu0 0.0
      %1270 = vmatpush1.msra.mxu0 0.0
      %1271 = vmatprep.subr.mxu0 0.0
      %1272 = vmatpush1.msra.mxu0 0.0
      %1273 = vmatprep.subr.mxu0 0.0
      %1274 = vmatpush1.msra.mxu0 0.0
      %1275 = vmatprep.subr.mxu0 0.0
      %1276 = vmatpush1.msra.mxu0 0.0
      %1277 = vmatprep.subr.mxu0 0.0
      %1278 = vmatpush1.msra.mxu0 0.0
      %1279 = vmatprep.subr.mxu0 0.0
      %1280 = vmatpush1.msra.mxu0 0.0
      %1281 = vmatprep.subr.mxu0 0.0
      %1282 = vmatpush1.msra.mxu0 0.0
      %1283 = vmatprep.subr.mxu0 0.0
      %1284 = vmatpush1.msra.mxu0 0.0
      %1285 = vmatprep.subr.mxu0 0.0
      %1286 = vmatpush1.msra.mxu0 0.0
      %1287 = vmatprep.subr.mxu0 0.0
      %1288 = vmatpush1.msra.mxu0 0.0
      %1289 = vmatprep.subr.mxu0 0.0
      %1290 = vmatpush1.msra.mxu0 0.0
      %1291 = vmatprep.subr.mxu0 0.0
      %1292 = vmatpush1.msra.mxu0 0.0
      %1293 = vmatprep.subr.mxu0 0.0
      %1294 = vmatpush1.msra.mxu0 0.0
      %1295 = vmatprep.subr.mxu0 0.0
      %1296 = vmatpush1.msra.mxu0 0.0
      %1297 = vmatprep.mubr.f32.mxu0 0.0
      %1298 = vmatmul.mubr.f32.gmra.mrb[0].mxu0 %v717
      %v1299 = vpop.f32.mrb[0].mxu0
      %v1300 = vadd.f32 %v1018, %v1299
      %v1301 = vpop.f32.mrb[0].mxu0
      %1302 = vdwg.mxu0
      %v1307 = vlaneseq
      %v1308 = vshrl.u32 %v1307, 7
      %v1309 = vsub.s32 0, %v1308
      %v1310 = vrot.slane %v687, %v1309
      %v1311 = vlaneseq
      %v1312 = vshrl.u32 %v1311, 7
      %v1313 = vsub.s32 0, %v1312
      %v1314 = vrot.slane %v688, %v1313
      %v1315 = vlaneseq
      %v1316 = vshrl.u32 %v1315, 7
      %v1317 = vsub.s32 0, %v1316
      %v1318 = vrot.slane %v689, %v1317
      %v1319 = vlaneseq
      %v1320 = vshrl.u32 %v1319, 7
      %v1321 = vsub.s32 0, %v1320
      %v1322 = vrot.slane %v690, %v1321
      %1327 = vmatprep.subr.mxu0 0.0
      %1328 = vmatpush1.msra.mxu0 %v659
      %1329 = vmatprep.subr.mxu0 0.0
      %1330 = vmatpush1.msra.mxu0 %v660
      %1331 = vmatprep.subr.mxu0 0.0
      %1332 = vmatpush1.msra.mxu0 %v661
      %1333 = vmatprep.subr.mxu0 0.0
      %1334 = vmatpush1.msra.mxu0 %v662
      %1335 = vmatprep.subr.mxu0 0.0
      %1336 = vmatpush1.msra.mxu0 0.0
      %1337 = vmatprep.subr.mxu0 0.0
      %1338 = vmatpush1.msra.mxu0 0.0
      %1339 = vmatprep.subr.mxu0 0.0
      %1340 = vmatpush1.msra.mxu0 0.0
      %1341 = vmatprep.subr.mxu0 0.0
      %1342 = vmatpush1.msra.mxu0 0.0
      %1343 = vmatprep.subr.mxu0 0.0
      %1344 = vmatpush1.msra.mxu0 0.0
      %1345 = vmatprep.subr.mxu0 0.0
      %1346 = vmatpush1.msra.mxu0 0.0
      %1347 = vmatprep.subr.mxu0 0.0
      %1348 = vmatpush1.msra.mxu0 0.0
      %1349 = vmatprep.subr.mxu0 0.0
      %1350 = vmatpush1.msra.mxu0 0.0
      %1351 = vmatprep.subr.mxu0 0.0
      %1352 = vmatpush1.msra.mxu0 0.0
      %1353 = vmatprep.subr.mxu0 0.0
      %1354 = vmatpush1.msra.mxu0 0.0
      %1355 = vmatprep.subr.mxu0 0.0
      %1356 = vmatpush1.msra.mxu0 0.0
      %1357 = vmatprep.subr.mxu0 0.0
      %1358 = vmatpush1.msra.mxu0 0.0
      %1359 = vmatprep.subr.mxu0 0.0
      %1360 = vmatpush1.msra.mxu0 0.0
      %1361 = vmatprep.subr.mxu0 0.0
      %1362 = vmatpush1.msra.mxu0 0.0
      %1363 = vmatprep.subr.mxu0 0.0
      %1364 = vmatpush1.msra.mxu0 0.0
      %1365 = vmatprep.subr.mxu0 0.0
      %1366 = vmatpush1.msra.mxu0 0.0
      %1367 = vmatprep.subr.mxu0 0.0
      %1368 = vmatpush1.msra.mxu0 0.0
      %1369 = vmatprep.subr.mxu0 0.0
      %1370 = vmatpush1.msra.mxu0 0.0
      %1371 = vmatprep.subr.mxu0 0.0
      %1372 = vmatpush1.msra.mxu0 0.0
      %1373 = vmatprep.subr.mxu0 0.0
      %1374 = vmatpush1.msra.mxu0 0.0
      %1375 = vmatprep.subr.mxu0 0.0
      %1376 = vmatpush1.msra.mxu0 0.0
      %1377 = vmatprep.subr.mxu0 0.0
      %1378 = vmatpush1.msra.mxu0 0.0
      %1379 = vmatprep.subr.mxu0 0.0
      %1380 = vmatpush1.msra.mxu0 0.0
      %1381 = vmatprep.subr.mxu0 0.0
      %1382 = vmatpush1.msra.mxu0 0.0
      %1383 = vmatprep.subr.mxu0 0.0
      %1384 = vmatpush1.msra.mxu0 0.0
      %1385 = vmatprep.subr.mxu0 0.0
      %1386 = vmatpush1.msra.mxu0 0.0
      %1387 = vmatprep.subr.mxu0 0.0
      %1388 = vmatpush1.msra.mxu0 0.0
      %1389 = vmatprep.subr.mxu0 0.0
      %1390 = vmatpush1.msra.mxu0 0.0
      %1391 = vmatprep.mubr.f32.mxu0 0.0
      %1392 = vmatmul.mubr.f32.gmra.mrb[0].mxu0 %v717
      %v1393 = vpop.f32.mrb[0].mxu0
      %v1394 = vadd.f32 %v1310, %v1393
      %v1395 = vpop.f32.mrb[0].mxu0
      %1396 = vdwg.mxu0
      %1397 = vmatprep.subr.mxu0 0.0
      %1398 = vmatpush1.msra.mxu0 %v663
      %1399 = vmatprep.subr.mxu0 0.0
      %1400 = vmatpush1.msra.mxu0 %v664
      %1401 = vmatprep.subr.mxu0 0.0
      %1402 = vmatpush1.msra.mxu0 %v665
      %1403 = vmatprep.subr.mxu0 0.0
      %1404 = vmatpush1.msra.mxu0 %v666
      %1405 = vmatprep.subr.mxu0 0.0
      %1406 = vmatpush1.msra.mxu0 0.0
      %1407 = vmatprep.subr.mxu0 0.0
      %1408 = vmatpush1.msra.mxu0 0.0
      %1409 = vmatprep.subr.mxu0 0.0
      %1410 = vmatpush1.msra.mxu0 0.0
      %1411 = vmatprep.subr.mxu0 0.0
      %1412 = vmatpush1.msra.mxu0 0.0
      %1413 = vmatprep.subr.mxu0 0.0
      %1414 = vmatpush1.msra.mxu0 0.0
      %1415 = vmatprep.subr.mxu0 0.0
      %1416 = vmatpush1.msra.mxu0 0.0
      %1417 = vmatprep.subr.mxu0 0.0
      %1418 = vmatpush1.msra.mxu0 0.0
      %1419 = vmatprep.subr.mxu0 0.0
      %1420 = vmatpush1.msra.mxu0 0.0
      %1421 = vmatprep.subr.mxu0 0.0
      %1422 = vmatpush1.msra.mxu0 0.0
      %1423 = vmatprep.subr.mxu0 0.0
      %1424 = vmatpush1.msra.mxu0 0.0
      %1425 = vmatprep.subr.mxu0 0.0
      %1426 = vmatpush1.msra.mxu0 0.0
      %1427 = vmatprep.subr.mxu0 0.0
      %1428 = vmatpush1.msra.mxu0 0.0
      %1429 = vmatprep.subr.mxu0 0.0
      %1430 = vmatpush1.msra.mxu0 0.0
      %1431 = vmatprep.subr.mxu0 0.0
      %1432 = vmatpush1.msra.mxu0 0.0
      %1433 = vmatprep.subr.mxu0 0.0
      %1434 = vmatpush1.msra.mxu0 0.0
      %1435 = vmatprep.subr.mxu0 0.0
      %1436 = vmatpush1.msra.mxu0 0.0
      %1437 = vmatprep.subr.mxu0 0.0
      %1438 = vmatpush1.msra.mxu0 0.0
      %1439 = vmatprep.subr.mxu0 0.0
      %1440 = vmatpush1.msra.mxu0 0.0
      %1441 = vmatprep.subr.mxu0 0.0
      %1442 = vmatpush1.msra.mxu0 0.0
      %1443 = vmatprep.subr.mxu0 0.0
      %1444 = vmatpush1.msra.mxu0 0.0
      %1445 = vmatprep.subr.mxu0 0.0
      %1446 = vmatpush1.msra.mxu0 0.0
      %1447 = vmatprep.subr.mxu0 0.0
      %1448 = vmatpush1.msra.mxu0 0.0
      %1449 = vmatprep.subr.mxu0 0.0
      %1450 = vmatpush1.msra.mxu0 0.0
      %1451 = vmatprep.subr.mxu0 0.0
      %1452 = vmatpush1.msra.mxu0 0.0
      %1453 = vmatprep.subr.mxu0 0.0
      %1454 = vmatpush1.msra.mxu0 0.0
      %1455 = vmatprep.subr.mxu0 0.0
      %1456 = vmatpush1.msra.mxu0 0.0
      %1457 = vmatprep.subr.mxu0 0.0
      %1458 = vmatpush1.msra.mxu0 0.0
      %1459 = vmatprep.subr.mxu0 0.0
      %1460 = vmatpush1.msra.mxu0 0.0
      %1461 = vmatprep.mubr.f32.mxu0 0.0
      %1462 = vmatmul.mubr.f32.gmra.mrb[0].mxu0 %v717
      %v1463 = vpop.f32.mrb[0].mxu0
      %v1464 = vadd.f32 %v1314, %v1463
      %v1465 = vpop.f32.mrb[0].mxu0
      %1466 = vdwg.mxu0
      %1467 = vmatprep.subr.mxu0 0.0
      %1468 = vmatpush1.msra.mxu0 %v667
      %1469 = vmatprep.subr.mxu0 0.0
      %1470 = vmatpush1.msra.mxu0 %v668
      %1471 = vmatprep.subr.mxu0 0.0
      %1472 = vmatpush1.msra.mxu0 %v669
      %1473 = vmatprep.subr.mxu0 0.0
      %1474 = vmatpush1.msra.mxu0 %v670
      %1475 = vmatprep.subr.mxu0 0.0
      %1476 = vmatpush1.msra.mxu0 0.0
      %1477 = vmatprep.subr.mxu0 0.0
      %1478 = vmatpush1.msra.mxu0 0.0
      %1479 = vmatprep.subr.mxu0 0.0
      %1480 = vmatpush1.msra.mxu0 0.0
      %1481 = vmatprep.subr.mxu0 0.0
      %1482 = vmatpush1.msra.mxu0 0.0
      %1483 = vmatprep.subr.mxu0 0.0
      %1484 = vmatpush1.msra.mxu0 0.0
      %1485 = vmatprep.subr.mxu0 0.0
      %1486 = vmatpush1.msra.mxu0 0.0
      %1487 = vmatprep.subr.mxu0 0.0
      %1488 = vmatpush1.msra.mxu0 0.0
      %1489 = vmatprep.subr.mxu0 0.0
      %1490 = vmatpush1.msra.mxu0 0.0
      %1491 = vmatprep.subr.mxu0 0.0
      %1492 = vmatpush1.msra.mxu0 0.0
      %1493 = vmatprep.subr.mxu0 0.0
      %1494 = vmatpush1.msra.mxu0 0.0
      %1495 = vmatprep.subr.mxu0 0.0
      %1496 = vmatpush1.msra.mxu0 0.0
      %1497 = vmatprep.subr.mxu0 0.0
      %1498 = vmatpush1.msra.mxu0 0.0
      %1499 = vmatprep.subr.mxu0 0.0
      %1500 = vmatpush1.msra.mxu0 0.0
      %1501 = vmatprep.subr.mxu0 0.0
      %1502 = vmatpush1.msra.mxu0 0.0
      %1503 = vmatprep.subr.mxu0 0.0
      %1504 = vmatpush1.msra.mxu0 0.0
      %1505 = vmatprep.subr.mxu0 0.0
      %1506 = vmatpush1.msra.mxu0 0.0
      %1507 = vmatprep.subr.mxu0 0.0
      %1508 = vmatpush1.msra.mxu0 0.0
      %1509 = vmatprep.subr.mxu0 0.0
      %1510 = vmatpush1.msra.mxu0 0.0
      %1511 = vmatprep.subr.mxu0 0.0
      %1512 = vmatpush1.msra.mxu0 0.0
      %1513 = vmatprep.subr.mxu0 0.0
      %1514 = vmatpush1.msra.mxu0 0.0
      %1515 = vmatprep.subr.mxu0 0.0
      %1516 = vmatpush1.msra.mxu0 0.0
      %1517 = vmatprep.subr.mxu0 0.0
      %1518 = vmatpush1.msra.mxu0 0.0
      %1519 = vmatprep.subr.mxu0 0.0
      %1520 = vmatpush1.msra.mxu0 0.0
      %1521 = vmatprep.subr.mxu0 0.0
      %1522 = vmatpush1.msra.mxu0 0.0
      %1523 = vmatprep.subr.mxu0 0.0
      %1524 = vmatpush1.msra.mxu0 0.0
      %1525 = vmatprep.subr.mxu0 0.0
      %1526 = vmatpush1.msra.mxu0 0.0
      %1527 = vmatprep.subr.mxu0 0.0
      %1528 = vmatpush1.msra.mxu0 0.0
      %1529 = vmatprep.subr.mxu0 0.0
      %1530 = vmatpush1.msra.mxu0 0.0
      %1531 = vmatprep.mubr.f32.mxu0 0.0
      %1532 = vmatmul.mubr.f32.gmra.mrb[0].mxu0 %v717
      %v1533 = vpop.f32.mrb[0].mxu0
      %v1534 = vadd.f32 %v1318, %v1533
      %v1535 = vpop.f32.mrb[0].mxu0
      %1536 = vdwg.mxu0
      %1537 = vmatprep.subr.mxu0 0.0
      %1538 = vmatpush1.msra.mxu0 %v671
      %1539 = vmatprep.subr.mxu0 0.0
      %1540 = vmatpush1.msra.mxu0 %v672
      %1541 = vmatprep.subr.mxu0 0.0
      %1542 = vmatpush1.msra.mxu0 %v673
      %1543 = vmatprep.subr.mxu0 0.0
      %1544 = vmatpush1.msra.mxu0 %v674
      %1545 = vmatprep.subr.mxu0 0.0
      %1546 = vmatpush1.msra.mxu0 0.0
      %1547 = vmatprep.subr.mxu0 0.0
      %1548 = vmatpush1.msra.mxu0 0.0
      %1549 = vmatprep.subr.mxu0 0.0
      %1550 = vmatpush1.msra.mxu0 0.0
      %1551 = vmatprep.subr.mxu0 0.0
      %1552 = vmatpush1.msra.mxu0 0.0
      %1553 = vmatprep.subr.mxu0 0.0
      %1554 = vmatpush1.msra.mxu0 0.0
      %1555 = vmatprep.subr.mxu0 0.0
      %1556 = vmatpush1.msra.mxu0 0.0
      %1557 = vmatprep.subr.mxu0 0.0
      %1558 = vmatpush1.msra.mxu0 0.0
      %1559 = vmatprep.subr.mxu0 0.0
      %1560 = vmatpush1.msra.mxu0 0.0
      %1561 = vmatprep.subr.mxu0 0.0
      %1562 = vmatpush1.msra.mxu0 0.0
      %1563 = vmatprep.subr.mxu0 0.0
      %1564 = vmatpush1.msra.mxu0 0.0
      %1565 = vmatprep.subr.mxu0 0.0
      %1566 = vmatpush1.msra.mxu0 0.0
      %1567 = vmatprep.subr.mxu0 0.0
      %1568 = vmatpush1.msra.mxu0 0.0
      %1569 = vmatprep.subr.mxu0 0.0
      %1570 = vmatpush1.msra.mxu0 0.0
      %1571 = vmatprep.subr.mxu0 0.0
      %1572 = vmatpush1.msra.mxu0 0.0
      %1573 = vmatprep.subr.mxu0 0.0
      %1574 = vmatpush1.msra.mxu0 0.0
      %1575 = vmatprep.subr.mxu0 0.0
      %1576 = vmatpush1.msra.mxu0 0.0
      %1577 = vmatprep.subr.mxu0 0.0
      %1578 = vmatpush1.msra.mxu0 0.0
      %1579 = vmatprep.subr.mxu0 0.0
      %1580 = vmatpush1.msra.mxu0 0.0
      %1581 = vmatprep.subr.mxu0 0.0
      %1582 = vmatpush1.msra.mxu0 0.0
      %1583 = vmatprep.subr.mxu0 0.0
      %1584 = vmatpush1.msra.mxu0 0.0
      %1585 = vmatprep.subr.mxu0 0.0
      %1586 = vmatpush1.msra.mxu0 0.0
      %1587 = vmatprep.subr.mxu0 0.0
      %1588 = vmatpush1.msra.mxu0 0.0
      %1589 = vmatprep.subr.mxu0 0.0
      %1590 = vmatpush1.msra.mxu0 0.0
      %1591 = vmatprep.subr.mxu0 0.0
      %1592 = vmatpush1.msra.mxu0 0.0
      %1593 = vmatprep.subr.mxu0 0.0
      %1594 = vmatpush1.msra.mxu0 0.0
      %1595 = vmatprep.subr.mxu0 0.0
      %1596 = vmatpush1.msra.mxu0 0.0
      %1597 = vmatprep.subr.mxu0 0.0
      %1598 = vmatpush1.msra.mxu0 0.0
      %1599 = vmatprep.subr.mxu0 0.0
      %1600 = vmatpush1.msra.mxu0 0.0
      %1601 = vmatprep.mubr.f32.mxu0 0.0
      %1602 = vmatmul.mubr.f32.gmra.mrb[0].mxu0 %v717
      %v1603 = vpop.f32.mrb[0].mxu0
      %v1604 = vadd.f32 %v1322, %v1603
      %v1605 = vpop.f32.mrb[0].mxu0
      %1606 = vdwg.mxu0
      %v1607 = vmul.f32 %v786, 0.35355338
      %v1608 = vmul.f32 %v856, 0.35355338
      %v1609 = vmul.f32 %v926, 0.35355338
      %v1610 = vmul.f32 %v996, 0.35355338
      %vm1611 = vcmask 64512
      %v1613 = vsel %vm1611, %v1607, 0
      %v1616 = vsel %vm1611, %v1090, 0
      %1618 = vmatprep.subr.mxu0 0.0
      %1619 = vmatpush1.xpose.msra.mxu0 %v1616
      %1620 = vmatprep.subr.mxu0 0.0
      %1621 = vmatpush1.xpose.msra.mxu0 0.0
      %1622 = vmatprep.subr.mxu0 0.0
      %1623 = vmatpush1.xpose.msra.mxu0 0.0
      %1624 = vmatprep.subr.mxu0 0.0
      %1625 = vmatpush1.xpose.msra.mxu0 0.0
      %1626 = vmatprep.subr.mxu0 0.0
      %1627 = vmatpush1.xpose.msra.mxu0 0.0
      %1628 = vmatprep.subr.mxu0 0.0
      %1629 = vmatpush1.xpose.msra.mxu0 0.0
      %1630 = vmatprep.subr.mxu0 0.0
      %1631 = vmatpush1.xpose.msra.mxu0 0.0
      %1632 = vmatprep.subr.mxu0 0.0
      %1633 = vmatpush1.xpose.msra.mxu0 0.0
      %1634 = vmatprep.subr.mxu0 0.0
      %1635 = vmatpush1.xpose.msra.mxu0 0.0
      %1636 = vmatprep.subr.mxu0 0.0
      %1637 = vmatpush1.xpose.msra.mxu0 0.0
      %1638 = vmatprep.subr.mxu0 0.0
      %1639 = vmatpush1.xpose.msra.mxu0 0.0
      %1640 = vmatprep.subr.mxu0 0.0
      %1641 = vmatpush1.xpose.msra.mxu0 0.0
      %1642 = vmatprep.subr.mxu0 0.0
      %1643 = vmatpush1.xpose.msra.mxu0 0.0
      %1644 = vmatprep.subr.mxu0 0.0
      %1645 = vmatpush1.xpose.msra.mxu0 0.0
      %1646 = vmatprep.subr.mxu0 0.0
      %1647 = vmatpush1.xpose.msra.mxu0 0.0
      %1648 = vmatprep.subr.mxu0 0.0
      %1649 = vmatpush1.xpose.msra.mxu0 0.0
      %1650 = vmatprep.subr.mxu0 0.0
      %1651 = vmatpush1.xpose.msra.mxu0 0.0
      %1652 = vmatprep.subr.mxu0 0.0
      %1653 = vmatpush1.xpose.msra.mxu0 0.0
      %1654 = vmatprep.subr.mxu0 0.0
      %1655 = vmatpush1.xpose.msra.mxu0 0.0
      %1656 = vmatprep.subr.mxu0 0.0
      %1657 = vmatpush1.xpose.msra.mxu0 0.0
      %1658 = vmatprep.subr.mxu0 0.0
      %1659 = vmatpush1.xpose.msra.mxu0 0.0
      %1660 = vmatprep.subr.mxu0 0.0
      %1661 = vmatpush1.xpose.msra.mxu0 0.0
      %1662 = vmatprep.subr.mxu0 0.0
      %1663 = vmatpush1.xpose.msra.mxu0 0.0
      %1664 = vmatprep.subr.mxu0 0.0
      %1665 = vmatpush1.xpose.msra.mxu0 0.0
      %1666 = vmatprep.subr.mxu0 0.0
      %1667 = vmatpush1.xpose.msra.mxu0 0.0
      %1668 = vmatprep.subr.mxu0 0.0
      %1669 = vmatpush1.xpose.msra.mxu0 0.0
      %1670 = vmatprep.subr.mxu0 0.0
      %1671 = vmatpush1.xpose.msra.mxu0 0.0
      %1672 = vmatprep.subr.mxu0 0.0
      %1673 = vmatpush1.xpose.msra.mxu0 0.0
      %1674 = vmatprep.subr.mxu0 0.0
      %1675 = vmatpush1.xpose.msra.mxu0 0.0
      %1676 = vmatprep.subr.mxu0 0.0
      %1677 = vmatpush1.xpose.msra.mxu0 0.0
      %1678 = vmatprep.subr.mxu0 0.0
      %1679 = vmatpush1.xpose.msra.mxu0 0.0
      %1680 = vmatprep.subr.mxu0 0.0
      %1681 = vmatpush1.xpose.msra.mxu0 0.0
      %1682 = vmatprep.mubr.f32.mxu0 0.0
      %1683 = vmatmul.mubr.f32.gmra.mrb[0].mxu0 %v1613
      %v1684 = vpop.f32.mrb[0].mxu0
      %v1685 = vadd.f32 0.0, %v1684
      %v1686 = vpop.f32.mrb[0].mxu0
      %1687 = vdwg.mxu0
      %v1689 = vsel %vm1611, %v1608, 0
      %v1692 = vsel %vm1611, %v1160, 0
      %1694 = vmatprep.subr.mxu0 0.0
      %1695 = vmatpush1.xpose.msra.mxu0 %v1692
      %1696 = vmatprep.subr.mxu0 0.0
      %1697 = vmatpush1.xpose.msra.mxu0 0.0
      %1698 = vmatprep.subr.mxu0 0.0
      %1699 = vmatpush1.xpose.msra.mxu0 0.0
      %1700 = vmatprep.subr.mxu0 0.0
      %1701 = vmatpush1.xpose.msra.mxu0 0.0
      %1702 = vmatprep.subr.mxu0 0.0
      %1703 = vmatpush1.xpose.msra.mxu0 0.0
      %1704 = vmatprep.subr.mxu0 0.0
      %1705 = vmatpush1.xpose.msra.mxu0 0.0
      %1706 = vmatprep.subr.mxu0 0.0
      %1707 = vmatpush1.xpose.msra.mxu0 0.0
      %1708 = vmatprep.subr.mxu0 0.0
      %1709 = vmatpush1.xpose.msra.mxu0 0.0
      %1710 = vmatprep.subr.mxu0 0.0
      %1711 = vmatpush1.xpose.msra.mxu0 0.0
      %1712 = vmatprep.subr.mxu0 0.0
      %1713 = vmatpush1.xpose.msra.mxu0 0.0
      %1714 = vmatprep.subr.mxu0 0.0
      %1715 = vmatpush1.xpose.msra.mxu0 0.0
      %1716 = vmatprep.subr.mxu0 0.0
      %1717 = vmatpush1.xpose.msra.mxu0 0.0
      %1718 = vmatprep.subr.mxu0 0.0
      %1719 = vmatpush1.xpose.msra.mxu0 0.0
      %1720 = vmatprep.subr.mxu0 0.0
      %1721 = vmatpush1.xpose.msra.mxu0 0.0
      %1722 = vmatprep.subr.mxu0 0.0
      %1723 = vmatpush1.xpose.msra.mxu0 0.0
      %1724 = vmatprep.subr.mxu0 0.0
      %1725 = vmatpush1.xpose.msra.mxu0 0.0
      %1726 = vmatprep.subr.mxu0 0.0
      %1727 = vmatpush1.xpose.msra.mxu0 0.0
      %1728 = vmatprep.subr.mxu0 0.0
      %1729 = vmatpush1.xpose.msra.mxu0 0.0
      %1730 = vmatprep.subr.mxu0 0.0
      %1731 = vmatpush1.xpose.msra.mxu0 0.0
      %1732 = vmatprep.subr.mxu0 0.0
      %1733 = vmatpush1.xpose.msra.mxu0 0.0
      %1734 = vmatprep.subr.mxu0 0.0
      %1735 = vmatpush1.xpose.msra.mxu0 0.0
      %1736 = vmatprep.subr.mxu0 0.0
      %1737 = vmatpush1.xpose.msra.mxu0 0.0
      %1738 = vmatprep.subr.mxu0 0.0
      %1739 = vmatpush1.xpose.msra.mxu0 0.0
      %1740 = vmatprep.subr.mxu0 0.0
      %1741 = vmatpush1.xpose.msra.mxu0 0.0
      %1742 = vmatprep.subr.mxu0 0.0
      %1743 = vmatpush1.xpose.msra.mxu0 0.0
      %1744 = vmatprep.subr.mxu0 0.0
      %1745 = vmatpush1.xpose.msra.mxu0 0.0
      %1746 = vmatprep.subr.mxu0 0.0
      %1747 = vmatpush1.xpose.msra.mxu0 0.0
      %1748 = vmatprep.subr.mxu0 0.0
      %1749 = vmatpush1.xpose.msra.mxu0 0.0
      %1750 = vmatprep.subr.mxu0 0.0
      %1751 = vmatpush1.xpose.msra.mxu0 0.0
      %1752 = vmatprep.subr.mxu0 0.0
      %1753 = vmatpush1.xpose.msra.mxu0 0.0
      %1754 = vmatprep.subr.mxu0 0.0
      %1755 = vmatpush1.xpose.msra.mxu0 0.0
      %1756 = vmatprep.subr.mxu0 0.0
      %1757 = vmatpush1.xpose.msra.mxu0 0.0
      %1758 = vmatprep.mubr.f32.mxu0 0.0
      %1759 = vmatmul.mubr.f32.gmra.mrb[0].mxu0 %v1689
      %v1760 = vpop.f32.mrb[0].mxu0
      %v1761 = vadd.f32 0.0, %v1760
      %v1762 = vpop.f32.mrb[0].mxu0
      %1763 = vdwg.mxu0
      %v1765 = vsel %vm1611, %v1609, 0
      %v1768 = vsel %vm1611, %v1230, 0
      %1770 = vmatprep.subr.mxu0 0.0
      %1771 = vmatpush1.xpose.msra.mxu0 %v1768
      %1772 = vmatprep.subr.mxu0 0.0
      %1773 = vmatpush1.xpose.msra.mxu0 0.0
      %1774 = vmatprep.subr.mxu0 0.0
      %1775 = vmatpush1.xpose.msra.mxu0 0.0
      %1776 = vmatprep.subr.mxu0 0.0
      %1777 = vmatpush1.xpose.msra.mxu0 0.0
      %1778 = vmatprep.subr.mxu0 0.0
      %1779 = vmatpush1.xpose.msra.mxu0 0.0
      %1780 = vmatprep.subr.mxu0 0.0
      %1781 = vmatpush1.xpose.msra.mxu0 0.0
      %1782 = vmatprep.subr.mxu0 0.0
      %1783 = vmatpush1.xpose.msra.mxu0 0.0
      %1784 = vmatprep.subr.mxu0 0.0
      %1785 = vmatpush1.xpose.msra.mxu0 0.0
      %1786 = vmatprep.subr.mxu0 0.0
      %1787 = vmatpush1.xpose.msra.mxu0 0.0
      %1788 = vmatprep.subr.mxu0 0.0
      %1789 = vmatpush1.xpose.msra.mxu0 0.0
      %1790 = vmatprep.subr.mxu0 0.0
      %1791 = vmatpush1.xpose.msra.mxu0 0.0
      %1792 = vmatprep.subr.mxu0 0.0
      %1793 = vmatpush1.xpose.msra.mxu0 0.0
      %1794 = vmatprep.subr.mxu0 0.0
      %1795 = vmatpush1.xpose.msra.mxu0 0.0
      %1796 = vmatprep.subr.mxu0 0.0
      %1797 = vmatpush1.xpose.msra.mxu0 0.0
      %1798 = vmatprep.subr.mxu0 0.0
      %1799 = vmatpush1.xpose.msra.mxu0 0.0
      %1800 = vmatprep.subr.mxu0 0.0
      %1801 = vmatpush1.xpose.msra.mxu0 0.0
      %1802 = vmatprep.subr.mxu0 0.0
      %1803 = vmatpush1.xpose.msra.mxu0 0.0
      %1804 = vmatprep.subr.mxu0 0.0
      %1805 = vmatpush1.xpose.msra.mxu0 0.0
      %1806 = vmatprep.subr.mxu0 0.0
      %1807 = vmatpush1.xpose.msra.mxu0 0.0
      %1808 = vmatprep.subr.mxu0 0.0
      %1809 = vmatpush1.xpose.msra.mxu0 0.0
      %1810 = vmatprep.subr.mxu0 0.0
      %1811 = vmatpush1.xpose.msra.mxu0 0.0
      %1812 = vmatprep.subr.mxu0 0.0
      %1813 = vmatpush1.xpose.msra.mxu0 0.0
      %1814 = vmatprep.subr.mxu0 0.0
      %1815 = vmatpush1.xpose.msra.mxu0 0.0
      %1816 = vmatprep.subr.mxu0 0.0
      %1817 = vmatpush1.xpose.msra.mxu0 0.0
      %1818 = vmatprep.subr.mxu0 0.0
      %1819 = vmatpush1.xpose.msra.mxu0 0.0
      %1820 = vmatprep.subr.mxu0 0.0
      %1821 = vmatpush1.xpose.msra.mxu0 0.0
      %1822 = vmatprep.subr.mxu0 0.0
      %1823 = vmatpush1.xpose.msra.mxu0 0.0
      %1824 = vmatprep.subr.mxu0 0.0
      %1825 = vmatpush1.xpose.msra.mxu0 0.0
      %1826 = vmatprep.subr.mxu0 0.0
      %1827 = vmatpush1.xpose.msra.mxu0 0.0
      %1828 = vmatprep.subr.mxu0 0.0
      %1829 = vmatpush1.xpose.msra.mxu0 0.0
      %1830 = vmatprep.subr.mxu0 0.0
      %1831 = vmatpush1.xpose.msra.mxu0 0.0
      %1832 = vmatprep.subr.mxu0 0.0
      %1833 = vmatpush1.xpose.msra.mxu0 0.0
      %1834 = vmatprep.mubr.f32.mxu0 0.0
      %1835 = vmatmul.mubr.f32.gmra.mrb[0].mxu0 %v1765
      %v1836 = vpop.f32.mrb[0].mxu0
      %v1837 = vadd.f32 0.0, %v1836
      %v1838 = vpop.f32.mrb[0].mxu0
      %1839 = vdwg.mxu0
      %v1841 = vsel %vm1611, %v1610, 0
      %v1844 = vsel %vm1611, %v1300, 0
      %1846 = vmatprep.subr.mxu0 0.0
      %1847 = vmatpush1.xpose.msra.mxu0 %v1844
      %1848 = vmatprep.subr.mxu0 0.0
      %1849 = vmatpush1.xpose.msra.mxu0 0.0
      %1850 = vmatprep.subr.mxu0 0.0
      %1851 = vmatpush1.xpose.msra.mxu0 0.0
      %1852 = vmatprep.subr.mxu0 0.0
      %1853 = vmatpush1.xpose.msra.mxu0 0.0
      %1854 = vmatprep.subr.mxu0 0.0
      %1855 = vmatpush1.xpose.msra.mxu0 0.0
      %1856 = vmatprep.subr.mxu0 0.0
      %1857 = vmatpush1.xpose.msra.mxu0 0.0
      %1858 = vmatprep.subr.mxu0 0.0
      %1859 = vmatpush1.xpose.msra.mxu0 0.0
      %1860 = vmatprep.subr.mxu0 0.0
      %1861 = vmatpush1.xpose.msra.mxu0 0.0
      %1862 = vmatprep.subr.mxu0 0.0
      %1863 = vmatpush1.xpose.msra.mxu0 0.0
      %1864 = vmatprep.subr.mxu0 0.0
      %1865 = vmatpush1.xpose.msra.mxu0 0.0
      %1866 = vmatprep.subr.mxu0 0.0
      %1867 = vmatpush1.xpose.msra.mxu0 0.0
      %1868 = vmatprep.subr.mxu0 0.0
      %1869 = vmatpush1.xpose.msra.mxu0 0.0
      %1870 = vmatprep.subr.mxu0 0.0
      %1871 = vmatpush1.xpose.msra.mxu0 0.0
      %1872 = vmatprep.subr.mxu0 0.0
      %1873 = vmatpush1.xpose.msra.mxu0 0.0
      %1874 = vmatprep.subr.mxu0 0.0
      %1875 = vmatpush1.xpose.msra.mxu0 0.0
      %1876 = vmatprep.subr.mxu0 0.0
      %1877 = vmatpush1.xpose.msra.mxu0 0.0
      %1878 = vmatprep.subr.mxu0 0.0
      %1879 = vmatpush1.xpose.msra.mxu0 0.0
      %1880 = vmatprep.subr.mxu0 0.0
      %1881 = vmatpush1.xpose.msra.mxu0 0.0
      %1882 = vmatprep.subr.mxu0 0.0
      %1883 = vmatpush1.xpose.msra.mxu0 0.0
      %1884 = vmatprep.subr.mxu0 0.0
      %1885 = vmatpush1.xpose.msra.mxu0 0.0
      %1886 = vmatprep.subr.mxu0 0.0
      %1887 = vmatpush1.xpose.msra.mxu0 0.0
      %1888 = vmatprep.subr.mxu0 0.0
      %1889 = vmatpush1.xpose.msra.mxu0 0.0
      %1890 = vmatprep.subr.mxu0 0.0
      %1891 = vmatpush1.xpose.msra.mxu0 0.0
      %1892 = vmatprep.subr.mxu0 0.0
      %1893 = vmatpush1.xpose.msra.mxu0 0.0
      %1894 = vmatprep.subr.mxu0 0.0
      %1895 = vmatpush1.xpose.msra.mxu0 0.0
      %1896 = vmatprep.subr.mxu0 0.0
      %1897 = vmatpush1.xpose.msra.mxu0 0.0
      %1898 = vmatprep.subr.mxu0 0.0
      %1899 = vmatpush1.xpose.msra.mxu0 0.0
      %1900 = vmatprep.subr.mxu0 0.0
      %1901 = vmatpush1.xpose.msra.mxu0 0.0
      %1902 = vmatprep.subr.mxu0 0.0
      %1903 = vmatpush1.xpose.msra.mxu0 0.0
      %1904 = vmatprep.subr.mxu0 0.0
      %1905 = vmatpush1.xpose.msra.mxu0 0.0
      %1906 = vmatprep.subr.mxu0 0.0
      %1907 = vmatpush1.xpose.msra.mxu0 0.0
      %1908 = vmatprep.subr.mxu0 0.0
      %1909 = vmatpush1.xpose.msra.mxu0 0.0
      %1910 = vmatprep.mubr.f32.mxu0 0.0
      %1911 = vmatmul.mubr.f32.gmra.mrb[0].mxu0 %v1841
      %v1912 = vpop.f32.mrb[0].mxu0
      %v1913 = vadd.f32 0.0, %v1912
      %v1914 = vpop.f32.mrb[0].mxu0
      %1915 = vdwg.mxu0
      %v1916 = vsel %vm1611, %v1685, -inf
      %1917 = vmax.xlane.f32.xlu0 %v1916
      %v1918 = vpop.xlane.xlu0 %1917
      %v1919 = vsel %vm1611, %v1761, -inf
      %1920 = vmax.xlane.f32.xlu0 %v1919
      %v1921 = vpop.xlane.xlu0 %1920
      %v1922 = vsel %vm1611, %v1837, -inf
      %1923 = vmax.xlane.f32.xlu0 %v1922
      %v1924 = vpop.xlane.xlu0 %1923
      %v1925 = vsel %vm1611, %v1913, -inf
      %1926 = vmax.xlane.f32.xlu0 %v1925
      %v1927 = vpop.xlane.xlu0 %1926
      %v1928 = vsub.f32 %v1685, %v1918
      %v1929 = vsub.f32 %v1761, %v1921
      %v1930 = vsub.f32 %v1837, %v1924
      %v1931 = vsub.f32 %v1913, %v1927
      %v1932 = vmul.f32 %v1928, 1.442695
      %v1933 = vpow.pop %v1932
      %v1934 = vmul.f32 %v1929, 1.442695
      %v1935 = vpow.pop %v1934
      %v1936 = vmul.f32 %v1930, 1.442695
      %v1937 = vpow.pop %v1936
      %v1938 = vmul.f32 %v1931, 1.442695
      %v1939 = vpow.pop %v1938
      %v1940 = vsel %vm1611, %v1933, 0.0
      %1941 = vadd.xlane.f32.xlu0 %v1940
      %v1942 = vpop.xlane.xlu0 %1941
      %v1943 = vsel %vm1611, %v1935, 0.0
      %1944 = vadd.xlane.f32.xlu0 %v1943
      %v1945 = vpop.xlane.xlu0 %1944
      %v1946 = vsel %vm1611, %v1937, 0.0
      %1947 = vadd.xlane.f32.xlu0 %v1946
      %v1948 = vpop.xlane.xlu0 %1947
      %v1949 = vsel %vm1611, %v1939, 0.0
      %1950 = vadd.xlane.f32.xlu0 %v1949
      %v1951 = vpop.xlane.xlu0 %1950
      %v1952 = vrcp.pop %v1942
      %v1953 = vrcp.pop %v1945
      %v1954 = vrcp.pop %v1948
      %v1955 = vrcp.pop %v1951
      %v1956 = vmul.f32 %v1933, %v1952
      %v1957 = vmul.f32 %v1935, %v1953
      %v1958 = vmul.f32 %v1937, %v1954
      %v1959 = vmul.f32 %v1939, %v1955
      %v1961 = vsel %vm1611, %v1956, 0
      %1963 = vmatprep.subr.mxu0 0.0
      %1964 = vmatpush1.msra.mxu0 %v1394
      %1965 = vmatprep.subr.mxu0 0.0
      %1966 = vmatpush1.msra.mxu0 0.0
      %1967 = vmatprep.subr.mxu0 0.0
      %1968 = vmatpush1.msra.mxu0 0.0
      %1969 = vmatprep.subr.mxu0 0.0
      %1970 = vmatpush1.msra.mxu0 0.0
      %1971 = vmatprep.subr.mxu0 0.0
      %1972 = vmatpush1.msra.mxu0 0.0
      %1973 = vmatprep.subr.mxu0 0.0
      %1974 = vmatpush1.msra.mxu0 0.0
      %1975 = vmatprep.subr.mxu0 0.0
      %1976 = vmatpush1.msra.mxu0 0.0
      %1977 = vmatprep.subr.mxu0 0.0
      %1978 = vmatpush1.msra.mxu0 0.0
      %1979 = vmatprep.subr.mxu0 0.0
      %1980 = vmatpush1.msra.mxu0 0.0
      %1981 = vmatprep.subr.mxu0 0.0
      %1982 = vmatpush1.msra.mxu0 0.0
      %1983 = vmatprep.subr.mxu0 0.0
      %1984 = vmatpush1.msra.mxu0 0.0
      %1985 = vmatprep.subr.mxu0 0.0
      %1986 = vmatpush1.msra.mxu0 0.0
      %1987 = vmatprep.subr.mxu0 0.0
      %1988 = vmatpush1.msra.mxu0 0.0
      %1989 = vmatprep.subr.mxu0 0.0
      %1990 = vmatpush1.msra.mxu0 0.0
      %1991 = vmatprep.subr.mxu0 0.0
      %1992 = vmatpush1.msra.mxu0 0.0
      %1993 = vmatprep.subr.mxu0 0.0
      %1994 = vmatpush1.msra.mxu0 0.0
      %1995 = vmatprep.subr.mxu0 0.0
      %1996 = vmatpush1.msra.mxu0 0.0
      %1997 = vmatprep.subr.mxu0 0.0
      %1998 = vmatpush1.msra.mxu0 0.0
      %1999 = vmatprep.subr.mxu0 0.0
      %2000 = vmatpush1.msra.mxu0 0.0
      %2001 = vmatprep.subr.mxu0 0.0
      %2002 = vmatpush1.msra.mxu0 0.0
      %2003 = vmatprep.subr.mxu0 0.0
      %2004 = vmatpush1.msra.mxu0 0.0
      %2005 = vmatprep.subr.mxu0 0.0
      %2006 = vmatpush1.msra.mxu0 0.0
      %2007 = vmatprep.subr.mxu0 0.0
      %2008 = vmatpush1.msra.mxu0 0.0
      %2009 = vmatprep.subr.mxu0 0.0
      %2010 = vmatpush1.msra.mxu0 0.0
      %2011 = vmatprep.subr.mxu0 0.0
      %2012 = vmatpush1.msra.mxu0 0.0
      %2013 = vmatprep.subr.mxu0 0.0
      %2014 = vmatpush1.msra.mxu0 0.0
      %2015 = vmatprep.subr.mxu0 0.0
      %2016 = vmatpush1.msra.mxu0 0.0
      %2017 = vmatprep.subr.mxu0 0.0
      %2018 = vmatpush1.msra.mxu0 0.0
      %2019 = vmatprep.subr.mxu0 0.0
      %2020 = vmatpush1.msra.mxu0 0.0
      %2021 = vmatprep.subr.mxu0 0.0
      %2022 = vmatpush1.msra.mxu0 0.0
      %2023 = vmatprep.subr.mxu0 0.0
      %2024 = vmatpush1.msra.mxu0 0.0
      %2025 = vmatprep.subr.mxu0 0.0
      %2026 = vmatpush1.msra.mxu0 0.0
      %2027 = vmatprep.mubr.f32.mxu0 0.0
      %2028 = vmatmul.mubr.f32.gmra.mrb[0].mxu0 %v1961
      %v2029 = vpop.f32.mrb[0].mxu0
      %v2030 = vadd.f32 0.0, %v2029
      %v2031 = vpop.f32.mrb[0].mxu0
      %2032 = vdwg.mxu0
      %v2034 = vsel %vm1611, %v1957, 0
      %2036 = vmatprep.subr.mxu0 0.0
      %2037 = vmatpush1.msra.mxu0 %v1464
      %2038 = vmatprep.subr.mxu0 0.0
      %2039 = vmatpush1.msra.mxu0 0.0
      %2040 = vmatprep.subr.mxu0 0.0
      %2041 = vmatpush1.msra.mxu0 0.0
      %2042 = vmatprep.subr.mxu0 0.0
      %2043 = vmatpush1.msra.mxu0 0.0
      %2044 = vmatprep.subr.mxu0 0.0
      %2045 = vmatpush1.msra.mxu0 0.0
      %2046 = vmatprep.subr.mxu0 0.0
      %2047 = vmatpush1.msra.mxu0 0.0
      %2048 = vmatprep.subr.mxu0 0.0
      %2049 = vmatpush1.msra.mxu0 0.0
      %2050 = vmatprep.subr.mxu0 0.0
      %2051 = vmatpush1.msra.mxu0 0.0
      %2052 = vmatprep.subr.mxu0 0.0
      %2053 = vmatpush1.msra.mxu0 0.0
      %2054 = vmatprep.subr.mxu0 0.0
      %2055 = vmatpush1.msra.mxu0 0.0
      %2056 = vmatprep.subr.mxu0 0.0
      %2057 = vmatpush1.msra.mxu0 0.0
      %2058 = vmatprep.subr.mxu0 0.0
      %2059 = vmatpush1.msra.mxu0 0.0
      %2060 = vmatprep.subr.mxu0 0.0
      %2061 = vmatpush1.msra.mxu0 0.0
      %2062 = vmatprep.subr.mxu0 0.0
      %2063 = vmatpush1.msra.mxu0 0.0
      %2064 = vmatprep.subr.mxu0 0.0
      %2065 = vmatpush1.msra.mxu0 0.0
      %2066 = vmatprep.subr.mxu0 0.0
      %2067 = vmatpush1.msra.mxu0 0.0
      %2068 = vmatprep.subr.mxu0 0.0
      %2069 = vmatpush1.msra.mxu0 0.0
      %2070 = vmatprep.subr.mxu0 0.0
      %2071 = vmatpush1.msra.mxu0 0.0
      %2072 = vmatprep.subr.mxu0 0.0
      %2073 = vmatpush1.msra.mxu0 0.0
      %2074 = vmatprep.subr.mxu0 0.0
      %2075 = vmatpush1.msra.mxu0 0.0
      %2076 = vmatprep.subr.mxu0 0.0
      %2077 = vmatpush1.msra.mxu0 0.0
      %2078 = vmatprep.subr.mxu0 0.0
      %2079 = vmatpush1.msra.mxu0 0.0
      %2080 = vmatprep.subr.mxu0 0.0
      %2081 = vmatpush1.msra.mxu0 0.0
      %2082 = vmatprep.subr.mxu0 0.0
      %2083 = vmatpush1.msra.mxu0 0.0
      %2084 = vmatprep.subr.mxu0 0.0
      %2085 = vmatpush1.msra.mxu0 0.0
      %2086 = vmatprep.subr.mxu0 0.0
      %2087 = vmatpush1.msra.mxu0 0.0
      %2088 = vmatprep.subr.mxu0 0.0
      %2089 = vmatpush1.msra.mxu0 0.0
      %2090 = vmatprep.subr.mxu0 0.0
      %2091 = vmatpush1.msra.mxu0 0.0
      %2092 = vmatprep.subr.mxu0 0.0
      %2093 = vmatpush1.msra.mxu0 0.0
      %2094 = vmatprep.subr.mxu0 0.0
      %2095 = vmatpush1.msra.mxu0 0.0
      %2096 = vmatprep.subr.mxu0 0.0
      %2097 = vmatpush1.msra.mxu0 0.0
      %2098 = vmatprep.subr.mxu0 0.0
      %2099 = vmatpush1.msra.mxu0 0.0
      %2100 = vmatprep.mubr.f32.mxu0 0.0
      %2101 = vmatmul.mubr.f32.gmra.mrb[0].mxu0 %v2034
      %v2102 = vpop.f32.mrb[0].mxu0
      %v2103 = vadd.f32 0.0, %v2102
      %v2104 = vpop.f32.mrb[0].mxu0
      %2105 = vdwg.mxu0
      %v2107 = vsel %vm1611, %v1958, 0
      %2109 = vmatprep.subr.mxu0 0.0
      %2110 = vmatpush1.msra.mxu0 %v1534
      %2111 = vmatprep.subr.mxu0 0.0
      %2112 = vmatpush1.msra.mxu0 0.0
      %2113 = vmatprep.subr.mxu0 0.0
      %2114 = vmatpush1.msra.mxu0 0.0
      %2115 = vmatprep.subr.mxu0 0.0
      %2116 = vmatpush1.msra.mxu0 0.0
      %2117 = vmatprep.subr.mxu0 0.0
      %2118 = vmatpush1.msra.mxu0 0.0
      %2119 = vmatprep.subr.mxu0 0.0
      %2120 = vmatpush1.msra.mxu0 0.0
      %2121 = vmatprep.subr.mxu0 0.0
      %2122 = vmatpush1.msra.mxu0 0.0
      %2123 = vmatprep.subr.mxu0 0.0
      %2124 = vmatpush1.msra.mxu0 0.0
      %2125 = vmatprep.subr.mxu0 0.0
      %2126 = vmatpush1.msra.mxu0 0.0
      %2127 = vmatprep.subr.mxu0 0.0
      %2128 = vmatpush1.msra.mxu0 0.0
      %2129 = vmatprep.subr.mxu0 0.0
      %2130 = vmatpush1.msra.mxu0 0.0
      %2131 = vmatprep.subr.mxu0 0.0
      %2132 = vmatpush1.msra.mxu0 0.0
      %2133 = vmatprep.subr.mxu0 0.0
      %2134 = vmatpush1.msra.mxu0 0.0
      %2135 = vmatprep.subr.mxu0 0.0
      %2136 = vmatpush1.msra.mxu0 0.0
      %2137 = vmatprep.subr.mxu0 0.0
      %2138 = vmatpush1.msra.mxu0 0.0
      %2139 = vmatprep.subr.mxu0 0.0
      %2140 = vmatpush1.msra.mxu0 0.0
      %2141 = vmatprep.subr.mxu0 0.0
      %2142 = vmatpush1.msra.mxu0 0.0
      %2143 = vmatprep.subr.mxu0 0.0
      %2144 = vmatpush1.msra.mxu0 0.0
      %2145 = vmatprep.subr.mxu0 0.0
      %2146 = vmatpush1.msra.mxu0 0.0
      %2147 = vmatprep.subr.mxu0 0.0
      %2148 = vmatpush1.msra.mxu0 0.0
      %2149 = vmatprep.subr.mxu0 0.0
      %2150 = vmatpush1.msra.mxu0 0.0
      %2151 = vmatprep.subr.mxu0 0.0
      %2152 = vmatpush1.msra.mxu0 0.0
      %2153 = vmatprep.subr.mxu0 0.0
      %2154 = vmatpush1.msra.mxu0 0.0
      %2155 = vmatprep.subr.mxu0 0.0
      %2156 = vmatpush1.msra.mxu0 0.0
      %2157 = vmatprep.subr.mxu0 0.0
      %2158 = vmatpush1.msra.mxu0 0.0
      %2159 = vmatprep.subr.mxu0 0.0
      %2160 = vmatpush1.msra.mxu0 0.0
      %2161 = vmatprep.subr.mxu0 0.0
      %2162 = vmatpush1.msra.mxu0 0.0
      %2163 = vmatprep.subr.mxu0 0.0
      %2164 = vmatpush1.msra.mxu0 0.0
      %2165 = vmatprep.subr.mxu0 0.0
      %2166 = vmatpush1.msra.mxu0 0.0
      %2167 = vmatprep.subr.mxu0 0.0
      %2168 = vmatpush1.msra.mxu0 0.0
      %2169 = vmatprep.subr.mxu0 0.0
      %2170 = vmatpush1.msra.mxu0 0.0
      %2171 = vmatprep.subr.mxu0 0.0
      %2172 = vmatpush1.msra.mxu0 0.0
      %2173 = vmatprep.mubr.f32.mxu0 0.0
      %2174 = vmatmul.mubr.f32.gmra.mrb[0].mxu0 %v2107
      %v2175 = vpop.f32.mrb[0].mxu0
      %v2176 = vadd.f32 0.0, %v2175
      %v2177 = vpop.f32.mrb[0].mxu0
      %2178 = vdwg.mxu0
      %v2180 = vsel %vm1611, %v1959, 0
      %2182 = vmatprep.subr.mxu0 0.0
      %2183 = vmatpush1.msra.mxu0 %v1604
      %2184 = vmatprep.subr.mxu0 0.0
      %2185 = vmatpush1.msra.mxu0 0.0
      %2186 = vmatprep.subr.mxu0 0.0
      %2187 = vmatpush1.msra.mxu0 0.0
      %2188 = vmatprep.subr.mxu0 0.0
      %2189 = vmatpush1.msra.mxu0 0.0
      %2190 = vmatprep.subr.mxu0 0.0
      %2191 = vmatpush1.msra.mxu0 0.0
      %2192 = vmatprep.subr.mxu0 0.0
      %2193 = vmatpush1.msra.mxu0 0.0
      %2194 = vmatprep.subr.mxu0 0.0
      %2195 = vmatpush1.msra.mxu0 0.0
      %2196 = vmatprep.subr.mxu0 0.0
      %2197 = vmatpush1.msra.mxu0 0.0
      %2198 = vmatprep.subr.mxu0 0.0
      %2199 = vmatpush1.msra.mxu0 0.0
      %2200 = vmatprep.subr.mxu0 0.0
      %2201 = vmatpush1.msra.mxu0 0.0
      %2202 = vmatprep.subr.mxu0 0.0
      %2203 = vmatpush1.msra.mxu0 0.0
      %2204 = vmatprep.subr.mxu0 0.0
      %2205 = vmatpush1.msra.mxu0 0.0
      %2206 = vmatprep.subr.mxu0 0.0
      %2207 = vmatpush1.msra.mxu0 0.0
      %2208 = vmatprep.subr.mxu0 0.0
      %2209 = vmatpush1.msra.mxu0 0.0
      %2210 = vmatprep.subr.mxu0 0.0
      %2211 = vmatpush1.msra.mxu0 0.0
      %2212 = vmatprep.subr.mxu0 0.0
      %2213 = vmatpush1.msra.mxu0 0.0
      %2214 = vmatprep.subr.mxu0 0.0
      %2215 = vmatpush1.msra.mxu0 0.0
      %2216 = vmatprep.subr.mxu0 0.0
      %2217 = vmatpush1.msra.mxu0 0.0
      %2218 = vmatprep.subr.mxu0 0.0
      %2219 = vmatpush1.msra.mxu0 0.0
      %2220 = vmatprep.subr.mxu0 0.0
      %2221 = vmatpush1.msra.mxu0 0.0
      %2222 = vmatprep.subr.mxu0 0.0
      %2223 = vmatpush1.msra.mxu0 0.0
      %2224 = vmatprep.subr.mxu0 0.0
      %2225 = vmatpush1.msra.mxu0 0.0
      %2226 = vmatprep.subr.mxu0 0.0
      %2227 = vmatpush1.msra.mxu0 0.0
      %2228 = vmatprep.subr.mxu0 0.0
      %2229 = vmatpush1.msra.mxu0 0.0
      %2230 = vmatprep.subr.mxu0 0.0
      %2231 = vmatpush1.msra.mxu0 0.0
      %2232 = vmatprep.subr.mxu0 0.0
      %2233 = vmatpush1.msra.mxu0 0.0
      %2234 = vmatprep.subr.mxu0 0.0
      %2235 = vmatpush1.msra.mxu0 0.0
      %2236 = vmatprep.subr.mxu0 0.0
      %2237 = vmatpush1.msra.mxu0 0.0
      %2238 = vmatprep.subr.mxu0 0.0
      %2239 = vmatpush1.msra.mxu0 0.0
      %2240 = vmatprep.subr.mxu0 0.0
      %2241 = vmatpush1.msra.mxu0 0.0
      %2242 = vmatprep.subr.mxu0 0.0
      %2243 = vmatpush1.msra.mxu0 0.0
      %2244 = vmatprep.subr.mxu0 0.0
      %2245 = vmatpush1.msra.mxu0 0.0
      %2246 = vmatprep.mubr.f32.mxu0 0.0
      %2247 = vmatmul.mubr.f32.gmra.mrb[0].mxu0 %v2180
      %v2248 = vpop.f32.mrb[0].mxu0
      %v2249 = vadd.f32 0.0, %v2248
      %v2250 = vpop.f32.mrb[0].mxu0
      %2251 = vdwg.mxu0
      %v2253 = vsel %vm1611, %v2030, 0
      %2255 = vmatprep.subr.mxu0 0.0
      %2256 = vmatpush1.msra.mxu0 %v675
      %2257 = vmatprep.subr.mxu0 0.0
      %2258 = vmatpush1.msra.mxu0 0.0
      %2259 = vmatprep.subr.mxu0 0.0
      %2260 = vmatpush1.msra.mxu0 0.0
      %2261 = vmatprep.subr.mxu0 0.0
      %2262 = vmatpush1.msra.mxu0 0.0
      %2263 = vmatprep.subr.mxu0 0.0
      %2264 = vmatpush1.msra.mxu0 0.0
      %2265 = vmatprep.subr.mxu0 0.0
      %2266 = vmatpush1.msra.mxu0 0.0
      %2267 = vmatprep.subr.mxu0 0.0
      %2268 = vmatpush1.msra.mxu0 0.0
      %2269 = vmatprep.subr.mxu0 0.0
      %2270 = vmatpush1.msra.mxu0 0.0
      %2271 = vmatprep.subr.mxu0 0.0
      %2272 = vmatpush1.msra.mxu0 0.0
      %2273 = vmatprep.subr.mxu0 0.0
      %2274 = vmatpush1.msra.mxu0 0.0
      %2275 = vmatprep.subr.mxu0 0.0
      %2276 = vmatpush1.msra.mxu0 0.0
      %2277 = vmatprep.subr.mxu0 0.0
      %2278 = vmatpush1.msra.mxu0 0.0
      %2279 = vmatprep.subr.mxu0 0.0
      %2280 = vmatpush1.msra.mxu0 0.0
      %2281 = vmatprep.subr.mxu0 0.0
      %2282 = vmatpush1.msra.mxu0 0.0
      %2283 = vmatprep.subr.mxu0 0.0
      %2284 = vmatpush1.msra.mxu0 0.0
      %2285 = vmatprep.subr.mxu0 0.0
      %2286 = vmatpush1.msra.mxu0 0.0
      %2287 = vmatprep.subr.mxu0 0.0
      %2288 = vmatpush1.msra.mxu0 0.0
      %2289 = vmatprep.subr.mxu0 0.0
      %2290 = vmatpush1.msra.mxu0 0.0
      %2291 = vmatprep.subr.mxu0 0.0
      %2292 = vmatpush1.msra.mxu0 0.0
      %2293 = vmatprep.subr.mxu0 0.0
      %2294 = vmatpush1.msra.mxu0 0.0
      %2295 = vmatprep.subr.mxu0 0.0
      %2296 = vmatpush1.msra.mxu0 0.0
      %2297 = vmatprep.subr.mxu0 0.0
      %2298 = vmatpush1.msra.mxu0 0.0
      %2299 = vmatprep.subr.mxu0 0.0
      %2300 = vmatpush1.msra.mxu0 0.0
      %2301 = vmatprep.subr.mxu0 0.0
      %2302 = vmatpush1.msra.mxu0 0.0
      %2303 = vmatprep.subr.mxu0 0.0
      %2304 = vmatpush1.msra.mxu0 0.0
      %2305 = vmatprep.subr.mxu0 0.0
      %2306 = vmatpush1.msra.mxu0 0.0
      %2307 = vmatprep.subr.mxu0 0.0
      %2308 = vmatpush1.msra.mxu0 0.0
      %2309 = vmatprep.subr.mxu0 0.0
      %2310 = vmatpush1.msra.mxu0 0.0
      %2311 = vmatprep.subr.mxu0 0.0
      %2312 = vmatpush1.msra.mxu0 0.0
      %2313 = vmatprep.subr.mxu0 0.0
      %2314 = vmatpush1.msra.mxu0 0.0
      %2315 = vmatprep.subr.mxu0 0.0
      %2316 = vmatpush1.msra.mxu0 0.0
      %2317 = vmatprep.subr.mxu0 0.0
      %2318 = vmatpush1.msra.mxu0 0.0
      %2319 = vmatprep.mubr.f32.mxu0 0.0
      %2320 = vmatmul.mubr.f32.gmra.mrb[0].mxu0 %v2253
      %v2321 = vpop.f32.mrb[0].mxu0
      %v2322 = vadd.f32 0.0, %v2321
      %v2323 = vpop.f32.mrb[0].mxu0
      %2324 = vdwg.mxu0
      %v2326 = vsel %vm1611, %v2103, 0
      %2328 = vmatprep.subr.mxu0 0.0
      %2329 = vmatpush1.msra.mxu0 %v676
      %2330 = vmatprep.subr.mxu0 0.0
      %2331 = vmatpush1.msra.mxu0 0.0
      %2332 = vmatprep.subr.mxu0 0.0
      %2333 = vmatpush1.msra.mxu0 0.0
      %2334 = vmatprep.subr.mxu0 0.0
      %2335 = vmatpush1.msra.mxu0 0.0
      %2336 = vmatprep.subr.mxu0 0.0
      %2337 = vmatpush1.msra.mxu0 0.0
      %2338 = vmatprep.subr.mxu0 0.0
      %2339 = vmatpush1.msra.mxu0 0.0
      %2340 = vmatprep.subr.mxu0 0.0
      %2341 = vmatpush1.msra.mxu0 0.0
      %2342 = vmatprep.subr.mxu0 0.0
      %2343 = vmatpush1.msra.mxu0 0.0
      %2344 = vmatprep.subr.mxu0 0.0
      %2345 = vmatpush1.msra.mxu0 0.0
      %2346 = vmatprep.subr.mxu0 0.0
      %2347 = vmatpush1.msra.mxu0 0.0
      %2348 = vmatprep.subr.mxu0 0.0
      %2349 = vmatpush1.msra.mxu0 0.0
      %2350 = vmatprep.subr.mxu0 0.0
      %2351 = vmatpush1.msra.mxu0 0.0
      %2352 = vmatprep.subr.mxu0 0.0
      %2353 = vmatpush1.msra.mxu0 0.0
      %2354 = vmatprep.subr.mxu0 0.0
      %2355 = vmatpush1.msra.mxu0 0.0
      %2356 = vmatprep.subr.mxu0 0.0
      %2357 = vmatpush1.msra.mxu0 0.0
      %2358 = vmatprep.subr.mxu0 0.0
      %2359 = vmatpush1.msra.mxu0 0.0
      %2360 = vmatprep.subr.mxu0 0.0
      %2361 = vmatpush1.msra.mxu0 0.0
      %2362 = vmatprep.subr.mxu0 0.0
      %2363 = vmatpush1.msra.mxu0 0.0
      %2364 = vmatprep.subr.mxu0 0.0
      %2365 = vmatpush1.msra.mxu0 0.0
      %2366 = vmatprep.subr.mxu0 0.0
      %2367 = vmatpush1.msra.mxu0 0.0
      %2368 = vmatprep.subr.mxu0 0.0
      %2369 = vmatpush1.msra.mxu0 0.0
      %2370 = vmatprep.subr.mxu0 0.0
      %2371 = vmatpush1.msra.mxu0 0.0
      %2372 = vmatprep.subr.mxu0 0.0
      %2373 = vmatpush1.msra.mxu0 0.0
      %2374 = vmatprep.subr.mxu0 0.0
      %2375 = vmatpush1.msra.mxu0 0.0
      %2376 = vmatprep.subr.mxu0 0.0
      %2377 = vmatpush1.msra.mxu0 0.0
      %2378 = vmatprep.subr.mxu0 0.0
      %2379 = vmatpush1.msra.mxu0 0.0
      %2380 = vmatprep.subr.mxu0 0.0
      %2381 = vmatpush1.msra.mxu0 0.0
      %2382 = vmatprep.subr.mxu0 0.0
      %2383 = vmatpush1.msra.mxu0 0.0
      %2384 = vmatprep.subr.mxu0 0.0
      %2385 = vmatpush1.msra.mxu0 0.0
      %2386 = vmatprep.subr.mxu0 0.0
      %2387 = vmatpush1.msra.mxu0 0.0
      %2388 = vmatprep.subr.mxu0 0.0
      %2389 = vmatpush1.msra.mxu0 0.0
      %2390 = vmatprep.subr.mxu0 0.0
      %2391 = vmatpush1.msra.mxu0 0.0
      %2392 = vmatprep.mubr.f32.mxu0 0.0
      %2393 = vmatmul.mubr.f32.gmra.mrb[0].mxu0 %v2326
      %v2394 = vpop.f32.mrb[0].mxu0
      %v2395 = vadd.f32 0.0, %v2394
      %v2396 = vpop.f32.mrb[0].mxu0
      %2397 = vdwg.mxu0
      %v2399 = vsel %vm1611, %v2176, 0
      %2401 = vmatprep.subr.mxu0 0.0
      %2402 = vmatpush1.msra.mxu0 %v677
      %2403 = vmatprep.subr.mxu0 0.0
      %2404 = vmatpush1.msra.mxu0 0.0
      %2405 = vmatprep.subr.mxu0 0.0
      %2406 = vmatpush1.msra.mxu0 0.0
      %2407 = vmatprep.subr.mxu0 0.0
      %2408 = vmatpush1.msra.mxu0 0.0
      %2409 = vmatprep.subr.mxu0 0.0
      %2410 = vmatpush1.msra.mxu0 0.0
      %2411 = vmatprep.subr.mxu0 0.0
      %2412 = vmatpush1.msra.mxu0 0.0
      %2413 = vmatprep.subr.mxu0 0.0
      %2414 = vmatpush1.msra.mxu0 0.0
      %2415 = vmatprep.subr.mxu0 0.0
      %2416 = vmatpush1.msra.mxu0 0.0
      %2417 = vmatprep.subr.mxu0 0.0
      %2418 = vmatpush1.msra.mxu0 0.0
      %2419 = vmatprep.subr.mxu0 0.0
      %2420 = vmatpush1.msra.mxu0 0.0
      %2421 = vmatprep.subr.mxu0 0.0
      %2422 = vmatpush1.msra.mxu0 0.0
      %2423 = vmatprep.subr.mxu0 0.0
      %2424 = vmatpush1.msra.mxu0 0.0
      %2425 = vmatprep.subr.mxu0 0.0
      %2426 = vmatpush1.msra.mxu0 0.0
      %2427 = vmatprep.subr.mxu0 0.0
      %2428 = vmatpush1.msra.mxu0 0.0
      %2429 = vmatprep.subr.mxu0 0.0
      %2430 = vmatpush1.msra.mxu0 0.0
      %2431 = vmatprep.subr.mxu0 0.0
      %2432 = vmatpush1.msra.mxu0 0.0
      %2433 = vmatprep.subr.mxu0 0.0
      %2434 = vmatpush1.msra.mxu0 0.0
      %2435 = vmatprep.subr.mxu0 0.0
      %2436 = vmatpush1.msra.mxu0 0.0
      %2437 = vmatprep.subr.mxu0 0.0
      %2438 = vmatpush1.msra.mxu0 0.0
      %2439 = vmatprep.subr.mxu0 0.0
      %2440 = vmatpush1.msra.mxu0 0.0
      %2441 = vmatprep.subr.mxu0 0.0
      %2442 = vmatpush1.msra.mxu0 0.0
      %2443 = vmatprep.subr.mxu0 0.0
      %2444 = vmatpush1.msra.mxu0 0.0
      %2445 = vmatprep.subr.mxu0 0.0
      %2446 = vmatpush1.msra.mxu0 0.0
      %2447 = vmatprep.subr.mxu0 0.0
      %2448 = vmatpush1.msra.mxu0 0.0
      %2449 = vmatprep.subr.mxu0 0.0
      %2450 = vmatpush1.msra.mxu0 0.0
      %2451 = vmatprep.subr.mxu0 0.0
      %2452 = vmatpush1.msra.mxu0 0.0
      %2453 = vmatprep.subr.mxu0 0.0
      %2454 = vmatpush1.msra.mxu0 0.0
      %2455 = vmatprep.subr.mxu0 0.0
      %2456 = vmatpush1.msra.mxu0 0.0
      %2457 = vmatprep.subr.mxu0 0.0
      %2458 = vmatpush1.msra.mxu0 0.0
      %2459 = vmatprep.subr.mxu0 0.0
      %2460 = vmatpush1.msra.mxu0 0.0
      %2461 = vmatprep.subr.mxu0 0.0
      %2462 = vmatpush1.msra.mxu0 0.0
      %2463 = vmatprep.subr.mxu0 0.0
      %2464 = vmatpush1.msra.mxu0 0.0
      %2465 = vmatprep.mubr.f32.mxu0 0.0
      %2466 = vmatmul.mubr.f32.gmra.mrb[0].mxu0 %v2399
      %v2467 = vpop.f32.mrb[0].mxu0
      %v2468 = vadd.f32 0.0, %v2467
      %v2469 = vpop.f32.mrb[0].mxu0
      %2470 = vdwg.mxu0
      %v2472 = vsel %vm1611, %v2249, 0
      %2474 = vmatprep.subr.mxu0 0.0
      %2475 = vmatpush1.msra.mxu0 %v678
      %2476 = vmatprep.subr.mxu0 0.0
      %2477 = vmatpush1.msra.mxu0 0.0
      %2478 = vmatprep.subr.mxu0 0.0
      %2479 = vmatpush1.msra.mxu0 0.0
      %2480 = vmatprep.subr.mxu0 0.0
      %2481 = vmatpush1.msra.mxu0 0.0
      %2482 = vmatprep.subr.mxu0 0.0
      %2483 = vmatpush1.msra.mxu0 0.0
      %2484 = vmatprep.subr.mxu0 0.0
      %2485 = vmatpush1.msra.mxu0 0.0
      %2486 = vmatprep.subr.mxu0 0.0
      %2487 = vmatpush1.msra.mxu0 0.0
      %2488 = vmatprep.subr.mxu0 0.0
      %2489 = vmatpush1.msra.mxu0 0.0
      %2490 = vmatprep.subr.mxu0 0.0
      %2491 = vmatpush1.msra.mxu0 0.0
      %2492 = vmatprep.subr.mxu0 0.0
      %2493 = vmatpush1.msra.mxu0 0.0
      %2494 = vmatprep.subr.mxu0 0.0
      %2495 = vmatpush1.msra.mxu0 0.0
      %2496 = vmatprep.subr.mxu0 0.0
      %2497 = vmatpush1.msra.mxu0 0.0
      %2498 = vmatprep.subr.mxu0 0.0
      %2499 = vmatpush1.msra.mxu0 0.0
      %2500 = vmatprep.subr.mxu0 0.0
      %2501 = vmatpush1.msra.mxu0 0.0
      %2502 = vmatprep.subr.mxu0 0.0
      %2503 = vmatpush1.msra.mxu0 0.0
      %2504 = vmatprep.subr.mxu0 0.0
      %2505 = vmatpush1.msra.mxu0 0.0
      %2506 = vmatprep.subr.mxu0 0.0
      %2507 = vmatpush1.msra.mxu0 0.0
      %2508 = vmatprep.subr.mxu0 0.0
      %2509 = vmatpush1.msra.mxu0 0.0
      %2510 = vmatprep.subr.mxu0 0.0
      %2511 = vmatpush1.msra.mxu0 0.0
      %2512 = vmatprep.subr.mxu0 0.0
      %2513 = vmatpush1.msra.mxu0 0.0
      %2514 = vmatprep.subr.mxu0 0.0
      %2515 = vmatpush1.msra.mxu0 0.0
      %2516 = vmatprep.subr.mxu0 0.0
      %2517 = vmatpush1.msra.mxu0 0.0
      %2518 = vmatprep.subr.mxu0 0.0
      %2519 = vmatpush1.msra.mxu0 0.0
      %2520 = vmatprep.subr.mxu0 0.0
      %2521 = vmatpush1.msra.mxu0 0.0
      %2522 = vmatprep.subr.mxu0 0.0
      %2523 = vmatpush1.msra.mxu0 0.0
      %2524 = vmatprep.subr.mxu0 0.0
      %2525 = vmatpush1.msra.mxu0 0.0
      %2526 = vmatprep.subr.mxu0 0.0
      %2527 = vmatpush1.msra.mxu0 0.0
      %2528 = vmatprep.subr.mxu0 0.0
      %2529 = vmatpush1.msra.mxu0 0.0
      %2530 = vmatprep.subr.mxu0 0.0
      %2531 = vmatpush1.msra.mxu0 0.0
      %2532 = vmatprep.subr.mxu0 0.0
      %2533 = vmatpush1.msra.mxu0 0.0
      %2534 = vmatprep.subr.mxu0 0.0
      %2535 = vmatpush1.msra.mxu0 0.0
      %2536 = vmatprep.subr.mxu0 0.0
      %2537 = vmatpush1.msra.mxu0 0.0
      %2538 = vmatprep.mubr.f32.mxu0 0.0
      %2539 = vmatmul.mubr.f32.gmra.mrb[0].mxu0 %v2472
      %v2540 = vpop.f32.mrb[0].mxu0
      %v2541 = vadd.f32 0.0, %v2540
      %v2542 = vpop.f32.mrb[0].mxu0
      %2543 = vdwg.mxu0
      %v2544 = vsel %vm715, %v2322, 0.0
      %v2545 = vsel %vm715, %v2395, 0.0
      %v2546 = vadd.f32 %v2544, %v2545
      %v2547 = vsel %vm715, %v2468, 0.0
      %v2548 = vadd.f32 %v2546, %v2547
      %v2549 = vsel %vm715, %v2541, 0.0
      %v2550 = vadd.f32 %v2548, %v2549
      %v2551 = vld [vmem:[%s8] sm:$0x1]
      %v2553 = vlaneseq
      %v2554 = vshrl.u32 %v2553, 7
      %v2555 = vsub.s32 0, %v2554
      %v2556 = vrot.slane %v2551, %v2555
      %v2558 = vadd.f32 %v2550, %v2556
      %v2559 = vadd.f32 %v626, %v2558
      %v2560 = vld [vmem:[%s9] sm:$0x1]
      %v2561 = vld [vmem:[%s10] sm:$0x1]
      %v2562 = vsel %vm715, %v2559, 0.0
      %2563 = vadd.xlane.f32.xlu0 %v2562
      %v2564 = vpop.xlane.xlu0 %2563
      %v2565 = vrcp.pop 32.0
      %v2566 = vmul.f32 %v2564, %v2565
      %v2567 = vsub.f32 %v2559, %v2566
      %v2568 = vmul.f32 %v2567, %v2567
      %v2569 = vsel %vm715, %v2568, 0.0
      %2570 = vadd.xlane.f32.xlu0 %v2569
      %v2571 = vpop.xlane.xlu0 %2570
      %v2572 = vmul.f32 %v2571, %v2565
      %v2573 = vadd.f32 %v2572, 1e-05
      %v2574 = vrsqrt.pop %v2573
      %v2575 = vmul.f32 %v2567, %v2574
      %v2577 = vlaneseq
      %v2578 = vshrl.u32 %v2577, 7
      %v2579 = vsub.s32 0, %v2578
      %v2580 = vrot.slane %v2560, %v2579
      %v2582 = vmul.f32 %v2575, %v2580
      %v2584 = vlaneseq
      %v2585 = vshrl.u32 %v2584, 7
      %v2586 = vsub.s32 0, %v2585
      %v2587 = vrot.slane %v2561, %v2586
      %v2589 = vadd.f32 %v2582, %v2587
      %v2590 = vpack.c.bf16 %v2589, %v2589
      %v2591 = vld [vmem:[%s11] sm:$0xff]
      %v2592 = vld [vmem:[%s11 + $0x8] sm:$0xff]
      %v2593 = vld [vmem:[%s11 + $0x10] sm:$0xff]
      %v2594 = vld [vmem:[%s11 + $0x18] sm:$0xff]
      %v2595 = vld [vmem:[%s11 + $0x20] sm:$0xff]
      %v2596 = vld [vmem:[%s11 + $0x28] sm:$0xff]
      %v2597 = vld [vmem:[%s11 + $0x30] sm:$0xff]
      %v2598 = vld [vmem:[%s11 + $0x38] sm:$0xff]
      %v2599 = vld [vmem:[%s11 + $0x40] sm:$0xff]
      %v2600 = vld [vmem:[%s11 + $0x48] sm:$0xff]
      %v2601 = vld [vmem:[%s11 + $0x50] sm:$0xff]
      %v2602 = vld [vmem:[%s11 + $0x58] sm:$0xff]
      %v2603 = vld [vmem:[%s11 + $0x60] sm:$0xff]
      %v2604 = vld [vmem:[%s11 + $0x68] sm:$0xff]
      %v2605 = vld [vmem:[%s11 + $0x70] sm:$0xff]
      %v2606 = vld [vmem:[%s11 + $0x78] sm:$0xff]
      %v2607 = vld [vmem:[%s11 + $0x80] sm:$0xff]
      %v2608 = vld [vmem:[%s11 + $0x88] sm:$0xff]
      %v2609 = vld [vmem:[%s11 + $0x90] sm:$0xff]
      %v2610 = vld [vmem:[%s11 + $0x98] sm:$0xff]
      %v2611 = vld [vmem:[%s11 + $0xa0] sm:$0xff]
      %v2612 = vld [vmem:[%s11 + $0xa8] sm:$0xff]
      %v2613 = vld [vmem:[%s11 + $0xb0] sm:$0xff]
      %v2614 = vld [vmem:[%s11 + $0xb8] sm:$0xff]
      %v2615 = vld [vmem:[%s11 + $0xc0] sm:$0xff]
      %v2616 = vld [vmem:[%s11 + $0xc8] sm:$0xff]
      %v2617 = vld [vmem:[%s11 + $0xd0] sm:$0xff]
      %v2618 = vld [vmem:[%s11 + $0xd8] sm:$0xff]
      %v2619 = vld [vmem:[%s11 + $0xe0] sm:$0xff]
      %v2620 = vld [vmem:[%s11 + $0xe8] sm:$0xff]
      %v2621 = vld [vmem:[%s11 + $0xf0] sm:$0xff]
      %v2622 = vld [vmem:[%s11 + $0xf8] sm:$0xff]
      %v2623 = vld [vmem:[%s12] sm:$0xff]
      %v2624 = vld [vmem:[%s12 + $0x8] sm:$0xff]
      %v2627 = vlaneseq
      %v2628 = vshrl.u32 %v2627, 7
      %v2629 = vsub.s32 0, %v2628
      %v2630 = vrot.slane %v2623, %v2629
      %v2631 = vlaneseq
      %v2632 = vshrl.u32 %v2631, 7
      %v2633 = vsub.s32 1, %v2632
      %v2634 = vrot.slane %v2623, %v2633
      %v2635 = vlaneseq
      %v2636 = vshrl.u32 %v2635, 7
      %v2637 = vsub.s32 2, %v2636
      %v2638 = vrot.slane %v2623, %v2637
      %v2639 = vlaneseq
      %v2640 = vshrl.u32 %v2639, 7
      %v2641 = vsub.s32 3, %v2640
      %v2642 = vrot.slane %v2623, %v2641
      %v2643 = vlaneseq
      %v2644 = vshrl.u32 %v2643, 7
      %v2645 = vsub.s32 4, %v2644
      %v2646 = vrot.slane %v2623, %v2645
      %v2647 = vlaneseq
      %v2648 = vshrl.u32 %v2647, 7
      %v2649 = vsub.s32 5, %v2648
      %v2650 = vrot.slane %v2623, %v2649
      %v2651 = vlaneseq
      %v2652 = vshrl.u32 %v2651, 7
      %v2653 = vsub.s32 6, %v2652
      %v2654 = vrot.slane %v2623, %v2653
      %v2655 = vlaneseq
      %v2656 = vshrl.u32 %v2655, 7
      %v2657 = vsub.s32 7, %v2656
      %v2658 = vrot.slane %v2623, %v2657
      %v2659 = vlaneseq
      %v2660 = vshrl.u32 %v2659, 7
      %v2661 = vsub.s32 0, %v2660
      %v2662 = vrot.slane %v2624, %v2661
      %v2663 = vlaneseq
      %v2664 = vshrl.u32 %v2663, 7
      %v2665 = vsub.s32 1, %v2664
      %v2666 = vrot.slane %v2624, %v2665
      %v2667 = vlaneseq
      %v2668 = vshrl.u32 %v2667, 7
      %v2669 = vsub.s32 2, %v2668
      %v2670 = vrot.slane %v2624, %v2669
      %v2671 = vlaneseq
      %v2672 = vshrl.u32 %v2671, 7
      %v2673 = vsub.s32 3, %v2672
      %v2674 = vrot.slane %v2624, %v2673
      %v2675 = vlaneseq
      %v2676 = vshrl.u32 %v2675, 7
      %v2677 = vsub.s32 4, %v2676
      %v2678 = vrot.slane %v2624, %v2677
      %v2679 = vlaneseq
      %v2680 = vshrl.u32 %v2679, 7
      %v2681 = vsub.s32 5, %v2680
      %v2682 = vrot.slane %v2624, %v2681
      %v2683 = vlaneseq
      %v2684 = vshrl.u32 %v2683, 7
      %v2685 = vsub.s32 6, %v2684
      %v2686 = vrot.slane %v2624, %v2685
      %v2687 = vlaneseq
      %v2688 = vshrl.u32 %v2687, 7
      %v2689 = vsub.s32 7, %v2688
      %v2690 = vrot.slane %v2624, %v2689
      %v2739 = vunpack.c.l.b16 %v2591
      %v2740 = vunpack.c.h.b16 %v2591
      %v2741 = vunpack.c.l.b16 %v2592
      %v2742 = vunpack.c.h.b16 %v2592
      %v2743 = vunpack.c.l.b16 %v2593
      %v2744 = vunpack.c.h.b16 %v2593
      %v2745 = vunpack.c.l.b16 %v2594
      %v2746 = vunpack.c.h.b16 %v2594
      %v2747 = vunpack.c.l.b16 %v2595
      %v2748 = vunpack.c.h.b16 %v2595
      %v2749 = vunpack.c.l.b16 %v2596
      %v2750 = vunpack.c.h.b16 %v2596
      %v2751 = vunpack.c.l.b16 %v2597
      %v2752 = vunpack.c.h.b16 %v2597
      %v2753 = vunpack.c.l.b16 %v2598
      %v2754 = vunpack.c.h.b16 %v2598
      %v2755 = vunpack.c.l.b16 %v2599
      %v2756 = vunpack.c.h.b16 %v2599
      %v2757 = vunpack.c.l.b16 %v2600
      %v2758 = vunpack.c.h.b16 %v2600
      %v2759 = vunpack.c.l.b16 %v2601
      %v2760 = vunpack.c.h.b16 %v2601
      %v2761 = vunpack.c.l.b16 %v2602
      %v2762 = vunpack.c.h.b16 %v2602
      %v2763 = vunpack.c.l.b16 %v2603
      %v2764 = vunpack.c.h.b16 %v2603
      %v2765 = vunpack.c.l.b16 %v2604
      %v2766 = vunpack.c.h.b16 %v2604
      %v2767 = vunpack.c.l.b16 %v2605
      %v2768 = vunpack.c.h.b16 %v2605
      %v2769 = vunpack.c.l.b16 %v2606
      %v2770 = vunpack.c.h.b16 %v2606
      %v2771 = vunpack.c.l.b16 %v2607
      %v2772 = vunpack.c.h.b16 %v2607
      %v2773 = vunpack.c.l.b16 %v2608
      %v2774 = vunpack.c.h.b16 %v2608
      %v2775 = vunpack.c.l.b16 %v2609
      %v2776 = vunpack.c.h.b16 %v2609
      %v2777 = vunpack.c.l.b16 %v2610
      %v2778 = vunpack.c.h.b16 %v2610
      %v2779 = vunpack.c.l.b16 %v2611
      %v2780 = vunpack.c.h.b16 %v2611
      %v2781 = vunpack.c.l.b16 %v2612
      %v2782 = vunpack.c.h.b16 %v2612
      %v2783 = vunpack.c.l.b16 %v2613
      %v2784 = vunpack.c.h.b16 %v2613
      %v2785 = vunpack.c.l.b16 %v2614
      %v2786 = vunpack.c.h.b16 %v2614
      %v2787 = vunpack.c.l.b16 %v2615
      %v2788 = vunpack.c.h.b16 %v2615
      %v2789 = vunpack.c.l.b16 %v2616
      %v2790 = vunpack.c.h.b16 %v2616
      %v2791 = vunpack.c.l.b16 %v2617
      %v2792 = vunpack.c.h.b16 %v2617
      %v2793 = vunpack.c.l.b16 %v2618
      %v2794 = vunpack.c.h.b16 %v2618
      %v2795 = vunpack.c.l.b16 %v2619
      %v2796 = vunpack.c.h.b16 %v2619
      %v2797 = vunpack.c.l.b16 %v2620
      %v2798 = vunpack.c.h.b16 %v2620
      %v2799 = vunpack.c.l.b16 %v2621
      %v2800 = vunpack.c.h.b16 %v2621
      %v2801 = vunpack.c.l.b16 %v2622
      %v2802 = vunpack.c.h.b16 %v2622
      %v2803 = vpack.c.b16 %v2755, %v2739
      %v2804 = vpack.c.b16 %v2756, %v2740
      %v2805 = vpack.c.b16 %v2757, %v2741
      %v2806 = vpack.c.b16 %v2758, %v2742
      %v2807 = vpack.c.b16 %v2759, %v2743
      %v2808 = vpack.c.b16 %v2760, %v2744
      %v2809 = vpack.c.b16 %v2761, %v2745
      %v2810 = vpack.c.b16 %v2762, %v2746
      %v2811 = vpack.c.b16 %v2763, %v2747
      %v2812 = vpack.c.b16 %v2764, %v2748
      %v2813 = vpack.c.b16 %v2765, %v2749
      %v2814 = vpack.c.b16 %v2766, %v2750
      %v2815 = vpack.c.b16 %v2767, %v2751
      %v2816 = vpack.c.b16 %v2768, %v2752
      %v2817 = vpack.c.b16 %v2769, %v2753
      %v2818 = vpack.c.b16 %v2770, %v2754
      %v2819 = vpack.c.b16 %v2787, %v2771
      %v2820 = vpack.c.b16 %v2788, %v2772
      %v2821 = vpack.c.b16 %v2789, %v2773
      %v2822 = vpack.c.b16 %v2790, %v2774
      %v2823 = vpack.c.b16 %v2791, %v2775
      %v2824 = vpack.c.b16 %v2792, %v2776
      %v2825 = vpack.c.b16 %v2793, %v2777
      %v2826 = vpack.c.b16 %v2794, %v2778
      %v2827 = vpack.c.b16 %v2795, %v2779
      %v2828 = vpack.c.b16 %v2796, %v2780
      %v2829 = vpack.c.b16 %v2797, %v2781
      %v2830 = vpack.c.b16 %v2798, %v2782
      %v2831 = vpack.c.b16 %v2799, %v2783
      %v2832 = vpack.c.b16 %v2800, %v2784
      %v2833 = vpack.c.b16 %v2801, %v2785
      %v2834 = vpack.c.b16 %v2802, %v2786
      %v2868 = vsel %vm715, %v2590, 0
      %2870 = vmatprep.subr.bf16.mxu0 %v2804
      %2871 = vmatpush1.bf16.msra.mxu0 %v2803
      %2872 = vmatprep.subr.bf16.mxu0 %v2820
      %2873 = vmatpush1.bf16.msra.mxu0 %v2819
      %2874 = vmatprep.subr.bf16.mxu0 0
      %2875 = vmatpush1.bf16.msra.mxu0 0
      %2876 = vmatprep.subr.bf16.mxu0 0
      %2877 = vmatpush1.bf16.msra.mxu0 0
      %2878 = vmatprep.subr.bf16.mxu0 0
      %2879 = vmatpush1.bf16.msra.mxu0 0
      %2880 = vmatprep.subr.bf16.mxu0 0
      %2881 = vmatpush1.bf16.msra.mxu0 0
      %2882 = vmatprep.subr.bf16.mxu0 0
      %2883 = vmatpush1.bf16.msra.mxu0 0
      %2884 = vmatprep.subr.bf16.mxu0 0
      %2885 = vmatpush1.bf16.msra.mxu0 0
      %2886 = vmatprep.subr.bf16.mxu0 0
      %2887 = vmatpush1.bf16.msra.mxu0 0
      %2888 = vmatprep.subr.bf16.mxu0 0
      %2889 = vmatpush1.bf16.msra.mxu0 0
      %2890 = vmatprep.subr.bf16.mxu0 0
      %2891 = vmatpush1.bf16.msra.mxu0 0
      %2892 = vmatprep.subr.bf16.mxu0 0
      %2893 = vmatpush1.bf16.msra.mxu0 0
      %2894 = vmatprep.subr.bf16.mxu0 0
      %2895 = vmatpush1.bf16.msra.mxu0 0
      %2896 = vmatprep.subr.bf16.mxu0 0
      %2897 = vmatpush1.bf16.msra.mxu0 0
      %2898 = vmatprep.subr.bf16.mxu0 0
      %2899 = vmatpush1.bf16.msra.mxu0 0
      %2900 = vmatprep.subr.bf16.mxu0 0
      %2901 = vmatpush1.bf16.msra.mxu0 0
      %2902 = vmatprep.mubr.bf16.mxu0 0
      %2903 = vmatmul.mubr.bf16.gmra.mrb[0].mxu0 %v2868
      %v2904 = vpop.f32.mrb[0].mxu0
      %v2905 = vadd.f32 %v2630, %v2904
      %v2906 = vpop.f32.mrb[0].mxu0
      %v2907 = vadd.f32 %v2634, %v2906
      %v2908 = vpop.f32.mrb[0].mxu0
      %v2909 = vpop.f32.mrb[0].mxu0
      %2910 = vdwg.mxu0
      %2911 = vmatprep.subr.bf16.mxu0 %v2806
      %2912 = vmatpush1.bf16.msra.mxu0 %v2805
      %2913 = vmatprep.subr.bf16.mxu0 %v2822
      %2914 = vmatpush1.bf16.msra.mxu0 %v2821
      %2915 = vmatprep.subr.bf16.mxu0 0
      %2916 = vmatpush1.bf16.msra.mxu0 0
      %2917 = vmatprep.subr.bf16.mxu0 0
      %2918 = vmatpush1.bf16.msra.mxu0 0
      %2919 = vmatprep.subr.bf16.mxu0 0
      %2920 = vmatpush1.bf16.msra.mxu0 0
      %2921 = vmatprep.subr.bf16.mxu0 0
      %2922 = vmatpush1.bf16.msra.mxu0 0
      %2923 = vmatprep.subr.bf16.mxu0 0
      %2924 = vmatpush1.bf16.msra.mxu0 0
      %2925 = vmatprep.subr.bf16.mxu0 0
      %2926 = vmatpush1.bf16.msra.mxu0 0
      %2927 = vmatprep.subr.bf16.mxu0 0
      %2928 = vmatpush1.bf16.msra.mxu0 0
      %2929 = vmatprep.subr.bf16.mxu0 0
      %2930 = vmatpush1.bf16.msra.mxu0 0
      %2931 = vmatprep.subr.bf16.mxu0 0
      %2932 = vmatpush1.bf16.msra.mxu0 0
      %2933 = vmatprep.subr.bf16.mxu0 0
      %2934 = vmatpush1.bf16.msra.mxu0 0
      %2935 = vmatprep.subr.bf16.mxu0 0
      %2936 = vmatpush1.bf16.msra.mxu0 0
      %2937 = vmatprep.subr.bf16.mxu0 0
      %2938 = vmatpush1.bf16.msra.mxu0 0
      %2939 = vmatprep.subr.bf16.mxu0 0
      %2940 = vmatpush1.bf16.msra.mxu0 0
      %2941 = vmatprep.subr.bf16.mxu0 0
      %2942 = vmatpush1.bf16.msra.mxu0 0
      %2943 = vmatprep.mubr.bf16.mxu0 0
      %2944 = vmatmul.mubr.bf16.gmra.mrb[0].mxu0 %v2868
      %v2945 = vpop.f32.mrb[0].mxu0
      %v2946 = vadd.f32 %v2638, %v2945
      %v2947 = vpop.f32.mrb[0].mxu0
      %v2948 = vadd.f32 %v2642, %v2947
      %v2949 = vpop.f32.mrb[0].mxu0
      %v2950 = vpop.f32.mrb[0].mxu0
      %2951 = vdwg.mxu0
      %2952 = vmatprep.subr.bf16.mxu0 %v2808
      %2953 = vmatpush1.bf16.msra.mxu0 %v2807
      %2954 = vmatprep.subr.bf16.mxu0 %v2824
      %2955 = vmatpush1.bf16.msra.mxu0 %v2823
      %2956 = vmatprep.subr.bf16.mxu0 0
      %2957 = vmatpush1.bf16.msra.mxu0 0
      %2958 = vmatprep.subr.bf16.mxu0 0
      %2959 = vmatpush1.bf16.msra.mxu0 0
      %2960 = vmatprep.subr.bf16.mxu0 0
      %2961 = vmatpush1.bf16.msra.mxu0 0
      %2962 = vmatprep.subr.bf16.mxu0 0
      %2963 = vmatpush1.bf16.msra.mxu0 0
      %2964 = vmatprep.subr.bf16.mxu0 0
      %2965 = vmatpush1.bf16.msra.mxu0 0
      %2966 = vmatprep.subr.bf16.mxu0 0
      %2967 = vmatpush1.bf16.msra.mxu0 0
      %2968 = vmatprep.subr.bf16.mxu0 0
      %2969 = vmatpush1.bf16.msra.mxu0 0
      %2970 = vmatprep.subr.bf16.mxu0 0
      %2971 = vmatpush1.bf16.msra.mxu0 0
      %2972 = vmatprep.subr.bf16.mxu0 0
      %2973 = vmatpush1.bf16.msra.mxu0 0
      %2974 = vmatprep.subr.bf16.mxu0 0
      %2975 = vmatpush1.bf16.msra.mxu0 0
      %2976 = vmatprep.subr.bf16.mxu0 0
      %2977 = vmatpush1.bf16.msra.mxu0 0
      %2978 = vmatprep.subr.bf16.mxu0 0
      %2979 = vmatpush1.bf16.msra.mxu0 0
      %2980 = vmatprep.subr.bf16.mxu0 0
      %2981 = vmatpush1.bf16.msra.mxu0 0
      %2982 = vmatprep.subr.bf16.mxu0 0
      %2983 = vmatpush1.bf16.msra.mxu0 0
      %2984 = vmatprep.mubr.bf16.mxu0 0
      %2985 = vmatmul.mubr.bf16.gmra.mrb[0].mxu0 %v2868
      %v2986 = vpop.f32.mrb[0].mxu0
      %v2987 = vadd.f32 %v2646, %v2986
      %v2988 = vpop.f32.mrb[0].mxu0
      %v2989 = vadd.f32 %v2650, %v2988
      %v2990 = vpop.f32.mrb[0].mxu0
      %v2991 = vpop.f32.mrb[0].mxu0
      %2992 = vdwg.mxu0
      %2993 = vmatprep.subr.bf16.mxu0 %v2810
      %2994 = vmatpush1.bf16.msra.mxu0 %v2809
      %2995 = vmatprep.subr.bf16.mxu0 %v2826
      %2996 = vmatpush1.bf16.msra.mxu0 %v2825
      %2997 = vmatprep.subr.bf16.mxu0 0
      %2998 = vmatpush1.bf16.msra.mxu0 0
      %2999 = vmatprep.subr.bf16.mxu0 0
      %3000 = vmatpush1.bf16.msra.mxu0 0
      %3001 = vmatprep.subr.bf16.mxu0 0
      %3002 = vmatpush1.bf16.msra.mxu0 0
      %3003 = vmatprep.subr.bf16.mxu0 0
      %3004 = vmatpush1.bf16.msra.mxu0 0
      %3005 = vmatprep.subr.bf16.mxu0 0
      %3006 = vmatpush1.bf16.msra.mxu0 0
      %3007 = vmatprep.subr.bf16.mxu0 0
      %3008 = vmatpush1.bf16.msra.mxu0 0
      %3009 = vmatprep.subr.bf16.mxu0 0
      %3010 = vmatpush1.bf16.msra.mxu0 0
      %3011 = vmatprep.subr.bf16.mxu0 0
      %3012 = vmatpush1.bf16.msra.mxu0 0
      %3013 = vmatprep.subr.bf16.mxu0 0
      %3014 = vmatpush1.bf16.msra.mxu0 0
      %3015 = vmatprep.subr.bf16.mxu0 0
      %3016 = vmatpush1.bf16.msra.mxu0 0
      %3017 = vmatprep.subr.bf16.mxu0 0
      %3018 = vmatpush1.bf16.msra.mxu0 0
      %3019 = vmatprep.subr.bf16.mxu0 0
      %3020 = vmatpush1.bf16.msra.mxu0 0
      %3021 = vmatprep.subr.bf16.mxu0 0
      %3022 = vmatpush1.bf16.msra.mxu0 0
      %3023 = vmatprep.subr.bf16.mxu0 0
      %3024 = vmatpush1.bf16.msra.mxu0 0
      %3025 = vmatprep.mubr.bf16.mxu0 0
      %3026 = vmatmul.mubr.bf16.gmra.mrb[0].mxu0 %v2868
      %v3027 = vpop.f32.mrb[0].mxu0
      %v3028 = vadd.f32 %v2654, %v3027
      %v3029 = vpop.f32.mrb[0].mxu0
      %v3030 = vadd.f32 %v2658, %v3029
      %v3031 = vpop.f32.mrb[0].mxu0
      %v3032 = vpop.f32.mrb[0].mxu0
      %3033 = vdwg.mxu0
      %3034 = vmatprep.subr.bf16.mxu0 %v2812
      %3035 = vmatpush1.bf16.msra.mxu0 %v2811
      %3036 = vmatprep.subr.bf16.mxu0 %v2828
      %3037 = vmatpush1.bf16.msra.mxu0 %v2827
      %3038 = vmatprep.subr.bf16.mxu0 0
      %3039 = vmatpush1.bf16.msra.mxu0 0
      %3040 = vmatprep.subr.bf16.mxu0 0
      %3041 = vmatpush1.bf16.msra.mxu0 0
      %3042 = vmatprep.subr.bf16.mxu0 0
      %3043 = vmatpush1.bf16.msra.mxu0 0
      %3044 = vmatprep.subr.bf16.mxu0 0
      %3045 = vmatpush1.bf16.msra.mxu0 0
      %3046 = vmatprep.subr.bf16.mxu0 0
      %3047 = vmatpush1.bf16.msra.mxu0 0
      %3048 = vmatprep.subr.bf16.mxu0 0
      %3049 = vmatpush1.bf16.msra.mxu0 0
      %3050 = vmatprep.subr.bf16.mxu0 0
      %3051 = vmatpush1.bf16.msra.mxu0 0
      %3052 = vmatprep.subr.bf16.mxu0 0
      %3053 = vmatpush1.bf16.msra.mxu0 0
      %3054 = vmatprep.subr.bf16.mxu0 0
      %3055 = vmatpush1.bf16.msra.mxu0 0
      %3056 = vmatprep.subr.bf16.mxu0 0
      %3057 = vmatpush1.bf16.msra.mxu0 0
      %3058 = vmatprep.subr.bf16.mxu0 0
      %3059 = vmatpush1.bf16.msra.mxu0 0
      %3060 = vmatprep.subr.bf16.mxu0 0
      %3061 = vmatpush1.bf16.msra.mxu0 0
      %3062 = vmatprep.subr.bf16.mxu0 0
      %3063 = vmatpush1.bf16.msra.mxu0 0
      %3064 = vmatprep.subr.bf16.mxu0 0
      %3065 = vmatpush1.bf16.msra.mxu0 0
      %3066 = vmatprep.mubr.bf16.mxu0 0
      %3067 = vmatmul.mubr.bf16.gmra.mrb[0].mxu0 %v2868
      %v3068 = vpop.f32.mrb[0].mxu0
      %v3069 = vadd.f32 %v2662, %v3068
      %v3070 = vpop.f32.mrb[0].mxu0
      %v3071 = vadd.f32 %v2666, %v3070
      %v3072 = vpop.f32.mrb[0].mxu0
      %v3073 = vpop.f32.mrb[0].mxu0
      %3074 = vdwg.mxu0
      %3075 = vmatprep.subr.bf16.mxu0 %v2814
      %3076 = vmatpush1.bf16.msra.mxu0 %v2813
      %3077 = vmatprep.subr.bf16.mxu0 %v2830
      %3078 = vmatpush1.bf16.msra.mxu0 %v2829
      %3079 = vmatprep.subr.bf16.mxu0 0
      %3080 = vmatpush1.bf16.msra.mxu0 0
      %3081 = vmatprep.subr.bf16.mxu0 0
      %3082 = vmatpush1.bf16.msra.mxu0 0
      %3083 = vmatprep.subr.bf16.mxu0 0
      %3084 = vmatpush1.bf16.msra.mxu0 0
      %3085 = vmatprep.subr.bf16.mxu0 0
      %3086 = vmatpush1.bf16.msra.mxu0 0
      %3087 = vmatprep.subr.bf16.mxu0 0
      %3088 = vmatpush1.bf16.msra.mxu0 0
      %3089 = vmatprep.subr.bf16.mxu0 0
      %3090 = vmatpush1.bf16.msra.mxu0 0
      %3091 = vmatprep.subr.bf16.mxu0 0
      %3092 = vmatpush1.bf16.msra.mxu0 0
      %3093 = vmatprep.subr.bf16.mxu0 0
      %3094 = vmatpush1.bf16.msra.mxu0 0
      %3095 = vmatprep.subr.bf16.mxu0 0
      %3096 = vmatpush1.bf16.msra.mxu0 0
      %3097 = vmatprep.subr.bf16.mxu0 0
      %3098 = vmatpush1.bf16.msra.mxu0 0
      %3099 = vmatprep.subr.bf16.mxu0 0
      %3100 = vmatpush1.bf16.msra.mxu0 0
      %3101 = vmatprep.subr.bf16.mxu0 0
      %3102 = vmatpush1.bf16.msra.mxu0 0
      %3103 = vmatprep.subr.bf16.mxu0 0
      %3104 = vmatpush1.bf16.msra.mxu0 0
      %3105 = vmatprep.subr.bf16.mxu0 0
      %3106 = vmatpush1.bf16.msra.mxu0 0
      %3107 = vmatprep.mubr.bf16.mxu0 0
      %3108 = vmatmul.mubr.bf16.gmra.mrb[0].mxu0 %v2868
      %v3109 = vpop.f32.mrb[0].mxu0
      %v3110 = vadd.f32 %v2670, %v3109
      %v3111 = vpop.f32.mrb[0].mxu0
      %v3112 = vadd.f32 %v2674, %v3111
      %v3113 = vpop.f32.mrb[0].mxu0
      %v3114 = vpop.f32.mrb[0].mxu0
      %3115 = vdwg.mxu0
      %3116 = vmatprep.subr.bf16.mxu0 %v2816
      %3117 = vmatpush1.bf16.msra.mxu0 %v2815
      %3118 = vmatprep.subr.bf16.mxu0 %v2832
      %3119 = vmatpush1.bf16.msra.mxu0 %v2831
      %3120 = vmatprep.subr.bf16.mxu0 0
      %3121 = vmatpush1.bf16.msra.mxu0 0
      %3122 = vmatprep.subr.bf16.mxu0 0
      %3123 = vmatpush1.bf16.msra.mxu0 0
      %3124 = vmatprep.subr.bf16.mxu0 0
      %3125 = vmatpush1.bf16.msra.mxu0 0
      %3126 = vmatprep.subr.bf16.mxu0 0
      %3127 = vmatpush1.bf16.msra.mxu0 0
      %3128 = vmatprep.subr.bf16.mxu0 0
      %3129 = vmatpush1.bf16.msra.mxu0 0
      %3130 = vmatprep.subr.bf16.mxu0 0
      %3131 = vmatpush1.bf16.msra.mxu0 0
      %3132 = vmatprep.subr.bf16.mxu0 0
      %3133 = vmatpush1.bf16.msra.mxu0 0
      %3134 = vmatprep.subr.bf16.mxu0 0
      %3135 = vmatpush1.bf16.msra.mxu0 0
      %3136 = vmatprep.subr.bf16.mxu0 0
      %3137 = vmatpush1.bf16.msra.mxu0 0
      %3138 = vmatprep.subr.bf16.mxu0 0
      %3139 = vmatpush1.bf16.msra.mxu0 0
      %3140 = vmatprep.subr.bf16.mxu0 0
      %3141 = vmatpush1.bf16.msra.mxu0 0
      %3142 = vmatprep.subr.bf16.mxu0 0
      %3143 = vmatpush1.bf16.msra.mxu0 0
      %3144 = vmatprep.subr.bf16.mxu0 0
      %3145 = vmatpush1.bf16.msra.mxu0 0
      %3146 = vmatprep.subr.bf16.mxu0 0
      %3147 = vmatpush1.bf16.msra.mxu0 0
      %3148 = vmatprep.mubr.bf16.mxu0 0
      %3149 = vmatmul.mubr.bf16.gmra.mrb[0].mxu0 %v2868
      %v3150 = vpop.f32.mrb[0].mxu0
      %v3151 = vadd.f32 %v2678, %v3150
      %v3152 = vpop.f32.mrb[0].mxu0
      %v3153 = vadd.f32 %v2682, %v3152
      %v3154 = vpop.f32.mrb[0].mxu0
      %v3155 = vpop.f32.mrb[0].mxu0
      %3156 = vdwg.mxu0
      %3157 = vmatprep.subr.bf16.mxu0 %v2818
      %3158 = vmatpush1.bf16.msra.mxu0 %v2817
      %3159 = vmatprep.subr.bf16.mxu0 %v2834
      %3160 = vmatpush1.bf16.msra.mxu0 %v2833
      %3161 = vmatprep.subr.bf16.mxu0 0
      %3162 = vmatpush1.bf16.msra.mxu0 0
      %3163 = vmatprep.subr.bf16.mxu0 0
      %3164 = vmatpush1.bf16.msra.mxu0 0
      %3165 = vmatprep.subr.bf16.mxu0 0
      %3166 = vmatpush1.bf16.msra.mxu0 0
      %3167 = vmatprep.subr.bf16.mxu0 0
      %3168 = vmatpush1.bf16.msra.mxu0 0
      %3169 = vmatprep.subr.bf16.mxu0 0
      %3170 = vmatpush1.bf16.msra.mxu0 0
      %3171 = vmatprep.subr.bf16.mxu0 0
      %3172 = vmatpush1.bf16.msra.mxu0 0
      %3173 = vmatprep.subr.bf16.mxu0 0
      %3174 = vmatpush1.bf16.msra.mxu0 0
      %3175 = vmatprep.subr.bf16.mxu0 0
      %3176 = vmatpush1.bf16.msra.mxu0 0
      %3177 = vmatprep.subr.bf16.mxu0 0
      %3178 = vmatpush1.bf16.msra.mxu0 0
      %3179 = vmatprep.subr.bf16.mxu0 0
      %3180 = vmatpush1.bf16.msra.mxu0 0
      %3181 = vmatprep.subr.bf16.mxu0 0
      %3182 = vmatpush1.bf16.msra.mxu0 0
      %3183 = vmatprep.subr.bf16.mxu0 0
      %3184 = vmatpush1.bf16.msra.mxu0 0
      %3185 = vmatprep.subr.bf16.mxu0 0
      %3186 = vmatpush1.bf16.msra.mxu0 0
      %3187 = vmatprep.subr.bf16.mxu0 0
      %3188 = vmatpush1.bf16.msra.mxu0 0
      %3189 = vmatprep.mubr.bf16.mxu0 0
      %3190 = vmatmul.mubr.bf16.gmra.mrb[0].mxu0 %v2868
      %v3191 = vpop.f32.mrb[0].mxu0
      %v3192 = vadd.f32 %v2686, %v3191
      %v3193 = vpop.f32.mrb[0].mxu0
      %v3194 = vadd.f32 %v2690, %v3193
      %v3195 = vpop.f32.mrb[0].mxu0
      %v3196 = vpop.f32.mrb[0].mxu0
      %3197 = vdwg.mxu0
      %v3198 = vmax.f32 %v2905, 0.0
      %v3199 = vmax.f32 %v2907, 0.0
      %v3200 = vmax.f32 %v2946, 0.0
      %v3201 = vmax.f32 %v2948, 0.0
      %v3202 = vmax.f32 %v2987, 0.0
      %v3203 = vmax.f32 %v2989, 0.0
      %v3204 = vmax.f32 %v3028, 0.0
      %v3205 = vmax.f32 %v3030, 0.0
      %v3206 = vmax.f32 %v3069, 0.0
      %v3207 = vmax.f32 %v3071, 0.0
      %v3208 = vmax.f32 %v3110, 0.0
      %v3209 = vmax.f32 %v3112, 0.0
      %v3210 = vmax.f32 %v3151, 0.0
      %v3211 = vmax.f32 %v3153, 0.0
      %v3212 = vmax.f32 %v3192, 0.0
      %v3213 = vmax.f32 %v3194, 0.0
      %v3214 = vpack.c.bf16 %v3198, %v3198
      %v3215 = vpack.c.bf16 %v3199, %v3199
      %v3216 = vpack.c.bf16 %v3200, %v3200
      %v3217 = vpack.c.bf16 %v3201, %v3201
      %v3218 = vpack.c.bf16 %v3202, %v3202
      %v3219 = vpack.c.bf16 %v3203, %v3203
      %v3220 = vpack.c.bf16 %v3204, %v3204
      %v3221 = vpack.c.bf16 %v3205, %v3205
      %v3222 = vpack.c.bf16 %v3206, %v3206
      %v3223 = vpack.c.bf16 %v3207, %v3207
      %v3224 = vpack.c.bf16 %v3208, %v3208
      %v3225 = vpack.c.bf16 %v3209, %v3209
      %v3226 = vpack.c.bf16 %v3210, %v3210
      %v3227 = vpack.c.bf16 %v3211, %v3211
      %v3228 = vpack.c.bf16 %v3212, %v3212
      %v3229 = vpack.c.bf16 %v3213, %v3213
      %v3230 = vld [vmem:[%s13] sm:$0xf]
      %v3231 = vld [vmem:[%s13 + $0x4] sm:$0xf]
      %v3232 = vld [vmem:[%s13 + $0x8] sm:$0xf]
      %v3233 = vld [vmem:[%s13 + $0xc] sm:$0xf]
      %v3234 = vld [vmem:[%s13 + $0x10] sm:$0xf]
      %v3235 = vld [vmem:[%s13 + $0x14] sm:$0xf]
      %v3236 = vld [vmem:[%s13 + $0x18] sm:$0xf]
      %v3237 = vld [vmem:[%s13 + $0x1c] sm:$0xf]
      %v3238 = vld [vmem:[%s13 + $0x20] sm:$0xf]
      %v3239 = vld [vmem:[%s13 + $0x24] sm:$0xf]
      %v3240 = vld [vmem:[%s13 + $0x28] sm:$0xf]
      %v3241 = vld [vmem:[%s13 + $0x2c] sm:$0xf]
      %v3242 = vld [vmem:[%s13 + $0x30] sm:$0xf]
      %v3243 = vld [vmem:[%s13 + $0x34] sm:$0xf]
      %v3244 = vld [vmem:[%s13 + $0x38] sm:$0xf]
      %v3245 = vld [vmem:[%s13 + $0x3c] sm:$0xf]
      %v3246 = vld [vmem:[%s13 + $0x40] sm:$0xf]
      %v3247 = vld [vmem:[%s13 + $0x44] sm:$0xf]
      %v3248 = vld [vmem:[%s13 + $0x48] sm:$0xf]
      %v3249 = vld [vmem:[%s13 + $0x4c] sm:$0xf]
      %v3250 = vld [vmem:[%s13 + $0x50] sm:$0xf]
      %v3251 = vld [vmem:[%s13 + $0x54] sm:$0xf]
      %v3252 = vld [vmem:[%s13 + $0x58] sm:$0xf]
      %v3253 = vld [vmem:[%s13 + $0x5c] sm:$0xf]
      %v3254 = vld [vmem:[%s13 + $0x60] sm:$0xf]
      %v3255 = vld [vmem:[%s13 + $0x64] sm:$0xf]
      %v3256 = vld [vmem:[%s13 + $0x68] sm:$0xf]
      %v3257 = vld [vmem:[%s13 + $0x6c] sm:$0xf]
      %v3258 = vld [vmem:[%s13 + $0x70] sm:$0xf]
      %v3259 = vld [vmem:[%s13 + $0x74] sm:$0xf]
      %v3260 = vld [vmem:[%s13 + $0x78] sm:$0xf]
      %v3261 = vld [vmem:[%s13 + $0x7c] sm:$0xf]
      %v3262 = vld [vmem:[%s13 + $0x80] sm:$0xf]
      %v3263 = vld [vmem:[%s13 + $0x84] sm:$0xf]
      %v3264 = vld [vmem:[%s13 + $0x88] sm:$0xf]
      %v3265 = vld [vmem:[%s13 + $0x8c] sm:$0xf]
      %v3266 = vld [vmem:[%s13 + $0x90] sm:$0xf]
      %v3267 = vld [vmem:[%s13 + $0x94] sm:$0xf]
      %v3268 = vld [vmem:[%s13 + $0x98] sm:$0xf]
      %v3269 = vld [vmem:[%s13 + $0x9c] sm:$0xf]
      %v3270 = vld [vmem:[%s13 + $0xa0] sm:$0xf]
      %v3271 = vld [vmem:[%s13 + $0xa4] sm:$0xf]
      %v3272 = vld [vmem:[%s13 + $0xa8] sm:$0xf]
      %v3273 = vld [vmem:[%s13 + $0xac] sm:$0xf]
      %v3274 = vld [vmem:[%s13 + $0xb0] sm:$0xf]
      %v3275 = vld [vmem:[%s13 + $0xb4] sm:$0xf]
      %v3276 = vld [vmem:[%s13 + $0xb8] sm:$0xf]
      %v3277 = vld [vmem:[%s13 + $0xbc] sm:$0xf]
      %v3278 = vld [vmem:[%s13 + $0xc0] sm:$0xf]
      %v3279 = vld [vmem:[%s13 + $0xc4] sm:$0xf]
      %v3280 = vld [vmem:[%s13 + $0xc8] sm:$0xf]
      %v3281 = vld [vmem:[%s13 + $0xcc] sm:$0xf]
      %v3282 = vld [vmem:[%s13 + $0xd0] sm:$0xf]
      %v3283 = vld [vmem:[%s13 + $0xd4] sm:$0xf]
      %v3284 = vld [vmem:[%s13 + $0xd8] sm:$0xf]
      %v3285 = vld [vmem:[%s13 + $0xdc] sm:$0xf]
      %v3286 = vld [vmem:[%s13 + $0xe0] sm:$0xf]
      %v3287 = vld [vmem:[%s13 + $0xe4] sm:$0xf]
      %v3288 = vld [vmem:[%s13 + $0xe8] sm:$0xf]
      %v3289 = vld [vmem:[%s13 + $0xec] sm:$0xf]
      %v3290 = vld [vmem:[%s13 + $0xf0] sm:$0xf]
      %v3291 = vld [vmem:[%s13 + $0xf4] sm:$0xf]
      %v3292 = vld [vmem:[%s13 + $0xf8] sm:$0xf]
      %v3293 = vld [vmem:[%s13 + $0xfc] sm:$0xf]
      %v3294 = vld [vmem:[%s13 + $0x100] sm:$0xf]
      %v3295 = vld [vmem:[%s13 + $0x104] sm:$0xf]
      %v3296 = vld [vmem:[%s13 + $0x108] sm:$0xf]
      %v3297 = vld [vmem:[%s13 + $0x10c] sm:$0xf]
      %v3298 = vld [vmem:[%s13 + $0x110] sm:$0xf]
      %v3299 = vld [vmem:[%s13 + $0x114] sm:$0xf]
      %v3300 = vld [vmem:[%s13 + $0x118] sm:$0xf]
      %v3301 = vld [vmem:[%s13 + $0x11c] sm:$0xf]
      %v3302 = vld [vmem:[%s13 + $0x120] sm:$0xf]
      %v3303 = vld [vmem:[%s13 + $0x124] sm:$0xf]
      %v3304 = vld [vmem:[%s13 + $0x128] sm:$0xf]
      %v3305 = vld [vmem:[%s13 + $0x12c] sm:$0xf]
      %v3306 = vld [vmem:[%s13 + $0x130] sm:$0xf]
      %v3307 = vld [vmem:[%s13 + $0x134] sm:$0xf]
      %v3308 = vld [vmem:[%s13 + $0x138] sm:$0xf]
      %v3309 = vld [vmem:[%s13 + $0x13c] sm:$0xf]
      %v3310 = vld [vmem:[%s13 + $0x140] sm:$0xf]
      %v3311 = vld [vmem:[%s13 + $0x144] sm:$0xf]
      %v3312 = vld [vmem:[%s13 + $0x148] sm:$0xf]
      %v3313 = vld [vmem:[%s13 + $0x14c] sm:$0xf]
      %v3314 = vld [vmem:[%s13 + $0x150] sm:$0xf]
      %v3315 = vld [vmem:[%s13 + $0x154] sm:$0xf]
      %v3316 = vld [vmem:[%s13 + $0x158] sm:$0xf]
      %v3317 = vld [vmem:[%s13 + $0x15c] sm:$0xf]
      %v3318 = vld [vmem:[%s13 + $0x160] sm:$0xf]
      %v3319 = vld [vmem:[%s13 + $0x164] sm:$0xf]
      %v3320 = vld [vmem:[%s13 + $0x168] sm:$0xf]
      %v3321 = vld [vmem:[%s13 + $0x16c] sm:$0xf]
      %v3322 = vld [vmem:[%s13 + $0x170] sm:$0xf]
      %v3323 = vld [vmem:[%s13 + $0x174] sm:$0xf]
      %v3324 = vld [vmem:[%s13 + $0x178] sm:$0xf]
      %v3325 = vld [vmem:[%s13 + $0x17c] sm:$0xf]
      %v3326 = vld [vmem:[%s13 + $0x180] sm:$0xf]
      %v3327 = vld [vmem:[%s13 + $0x184] sm:$0xf]
      %v3328 = vld [vmem:[%s13 + $0x188] sm:$0xf]
      %v3329 = vld [vmem:[%s13 + $0x18c] sm:$0xf]
      %v3330 = vld [vmem:[%s13 + $0x190] sm:$0xf]
      %v3331 = vld [vmem:[%s13 + $0x194] sm:$0xf]
      %v3332 = vld [vmem:[%s13 + $0x198] sm:$0xf]
      %v3333 = vld [vmem:[%s13 + $0x19c] sm:$0xf]
      %v3334 = vld [vmem:[%s13 + $0x1a0] sm:$0xf]
      %v3335 = vld [vmem:[%s13 + $0x1a4] sm:$0xf]
      %v3336 = vld [vmem:[%s13 + $0x1a8] sm:$0xf]
      %v3337 = vld [vmem:[%s13 + $0x1ac] sm:$0xf]
      %v3338 = vld [vmem:[%s13 + $0x1b0] sm:$0xf]
      %v3339 = vld [vmem:[%s13 + $0x1b4] sm:$0xf]
      %v3340 = vld [vmem:[%s13 + $0x1b8] sm:$0xf]
      %v3341 = vld [vmem:[%s13 + $0x1bc] sm:$0xf]
      %v3342 = vld [vmem:[%s13 + $0x1c0] sm:$0xf]
      %v3343 = vld [vmem:[%s13 + $0x1c4] sm:$0xf]
      %v3344 = vld [vmem:[%s13 + $0x1c8] sm:$0xf]
      %v3345 = vld [vmem:[%s13 + $0x1cc] sm:$0xf]
      %v3346 = vld [vmem:[%s13 + $0x1d0] sm:$0xf]
      %v3347 = vld [vmem:[%s13 + $0x1d4] sm:$0xf]
      %v3348 = vld [vmem:[%s13 + $0x1d8] sm:$0xf]
      %v3349 = vld [vmem:[%s13 + $0x1dc] sm:$0xf]
      %v3350 = vld [vmem:[%s13 + $0x1e0] sm:$0xf]
      %v3351 = vld [vmem:[%s13 + $0x1e4] sm:$0xf]
      %v3352 = vld [vmem:[%s13 + $0x1e8] sm:$0xf]
      %v3353 = vld [vmem:[%s13 + $0x1ec] sm:$0xf]
      %v3354 = vld [vmem:[%s13 + $0x1f0] sm:$0xf]
      %v3355 = vld [vmem:[%s13 + $0x1f4] sm:$0xf]
      %v3356 = vld [vmem:[%s13 + $0x1f8] sm:$0xf]
      %v3357 = vld [vmem:[%s13 + $0x1fc] sm:$0xf]
      %v3358 = vld [vmem:[%s13 + $0x200] sm:$0xf]
      %v3359 = vld [vmem:[%s13 + $0x204] sm:$0xf]
      %v3360 = vld [vmem:[%s13 + $0x208] sm:$0xf]
      %v3361 = vld [vmem:[%s13 + $0x20c] sm:$0xf]
      %v3362 = vld [vmem:[%s13 + $0x210] sm:$0xf]
      %v3363 = vld [vmem:[%s13 + $0x214] sm:$0xf]
      %v3364 = vld [vmem:[%s13 + $0x218] sm:$0xf]
      %v3365 = vld [vmem:[%s13 + $0x21c] sm:$0xf]
      %v3366 = vld [vmem:[%s13 + $0x220] sm:$0xf]
      %v3367 = vld [vmem:[%s13 + $0x224] sm:$0xf]
      %v3368 = vld [vmem:[%s13 + $0x228] sm:$0xf]
      %v3369 = vld [vmem:[%s13 + $0x22c] sm:$0xf]
      %v3370 = vld [vmem:[%s13 + $0x230] sm:$0xf]
      %v3371 = vld [vmem:[%s13 + $0x234] sm:$0xf]
      %v3372 = vld [vmem:[%s13 + $0x238] sm:$0xf]
      %v3373 = vld [vmem:[%s13 + $0x23c] sm:$0xf]
      %v3374 = vld [vmem:[%s13 + $0x240] sm:$0xf]
      %v3375 = vld [vmem:[%s13 + $0x244] sm:$0xf]
      %v3376 = vld [vmem:[%s13 + $0x248] sm:$0xf]
      %v3377 = vld [vmem:[%s13 + $0x24c] sm:$0xf]
      %v3378 = vld [vmem:[%s13 + $0x250] sm:$0xf]
      %v3379 = vld [vmem:[%s13 + $0x254] sm:$0xf]
      %v3380 = vld [vmem:[%s13 + $0x258] sm:$0xf]
      %v3381 = vld [vmem:[%s13 + $0x25c] sm:$0xf]
      %v3382 = vld [vmem:[%s13 + $0x260] sm:$0xf]
      %v3383 = vld [vmem:[%s13 + $0x264] sm:$0xf]
      %v3384 = vld [vmem:[%s13 + $0x268] sm:$0xf]
      %v3385 = vld [vmem:[%s13 + $0x26c] sm:$0xf]
      %v3386 = vld [vmem:[%s13 + $0x270] sm:$0xf]
      %v3387 = vld [vmem:[%s13 + $0x274] sm:$0xf]
      %v3388 = vld [vmem:[%s13 + $0x278] sm:$0xf]
      %v3389 = vld [vmem:[%s13 + $0x27c] sm:$0xf]
      %v3390 = vld [vmem:[%s13 + $0x280] sm:$0xf]
      %v3391 = vld [vmem:[%s13 + $0x284] sm:$0xf]
      %v3392 = vld [vmem:[%s13 + $0x288] sm:$0xf]
      %v3393 = vld [vmem:[%s13 + $0x28c] sm:$0xf]
      %v3394 = vld [vmem:[%s13 + $0x290] sm:$0xf]
      %v3395 = vld [vmem:[%s13 + $0x294] sm:$0xf]
      %v3396 = vld [vmem:[%s13 + $0x298] sm:$0xf]
      %v3397 = vld [vmem:[%s13 + $0x29c] sm:$0xf]
      %v3398 = vld [vmem:[%s13 + $0x2a0] sm:$0xf]
      %v3399 = vld [vmem:[%s13 + $0x2a4] sm:$0xf]
      %v3400 = vld [vmem:[%s13 + $0x2a8] sm:$0xf]
      %v3401 = vld [vmem:[%s13 + $0x2ac] sm:$0xf]
      %v3402 = vld [vmem:[%s13 + $0x2b0] sm:$0xf]
      %v3403 = vld [vmem:[%s13 + $0x2b4] sm:$0xf]
      %v3404 = vld [vmem:[%s13 + $0x2b8] sm:$0xf]
      %v3405 = vld [vmem:[%s13 + $0x2bc] sm:$0xf]
      %v3406 = vld [vmem:[%s13 + $0x2c0] sm:$0xf]
      %v3407 = vld [vmem:[%s13 + $0x2c4] sm:$0xf]
      %v3408 = vld [vmem:[%s13 + $0x2c8] sm:$0xf]
      %v3409 = vld [vmem:[%s13 + $0x2cc] sm:$0xf]
      %v3410 = vld [vmem:[%s13 + $0x2d0] sm:$0xf]
      %v3411 = vld [vmem:[%s13 + $0x2d4] sm:$0xf]
      %v3412 = vld [vmem:[%s13 + $0x2d8] sm:$0xf]
      %v3413 = vld [vmem:[%s13 + $0x2dc] sm:$0xf]
      %v3414 = vld [vmem:[%s13 + $0x2e0] sm:$0xf]
      %v3415 = vld [vmem:[%s13 + $0x2e4] sm:$0xf]
      %v3416 = vld [vmem:[%s13 + $0x2e8] sm:$0xf]
      %v3417 = vld [vmem:[%s13 + $0x2ec] sm:$0xf]
      %v3418 = vld [vmem:[%s13 + $0x2f0] sm:$0xf]
      %v3419 = vld [vmem:[%s13 + $0x2f4] sm:$0xf]
      %v3420 = vld [vmem:[%s13 + $0x2f8] sm:$0xf]
      %v3421 = vld [vmem:[%s13 + $0x2fc] sm:$0xf]
      %v3422 = vld [vmem:[%s13 + $0x300] sm:$0xf]
      %v3423 = vld [vmem:[%s13 + $0x304] sm:$0xf]
      %v3424 = vld [vmem:[%s13 + $0x308] sm:$0xf]
      %v3425 = vld [vmem:[%s13 + $0x30c] sm:$0xf]
      %v3426 = vld [vmem:[%s13 + $0x310] sm:$0xf]
      %v3427 = vld [vmem:[%s13 + $0x314] sm:$0xf]
      %v3428 = vld [vmem:[%s13 + $0x318] sm:$0xf]
      %v3429 = vld [vmem:[%s13 + $0x31c] sm:$0xf]
      %v3430 = vld [vmem:[%s13 + $0x320] sm:$0xf]
      %v3431 = vld [vmem:[%s13 + $0x324] sm:$0xf]
      %v3432 = vld [vmem:[%s13 + $0x328] sm:$0xf]
      %v3433 = vld [vmem:[%s13 + $0x32c] sm:$0xf]
      %v3434 = vld [vmem:[%s13 + $0x330] sm:$0xf]
      %v3435 = vld [vmem:[%s13 + $0x334] sm:$0xf]
      %v3436 = vld [vmem:[%s13 + $0x338] sm:$0xf]
      %v3437 = vld [vmem:[%s13 + $0x33c] sm:$0xf]
      %v3438 = vld [vmem:[%s13 + $0x340] sm:$0xf]
      %v3439 = vld [vmem:[%s13 + $0x344] sm:$0xf]
      %v3440 = vld [vmem:[%s13 + $0x348] sm:$0xf]
      %v3441 = vld [vmem:[%s13 + $0x34c] sm:$0xf]
      %v3442 = vld [vmem:[%s13 + $0x350] sm:$0xf]
      %v3443 = vld [vmem:[%s13 + $0x354] sm:$0xf]
      %v3444 = vld [vmem:[%s13 + $0x358] sm:$0xf]
      %v3445 = vld [vmem:[%s13 + $0x35c] sm:$0xf]
      %v3446 = vld [vmem:[%s13 + $0x360] sm:$0xf]
      %v3447 = vld [vmem:[%s13 + $0x364] sm:$0xf]
      %v3448 = vld [vmem:[%s13 + $0x368] sm:$0xf]
      %v3449 = vld [vmem:[%s13 + $0x36c] sm:$0xf]
      %v3450 = vld [vmem:[%s13 + $0x370] sm:$0xf]
      %v3451 = vld [vmem:[%s13 + $0x374] sm:$0xf]
      %v3452 = vld [vmem:[%s13 + $0x378] sm:$0xf]
      %v3453 = vld [vmem:[%s13 + $0x37c] sm:$0xf]
      %v3454 = vld [vmem:[%s13 + $0x380] sm:$0xf]
      %v3455 = vld [vmem:[%s13 + $0x384] sm:$0xf]
      %v3456 = vld [vmem:[%s13 + $0x388] sm:$0xf]
      %v3457 = vld [vmem:[%s13 + $0x38c] sm:$0xf]
      %v3458 = vld [vmem:[%s13 + $0x390] sm:$0xf]
      %v3459 = vld [vmem:[%s13 + $0x394] sm:$0xf]
      %v3460 = vld [vmem:[%s13 + $0x398] sm:$0xf]
      %v3461 = vld [vmem:[%s13 + $0x39c] sm:$0xf]
      %v3462 = vld [vmem:[%s13 + $0x3a0] sm:$0xf]
      %v3463 = vld [vmem:[%s13 + $0x3a4] sm:$0xf]
      %v3464 = vld [vmem:[%s13 + $0x3a8] sm:$0xf]
      %v3465 = vld [vmem:[%s13 + $0x3ac] sm:$0xf]
      %v3466 = vld [vmem:[%s13 + $0x3b0] sm:$0xf]
      %v3467 = vld [vmem:[%s13 + $0x3b4] sm:$0xf]
      %v3468 = vld [vmem:[%s13 + $0x3b8] sm:$0xf]
      %v3469 = vld [vmem:[%s13 + $0x3bc] sm:$0xf]
      %v3470 = vld [vmem:[%s13 + $0x3c0] sm:$0xf]
      %v3471 = vld [vmem:[%s13 + $0x3c4] sm:$0xf]
      %v3472 = vld [vmem:[%s13 + $0x3c8] sm:$0xf]
      %v3473 = vld [vmem:[%s13 + $0x3cc] sm:$0xf]
      %v3474 = vld [vmem:[%s13 + $0x3d0] sm:$0xf]
      %v3475 = vld [vmem:[%s13 + $0x3d4] sm:$0xf]
      %v3476 = vld [vmem:[%s13 + $0x3d8] sm:$0xf]
      %v3477 = vld [vmem:[%s13 + $0x3dc] sm:$0xf]
      %v3478 = vld [vmem:[%s13 + $0x3e0] sm:$0xf]
      %v3479 = vld [vmem:[%s13 + $0x3e4] sm:$0xf]
      %v3480 = vld [vmem:[%s13 + $0x3e8] sm:$0xf]
      %v3481 = vld [vmem:[%s13 + $0x3ec] sm:$0xf]
      %v3482 = vld [vmem:[%s13 + $0x3f0] sm:$0xf]
      %v3483 = vld [vmem:[%s13 + $0x3f4] sm:$0xf]
      %v3484 = vld [vmem:[%s13 + $0x3f8] sm:$0xf]
      %v3485 = vld [vmem:[%s13 + $0x3fc] sm:$0xf]
      %v3486 = vld [vmem:[%s14] sm:$0x1]
      %v3488 = vlaneseq
      %v3489 = vshrl.u32 %v3488, 7
      %v3490 = vsub.s32 0, %v3489
      %v3491 = vrot.slane %v3486, %v3490
      %v3749 = vunpack.c.l.b16 %v3230
      %v3750 = vunpack.c.l.b16 %v3231
      %v3751 = vunpack.c.l.b16 %v3232
      %v3752 = vunpack.c.l.b16 %v3233
      %v3753 = vunpack.c.l.b16 %v3234
      %v3754 = vunpack.c.l.b16 %v3235
      %v3755 = vunpack.c.l.b16 %v3236
      %v3756 = vunpack.c.l.b16 %v3237
      %v3757 = vunpack.c.l.b16 %v3238
      %v3758 = vunpack.c.l.b16 %v3239
      %v3759 = vunpack.c.l.b16 %v3240
      %v3760 = vunpack.c.l.b16 %v3241
      %v3761 = vunpack.c.l.b16 %v3242
      %v3762 = vunpack.c.l.b16 %v3243
      %v3763 = vunpack.c.l.b16 %v3244
      %v3764 = vunpack.c.l.b16 %v3245
      %v3765 = vunpack.c.l.b16 %v3246
      %v3766 = vunpack.c.l.b16 %v3247
      %v3767 = vunpack.c.l.b16 %v3248
      %v3768 = vunpack.c.l.b16 %v3249
      %v3769 = vunpack.c.l.b16 %v3250
      %v3770 = vunpack.c.l.b16 %v3251
      %v3771 = vunpack.c.l.b16 %v3252
      %v3772 = vunpack.c.l.b16 %v3253
      %v3773 = vunpack.c.l.b16 %v3254
      %v3774 = vunpack.c.l.b16 %v3255
      %v3775 = vunpack.c.l.b16 %v3256
      %v3776 = vunpack.c.l.b16 %v3257
      %v3777 = vunpack.c.l.b16 %v3258
      %v3778 = vunpack.c.l.b16 %v3259
      %v3779 = vunpack.c.l.b16 %v3260
      %v3780 = vunpack.c.l.b16 %v3261
      %v3781 = vunpack.c.l.b16 %v3262
      %v3782 = vunpack.c.l.b16 %v3263
      %v3783 = vunpack.c.l.b16 %v3264
      %v3784 = vunpack.c.l.b16 %v3265
      %v3785 = vunpack.c.l.b16 %v3266
      %v3786 = vunpack.c.l.b16 %v3267
      %v3787 = vunpack.c.l.b16 %v3268
      %v3788 = vunpack.c.l.b16 %v3269
      %v3789 = vunpack.c.l.b16 %v3270
      %v3790 = vunpack.c.l.b16 %v3271
      %v3791 = vunpack.c.l.b16 %v3272
      %v3792 = vunpack.c.l.b16 %v3273
      %v3793 = vunpack.c.l.b16 %v3274
      %v3794 = vunpack.c.l.b16 %v3275
      %v3795 = vunpack.c.l.b16 %v3276
      %v3796 = vunpack.c.l.b16 %v3277
      %v3797 = vunpack.c.l.b16 %v3278
      %v3798 = vunpack.c.l.b16 %v3279
      %v3799 = vunpack.c.l.b16 %v3280
      %v3800 = vunpack.c.l.b16 %v3281
      %v3801 = vunpack.c.l.b16 %v3282
      %v3802 = vunpack.c.l.b16 %v3283
      %v3803 = vunpack.c.l.b16 %v3284
      %v3804 = vunpack.c.l.b16 %v3285
      %v3805 = vunpack.c.l.b16 %v3286
      %v3806 = vunpack.c.l.b16 %v3287
      %v3807 = vunpack.c.l.b16 %v3288
      %v3808 = vunpack.c.l.b16 %v3289
      %v3809 = vunpack.c.l.b16 %v3290
      %v3810 = vunpack.c.l.b16 %v3291
      %v3811 = vunpack.c.l.b16 %v3292
      %v3812 = vunpack.c.l.b16 %v3293
      %v3813 = vunpack.c.l.b16 %v3294
      %v3814 = vunpack.c.l.b16 %v3295
      %v3815 = vunpack.c.l.b16 %v3296
      %v3816 = vunpack.c.l.b16 %v3297
      %v3817 = vunpack.c.l.b16 %v3298
      %v3818 = vunpack.c.l.b16 %v3299
      %v3819 = vunpack.c.l.b16 %v3300
      %v3820 = vunpack.c.l.b16 %v3301
      %v3821 = vunpack.c.l.b16 %v3302
      %v3822 = vunpack.c.l.b16 %v3303
      %v3823 = vunpack.c.l.b16 %v3304
      %v3824 = vunpack.c.l.b16 %v3305
      %v3825 = vunpack.c.l.b16 %v3306
      %v3826 = vunpack.c.l.b16 %v3307
      %v3827 = vunpack.c.l.b16 %v3308
      %v3828 = vunpack.c.l.b16 %v3309
      %v3829 = vunpack.c.l.b16 %v3310
      %v3830 = vunpack.c.l.b16 %v3311
      %v3831 = vunpack.c.l.b16 %v3312
      %v3832 = vunpack.c.l.b16 %v3313
      %v3833 = vunpack.c.l.b16 %v3314
      %v3834 = vunpack.c.l.b16 %v3315
      %v3835 = vunpack.c.l.b16 %v3316
      %v3836 = vunpack.c.l.b16 %v3317
      %v3837 = vunpack.c.l.b16 %v3318
      %v3838 = vunpack.c.l.b16 %v3319
      %v3839 = vunpack.c.l.b16 %v3320
      %v3840 = vunpack.c.l.b16 %v3321
      %v3841 = vunpack.c.l.b16 %v3322
      %v3842 = vunpack.c.l.b16 %v3323
      %v3843 = vunpack.c.l.b16 %v3324
      %v3844 = vunpack.c.l.b16 %v3325
      %v3845 = vunpack.c.l.b16 %v3326
      %v3846 = vunpack.c.l.b16 %v3327
      %v3847 = vunpack.c.l.b16 %v3328
      %v3848 = vunpack.c.l.b16 %v3329
      %v3849 = vunpack.c.l.b16 %v3330
      %v3850 = vunpack.c.l.b16 %v3331
      %v3851 = vunpack.c.l.b16 %v3332
      %v3852 = vunpack.c.l.b16 %v3333
      %v3853 = vunpack.c.l.b16 %v3334
      %v3854 = vunpack.c.l.b16 %v3335
      %v3855 = vunpack.c.l.b16 %v3336
      %v3856 = vunpack.c.l.b16 %v3337
      %v3857 = vunpack.c.l.b16 %v3338
      %v3858 = vunpack.c.l.b16 %v3339
      %v3859 = vunpack.c.l.b16 %v3340
      %v3860 = vunpack.c.l.b16 %v3341
      %v3861 = vunpack.c.l.b16 %v3342
      %v3862 = vunpack.c.l.b16 %v3343
      %v3863 = vunpack.c.l.b16 %v3344
      %v3864 = vunpack.c.l.b16 %v3345
      %v3865 = vunpack.c.l.b16 %v3346
      %v3866 = vunpack.c.l.b16 %v3347
      %v3867 = vunpack.c.l.b16 %v3348
      %v3868 = vunpack.c.l.b16 %v3349
      %v3869 = vunpack.c.l.b16 %v3350
      %v3870 = vunpack.c.l.b16 %v3351
      %v3871 = vunpack.c.l.b16 %v3352
      %v3872 = vunpack.c.l.b16 %v3353
      %v3873 = vunpack.c.l.b16 %v3354
      %v3874 = vunpack.c.l.b16 %v3355
      %v3875 = vunpack.c.l.b16 %v3356
      %v3876 = vunpack.c.l.b16 %v3357
      %v3877 = vunpack.c.l.b16 %v3358
      %v3878 = vunpack.c.l.b16 %v3359
      %v3879 = vunpack.c.l.b16 %v3360
      %v3880 = vunpack.c.l.b16 %v3361
      %v3881 = vunpack.c.l.b16 %v3362
      %v3882 = vunpack.c.l.b16 %v3363
      %v3883 = vunpack.c.l.b16 %v3364
      %v3884 = vunpack.c.l.b16 %v3365
      %v3885 = vunpack.c.l.b16 %v3366
      %v3886 = vunpack.c.l.b16 %v3367
      %v3887 = vunpack.c.l.b16 %v3368
      %v3888 = vunpack.c.l.b16 %v3369
      %v3889 = vunpack.c.l.b16 %v3370
      %v3890 = vunpack.c.l.b16 %v3371
      %v3891 = vunpack.c.l.b16 %v3372
      %v3892 = vunpack.c.l.b16 %v3373
      %v3893 = vunpack.c.l.b16 %v3374
      %v3894 = vunpack.c.l.b16 %v3375
      %v3895 = vunpack.c.l.b16 %v3376
      %v3896 = vunpack.c.l.b16 %v3377
      %v3897 = vunpack.c.l.b16 %v3378
      %v3898 = vunpack.c.l.b16 %v3379
      %v3899 = vunpack.c.l.b16 %v3380
      %v3900 = vunpack.c.l.b16 %v3381
      %v3901 = vunpack.c.l.b16 %v3382
      %v3902 = vunpack.c.l.b16 %v3383
      %v3903 = vunpack.c.l.b16 %v3384
      %v3904 = vunpack.c.l.b16 %v3385
      %v3905 = vunpack.c.l.b16 %v3386
      %v3906 = vunpack.c.l.b16 %v3387
      %v3907 = vunpack.c.l.b16 %v3388
      %v3908 = vunpack.c.l.b16 %v3389
      %v3909 = vunpack.c.l.b16 %v3390
      %v3910 = vunpack.c.l.b16 %v3391
      %v3911 = vunpack.c.l.b16 %v3392
      %v3912 = vunpack.c.l.b16 %v3393
      %v3913 = vunpack.c.l.b16 %v3394
      %v3914 = vunpack.c.l.b16 %v3395
      %v3915 = vunpack.c.l.b16 %v3396
      %v3916 = vunpack.c.l.b16 %v3397
      %v3917 = vunpack.c.l.b16 %v3398
      %v3918 = vunpack.c.l.b16 %v3399
      %v3919 = vunpack.c.l.b16 %v3400
      %v3920 = vunpack.c.l.b16 %v3401
      %v3921 = vunpack.c.l.b16 %v3402
      %v3922 = vunpack.c.l.b16 %v3403
      %v3923 = vunpack.c.l.b16 %v3404
      %v3924 = vunpack.c.l.b16 %v3405
      %v3925 = vunpack.c.l.b16 %v3406
      %v3926 = vunpack.c.l.b16 %v3407
      %v3927 = vunpack.c.l.b16 %v3408
      %v3928 = vunpack.c.l.b16 %v3409
      %v3929 = vunpack.c.l.b16 %v3410
      %v3930 = vunpack.c.l.b16 %v3411
      %v3931 = vunpack.c.l.b16 %v3412
      %v3932 = vunpack.c.l.b16 %v3413
      %v3933 = vunpack.c.l.b16 %v3414
      %v3934 = vunpack.c.l.b16 %v3415
      %v3935 = vunpack.c.l.b16 %v3416
      %v3936 = vunpack.c.l.b16 %v3417
      %v3937 = vunpack.c.l.b16 %v3418
      %v3938 = vunpack.c.l.b16 %v3419
      %v3939 = vunpack.c.l.b16 %v3420
      %v3940 = vunpack.c.l.b16 %v3421
      %v3941 = vunpack.c.l.b16 %v3422
      %v3942 = vunpack.c.l.b16 %v3423
      %v3943 = vunpack.c.l.b16 %v3424
      %v3944 = vunpack.c.l.b16 %v3425
      %v3945 = vunpack.c.l.b16 %v3426
      %v3946 = vunpack.c.l.b16 %v3427
      %v3947 = vunpack.c.l.b16 %v3428
      %v3948 = vunpack.c.l.b16 %v3429
      %v3949 = vunpack.c.l.b16 %v3430
      %v3950 = vunpack.c.l.b16 %v3431
      %v3951 = vunpack.c.l.b16 %v3432
      %v3952 = vunpack.c.l.b16 %v3433
      %v3953 = vunpack.c.l.b16 %v3434
      %v3954 = vunpack.c.l.b16 %v3435
      %v3955 = vunpack.c.l.b16 %v3436
      %v3956 = vunpack.c.l.b16 %v3437
      %v3957 = vunpack.c.l.b16 %v3438
      %v3958 = vunpack.c.l.b16 %v3439
      %v3959 = vunpack.c.l.b16 %v3440
      %v3960 = vunpack.c.l.b16 %v3441
      %v3961 = vunpack.c.l.b16 %v3442
      %v3962 = vunpack.c.l.b16 %v3443
      %v3963 = vunpack.c.l.b16 %v3444
      %v3964 = vunpack.c.l.b16 %v3445
      %v3965 = vunpack.c.l.b16 %v3446
      %v3966 = vunpack.c.l.b16 %v3447
      %v3967 = vunpack.c.l.b16 %v3448
      %v3968 = vunpack.c.l.b16 %v3449
      %v3969 = vunpack.c.l.b16 %v3450
      %v3970 = vunpack.c.l.b16 %v3451
      %v3971 = vunpack.c.l.b16 %v3452
      %v3972 = vunpack.c.l.b16 %v3453
      %v3973 = vunpack.c.l.b16 %v3454
      %v3974 = vunpack.c.l.b16 %v3455
      %v3975 = vunpack.c.l.b16 %v3456
      %v3976 = vunpack.c.l.b16 %v3457
      %v3977 = vunpack.c.l.b16 %v3458
      %v3978 = vunpack.c.l.b16 %v3459
      %v3979 = vunpack.c.l.b16 %v3460
      %v3980 = vunpack.c.l.b16 %v3461
      %v3981 = vunpack.c.l.b16 %v3462
      %v3982 = vunpack.c.l.b16 %v3463
      %v3983 = vunpack.c.l.b16 %v3464
      %v3984 = vunpack.c.l.b16 %v3465
      %v3985 = vunpack.c.l.b16 %v3466
      %v3986 = vunpack.c.l.b16 %v3467
      %v3987 = vunpack.c.l.b16 %v3468
      %v3988 = vunpack.c.l.b16 %v3469
      %v3989 = vunpack.c.l.b16 %v3470
      %v3990 = vunpack.c.l.b16 %v3471
      %v3991 = vunpack.c.l.b16 %v3472
      %v3992 = vunpack.c.l.b16 %v3473
      %v3993 = vunpack.c.l.b16 %v3474
      %v3994 = vunpack.c.l.b16 %v3475
      %v3995 = vunpack.c.l.b16 %v3476
      %v3996 = vunpack.c.l.b16 %v3477
      %v3997 = vunpack.c.l.b16 %v3478
      %v3998 = vunpack.c.l.b16 %v3479
      %v3999 = vunpack.c.l.b16 %v3480
      %v4000 = vunpack.c.l.b16 %v3481
      %v4001 = vunpack.c.l.b16 %v3482
      %v4002 = vunpack.c.l.b16 %v3483
      %v4003 = vunpack.c.l.b16 %v3484
      %v4004 = vunpack.c.l.b16 %v3485
      %v4005 = vpack.c.b16 %v3750, %v3749
      %v4006 = vpack.c.b16 %v3752, %v3751
      %v4007 = vpack.c.b16 %v3754, %v3753
      %v4008 = vpack.c.b16 %v3756, %v3755
      %v4009 = vpack.c.b16 %v3758, %v3757
      %v4010 = vpack.c.b16 %v3760, %v3759
      %v4011 = vpack.c.b16 %v3762, %v3761
      %v4012 = vpack.c.b16 %v3764, %v3763
      %v4013 = vpack.c.b16 %v3766, %v3765
      %v4014 = vpack.c.b16 %v3768, %v3767
      %v4015 = vpack.c.b16 %v3770, %v3769
      %v4016 = vpack.c.b16 %v3772, %v3771
      %v4017 = vpack.c.b16 %v3774, %v3773
      %v4018 = vpack.c.b16 %v3776, %v3775
      %v4019 = vpack.c.b16 %v3778, %v3777
      %v4020 = vpack.c.b16 %v3780, %v3779
      %v4021 = vpack.c.b16 %v3782, %v3781
      %v4022 = vpack.c.b16 %v3784, %v3783
      %v4023 = vpack.c.b16 %v3786, %v3785
      %v4024 = vpack.c.b16 %v3788, %v3787
      %v4025 = vpack.c.b16 %v3790, %v3789
      %v4026 = vpack.c.b16 %v3792, %v3791
      %v4027 = vpack.c.b16 %v3794, %v3793
      %v4028 = vpack.c.b16 %v3796, %v3795
      %v4029 = vpack.c.b16 %v3798, %v3797
      %v4030 = vpack.c.b16 %v3800, %v3799
      %v4031 = vpack.c.b16 %v3802, %v3801
      %v4032 = vpack.c.b16 %v3804, %v3803
      %v4033 = vpack.c.b16 %v3806, %v3805
      %v4034 = vpack.c.b16 %v3808, %v3807
      %v4035 = vpack.c.b16 %v3810, %v3809
      %v4036 = vpack.c.b16 %v3812, %v3811
      %v4037 = vpack.c.b16 %v3814, %v3813
      %v4038 = vpack.c.b16 %v3816, %v3815
      %v4039 = vpack.c.b16 %v3818, %v3817
      %v4040 = vpack.c.b16 %v3820, %v3819
      %v4041 = vpack.c.b16 %v3822, %v3821
      %v4042 = vpack.c.b16 %v3824, %v3823
      %v4043 = vpack.c.b16 %v3826, %v3825
      %v4044 = vpack.c.b16 %v3828, %v3827
      %v4045 = vpack.c.b16 %v3830, %v3829
      %v4046 = vpack.c.b16 %v3832, %v3831
      %v4047 = vpack.c.b16 %v3834, %v3833
      %v4048 = vpack.c.b16 %v3836, %v3835
      %v4049 = vpack.c.b16 %v3838, %v3837
      %v4050 = vpack.c.b16 %v3840, %v3839
      %v4051 = vpack.c.b16 %v3842, %v3841
      %v4052 = vpack.c.b16 %v3844, %v3843
      %v4053 = vpack.c.b16 %v3846, %v3845
      %v4054 = vpack.c.b16 %v3848, %v3847
      %v4055 = vpack.c.b16 %v3850, %v3849
      %v4056 = vpack.c.b16 %v3852, %v3851
      %v4057 = vpack.c.b16 %v3854, %v3853
      %v4058 = vpack.c.b16 %v3856, %v3855
      %v4059 = vpack.c.b16 %v3858, %v3857
      %v4060 = vpack.c.b16 %v3860, %v3859
      %v4061 = vpack.c.b16 %v3862, %v3861
      %v4062 = vpack.c.b16 %v3864, %v3863
      %v4063 = vpack.c.b16 %v3866, %v3865
      %v4064 = vpack.c.b16 %v3868, %v3867
      %v4065 = vpack.c.b16 %v3870, %v3869
      %v4066 = vpack.c.b16 %v3872, %v3871
      %v4067 = vpack.c.b16 %v3874, %v3873
      %v4068 = vpack.c.b16 %v3876, %v3875
      %v4069 = vpack.c.b16 %v3878, %v3877
      %v4070 = vpack.c.b16 %v3880, %v3879
      %v4071 = vpack.c.b16 %v3882, %v3881
      %v4072 = vpack.c.b16 %v3884, %v3883
      %v4073 = vpack.c.b16 %v3886, %v3885
      %v4074 = vpack.c.b16 %v3888, %v3887
      %v4075 = vpack.c.b16 %v3890, %v3889
      %v4076 = vpack.c.b16 %v3892, %v3891
      %v4077 = vpack.c.b16 %v3894, %v3893
      %v4078 = vpack.c.b16 %v3896, %v3895
      %v4079 = vpack.c.b16 %v3898, %v3897
      %v4080 = vpack.c.b16 %v3900, %v3899
      %v4081 = vpack.c.b16 %v3902, %v3901
      %v4082 = vpack.c.b16 %v3904, %v3903
      %v4083 = vpack.c.b16 %v3906, %v3905
      %v4084 = vpack.c.b16 %v3908, %v3907
      %v4085 = vpack.c.b16 %v3910, %v3909
      %v4086 = vpack.c.b16 %v3912, %v3911
      %v4087 = vpack.c.b16 %v3914, %v3913
      %v4088 = vpack.c.b16 %v3916, %v3915
      %v4089 = vpack.c.b16 %v3918, %v3917
      %v4090 = vpack.c.b16 %v3920, %v3919
      %v4091 = vpack.c.b16 %v3922, %v3921
      %v4092 = vpack.c.b16 %v3924, %v3923
      %v4093 = vpack.c.b16 %v3926, %v3925
      %v4094 = vpack.c.b16 %v3928, %v3927
      %v4095 = vpack.c.b16 %v3930, %v3929
      %v4096 = vpack.c.b16 %v3932, %v3931
      %v4097 = vpack.c.b16 %v3934, %v3933
      %v4098 = vpack.c.b16 %v3936, %v3935
      %v4099 = vpack.c.b16 %v3938, %v3937
      %v4100 = vpack.c.b16 %v3940, %v3939
      %v4101 = vpack.c.b16 %v3942, %v3941
      %v4102 = vpack.c.b16 %v3944, %v3943
      %v4103 = vpack.c.b16 %v3946, %v3945
      %v4104 = vpack.c.b16 %v3948, %v3947
      %v4105 = vpack.c.b16 %v3950, %v3949
      %v4106 = vpack.c.b16 %v3952, %v3951
      %v4107 = vpack.c.b16 %v3954, %v3953
      %v4108 = vpack.c.b16 %v3956, %v3955
      %v4109 = vpack.c.b16 %v3958, %v3957
      %v4110 = vpack.c.b16 %v3960, %v3959
      %v4111 = vpack.c.b16 %v3962, %v3961
      %v4112 = vpack.c.b16 %v3964, %v3963
      %v4113 = vpack.c.b16 %v3966, %v3965
      %v4114 = vpack.c.b16 %v3968, %v3967
      %v4115 = vpack.c.b16 %v3970, %v3969
      %v4116 = vpack.c.b16 %v3972, %v3971
      %v4117 = vpack.c.b16 %v3974, %v3973
      %v4118 = vpack.c.b16 %v3976, %v3975
      %v4119 = vpack.c.b16 %v3978, %v3977
      %v4120 = vpack.c.b16 %v3980, %v3979
      %v4121 = vpack.c.b16 %v3982, %v3981
      %v4122 = vpack.c.b16 %v3984, %v3983
      %v4123 = vpack.c.b16 %v3986, %v3985
      %v4124 = vpack.c.b16 %v3988, %v3987
      %v4125 = vpack.c.b16 %v3990, %v3989
      %v4126 = vpack.c.b16 %v3992, %v3991
      %v4127 = vpack.c.b16 %v3994, %v3993
      %v4128 = vpack.c.b16 %v3996, %v3995
      %v4129 = vpack.c.b16 %v3998, %v3997
      %v4130 = vpack.c.b16 %v4000, %v3999
      %v4131 = vpack.c.b16 %v4002, %v4001
      %v4132 = vpack.c.b16 %v4004, %v4003
      %4261 = vmatprep.subr.bf16.mxu0 0
      %4262 = vmatpush1.bf16.msra.mxu0 %v4005
      %4263 = vmatprep.subr.bf16.mxu0 0
      %4264 = vmatpush1.bf16.msra.mxu0 %v4006
      %4265 = vmatprep.subr.bf16.mxu0 0
      %4266 = vmatpush1.bf16.msra.mxu0 %v4007
      %4267 = vmatprep.subr.bf16.mxu0 0
      %4268 = vmatpush1.bf16.msra.mxu0 %v4008
      %4269 = vmatprep.subr.bf16.mxu0 0
      %4270 = vmatpush1.bf16.msra.mxu0 %v4009
      %4271 = vmatprep.subr.bf16.mxu0 0
      %4272 = vmatpush1.bf16.msra.mxu0 %v4010
      %4273 = vmatprep.subr.bf16.mxu0 0
      %4274 = vmatpush1.bf16.msra.mxu0 %v4011
      %4275 = vmatprep.subr.bf16.mxu0 0
      %4276 = vmatpush1.bf16.msra.mxu0 %v4012
      %4277 = vmatprep.subr.bf16.mxu0 0
      %4278 = vmatpush1.bf16.msra.mxu0 %v4013
      %4279 = vmatprep.subr.bf16.mxu0 0
      %4280 = vmatpush1.bf16.msra.mxu0 %v4014
      %4281 = vmatprep.subr.bf16.mxu0 0
      %4282 = vmatpush1.bf16.msra.mxu0 %v4015
      %4283 = vmatprep.subr.bf16.mxu0 0
      %4284 = vmatpush1.bf16.msra.mxu0 %v4016
      %4285 = vmatprep.subr.bf16.mxu0 0
      %4286 = vmatpush1.bf16.msra.mxu0 %v4017
      %4287 = vmatprep.subr.bf16.mxu0 0
      %4288 = vmatpush1.bf16.msra.mxu0 %v4018
      %4289 = vmatprep.subr.bf16.mxu0 0
      %4290 = vmatpush1.bf16.msra.mxu0 %v4019
      %4291 = vmatprep.subr.bf16.mxu0 0
      %4292 = vmatpush1.bf16.msra.mxu0 %v4020
      %4293 = vmatprep.mubr.bf16.mxu0 %v3215
      %4294 = vmatmul.mubr.bf16.gmra.mrb[0].mxu0 %v3214
      %v4295 = vpop.f32.mrb[0].mxu0
      %v4296 = vadd.f32 %v3491, %v4295
      %v4297 = vpop.f32.mrb[0].mxu0
      %v4298 = vpop.f32.mrb[0].mxu0
      %v4299 = vpop.f32.mrb[0].mxu0
      %4300 = vdwg.mxu0
      %4301 = vmatprep.subr.bf16.mxu0 0
      %4302 = vmatpush1.bf16.msra.mxu0 %v4021
      %4303 = vmatprep.subr.bf16.mxu0 0
      %4304 = vmatpush1.bf16.msra.mxu0 %v4022
      %4305 = vmatprep.subr.bf16.mxu0 0
      %4306 = vmatpush1.bf16.msra.mxu0 %v4023
      %4307 = vmatprep.subr.bf16.mxu0 0
      %4308 = vmatpush1.bf16.msra.mxu0 %v4024
      %4309 = vmatprep.subr.bf16.mxu0 0
      %4310 = vmatpush1.bf16.msra.mxu0 %v4025
      %4311 = vmatprep.subr.bf16.mxu0 0
      %4312 = vmatpush1.bf16.msra.mxu0 %v4026
      %4313 = vmatprep.subr.bf16.mxu0 0
      %4314 = vmatpush1.bf16.msra.mxu0 %v4027
      %4315 = vmatprep.subr.bf16.mxu0 0
      %4316 = vmatpush1.bf16.msra.mxu0 %v4028
      %4317 = vmatprep.subr.bf16.mxu0 0
      %4318 = vmatpush1.bf16.msra.mxu0 %v4029
      %4319 = vmatprep.subr.bf16.mxu0 0
      %4320 = vmatpush1.bf16.msra.mxu0 %v4030
      %4321 = vmatprep.subr.bf16.mxu0 0
      %4322 = vmatpush1.bf16.msra.mxu0 %v4031
      %4323 = vmatprep.subr.bf16.mxu0 0
      %4324 = vmatpush1.bf16.msra.mxu0 %v4032
      %4325 = vmatprep.subr.bf16.mxu0 0
      %4326 = vmatpush1.bf16.msra.mxu0 %v4033
      %4327 = vmatprep.subr.bf16.mxu0 0
      %4328 = vmatpush1.bf16.msra.mxu0 %v4034
      %4329 = vmatprep.subr.bf16.mxu0 0
      %4330 = vmatpush1.bf16.msra.mxu0 %v4035
      %4331 = vmatprep.subr.bf16.mxu0 0
      %4332 = vmatpush1.bf16.msra.mxu0 %v4036
      %4333 = vmatprep.mubr.bf16.mxu0 %v3217
      %4334 = vmatmul.mubr.bf16.gmra.mrb[0].mxu0 %v3216
      %v4335 = vpop.f32.mrb[0].mxu0
      %v4336 = vadd.f32 %v4296, %v4335
      %v4337 = vpop.f32.mrb[0].mxu0
      %v4338 = vpop.f32.mrb[0].mxu0
      %v4339 = vpop.f32.mrb[0].mxu0
      %4340 = vdwg.mxu0
      %4341 = vmatprep.subr.bf16.mxu0 0
      %4342 = vmatpush1.bf16.msra.mxu0 %v4037
      %4343 = vmatprep.subr.bf16.mxu0 0
      %4344 = vmatpush1.bf16.msra.mxu0 %v4038
      %4345 = vmatprep.subr.bf16.mxu0 0
      %4346 = vmatpush1.bf16.msra.mxu0 %v4039
      %4347 = vmatprep.subr.bf16.mxu0 0
      %4348 = vmatpush1.bf16.msra.mxu0 %v4040
      %4349 = vmatprep.subr.bf16.mxu0 0
      %4350 = vmatpush1.bf16.msra.mxu0 %v4041
      %4351 = vmatprep.subr.bf16.mxu0 0
      %4352 = vmatpush1.bf16.msra.mxu0 %v4042
      %4353 = vmatprep.subr.bf16.mxu0 0
      %4354 = vmatpush1.bf16.msra.mxu0 %v4043
      %4355 = vmatprep.subr.bf16.mxu0 0
      %4356 = vmatpush1.bf16.msra.mxu0 %v4044
      %4357 = vmatprep.subr.bf16.mxu0 0
      %4358 = vmatpush1.bf16.msra.mxu0 %v4045
      %4359 = vmatprep.subr.bf16.mxu0 0
      %4360 = vmatpush1.bf16.msra.mxu0 %v4046
      %4361 = vmatprep.subr.bf16.mxu0 0
      %4362 = vmatpush1.bf16.msra.mxu0 %v4047
      %4363 = vmatprep.subr.bf16.mxu0 0
      %4364 = vmatpush1.bf16.msra.mxu0 %v4048
      %4365 = vmatprep.subr.bf16.mxu0 0
      %4366 = vmatpush1.bf16.msra.mxu0 %v4049
      %4367 = vmatprep.subr.bf16.mxu0 0
      %4368 = vmatpush1.bf16.msra.mxu0 %v4050
      %4369 = vmatprep.subr.bf16.mxu0 0
      %4370 = vmatpush1.bf16.msra.mxu0 %v4051
      %4371 = vmatprep.subr.bf16.mxu0 0
      %4372 = vmatpush1.bf16.msra.mxu0 %v4052
      %4373 = vmatprep.mubr.bf16.mxu0 %v3219
      %4374 = vmatmul.mubr.bf16.gmra.mrb[0].mxu0 %v3218
      %v4375 = vpop.f32.mrb[0].mxu0
      %v4376 = vadd.f32 %v4336, %v4375
      %v4377 = vpop.f32.mrb[0].mxu0
      %v4378 = vpop.f32.mrb[0].mxu0
      %v4379 = vpop.f32.mrb[0].mxu0
      %4380 = vdwg.mxu0
      %4381 = vmatprep.subr.bf16.mxu0 0
      %4382 = vmatpush1.bf16.msra.mxu0 %v4053
      %4383 = vmatprep.subr.bf16.mxu0 0
      %4384 = vmatpush1.bf16.msra.mxu0 %v4054
      %4385 = vmatprep.subr.bf16.mxu0 0
      %4386 = vmatpush1.bf16.msra.mxu0 %v4055
      %4387 = vmatprep.subr.bf16.mxu0 0
      %4388 = vmatpush1.bf16.msra.mxu0 %v4056
      %4389 = vmatprep.subr.bf16.mxu0 0
      %4390 = vmatpush1.bf16.msra.mxu0 %v4057
      %4391 = vmatprep.subr.bf16.mxu0 0
      %4392 = vmatpush1.bf16.msra.mxu0 %v4058
      %4393 = vmatprep.subr.bf16.mxu0 0
      %4394 = vmatpush1.bf16.msra.mxu0 %v4059
      %4395 = vmatprep.subr.bf16.mxu0 0
      %4396 = vmatpush1.bf16.msra.mxu0 %v4060
      %4397 = vmatprep.subr.bf16.mxu0 0
      %4398 = vmatpush1.bf16.msra.mxu0 %v4061
      %4399 = vmatprep.subr.bf16.mxu0 0
      %4400 = vmatpush1.bf16.msra.mxu0 %v4062
      %4401 = vmatprep.subr.bf16.mxu0 0
      %4402 = vmatpush1.bf16.msra.mxu0 %v4063
      %4403 = vmatprep.subr.bf16.mxu0 0
      %4404 = vmatpush1.bf16.msra.mxu0 %v4064
      %4405 = vmatprep.subr.bf16.mxu0 0
      %4406 = vmatpush1.bf16.msra.mxu0 %v4065
      %4407 = vmatprep.subr.bf16.mxu0 0
      %4408 = vmatpush1.bf16.msra.mxu0 %v4066
      %4409 = vmatprep.subr.bf16.mxu0 0
      %4410 = vmatpush1.bf16.msra.mxu0 %v4067
      %4411 = vmatprep.subr.bf16.mxu0 0
      %4412 = vmatpush1.bf16.msra.mxu0 %v4068
      %4413 = vmatprep.mubr.bf16.mxu0 %v3221
      %4414 = vmatmul.mubr.bf16.gmra.mrb[0].mxu0 %v3220
      %v4415 = vpop.f32.mrb[0].mxu0
      %v4416 = vadd.f32 %v4376, %v4415
      %v4417 = vpop.f32.mrb[0].mxu0
      %v4418 = vpop.f32.mrb[0].mxu0
      %v4419 = vpop.f32.mrb[0].mxu0
      %4420 = vdwg.mxu0
      %4421 = vmatprep.subr.bf16.mxu0 0
      %4422 = vmatpush1.bf16.msra.mxu0 %v4069
      %4423 = vmatprep.subr.bf16.mxu0 0
      %4424 = vmatpush1.bf16.msra.mxu0 %v4070
      %4425 = vmatprep.subr.bf16.mxu0 0
      %4426 = vmatpush1.bf16.msra.mxu0 %v4071
      %4427 = vmatprep.subr.bf16.mxu0 0
      %4428 = vmatpush1.bf16.msra.mxu0 %v4072
      %4429 = vmatprep.subr.bf16.mxu0 0
      %4430 = vmatpush1.bf16.msra.mxu0 %v4073
      %4431 = vmatprep.subr.bf16.mxu0 0
      %4432 = vmatpush1.bf16.msra.mxu0 %v4074
      %4433 = vmatprep.subr.bf16.mxu0 0
      %4434 = vmatpush1.bf16.msra.mxu0 %v4075
      %4435 = vmatprep.subr.bf16.mxu0 0
      %4436 = vmatpush1.bf16.msra.mxu0 %v4076
      %4437 = vmatprep.subr.bf16.mxu0 0
      %4438 = vmatpush1.bf16.msra.mxu0 %v4077
      %4439 = vmatprep.subr.bf16.mxu0 0
      %4440 = vmatpush1.bf16.msra.mxu0 %v4078
      %4441 = vmatprep.subr.bf16.mxu0 0
      %4442 = vmatpush1.bf16.msra.mxu0 %v4079
      %4443 = vmatprep.subr.bf16.mxu0 0
      %4444 = vmatpush1.bf16.msra.mxu0 %v4080
      %4445 = vmatprep.subr.bf16.mxu0 0
      %4446 = vmatpush1.bf16.msra.mxu0 %v4081
      %4447 = vmatprep.subr.bf16.mxu0 0
      %4448 = vmatpush1.bf16.msra.mxu0 %v4082
      %4449 = vmatprep.subr.bf16.mxu0 0
      %4450 = vmatpush1.bf16.msra.mxu0 %v4083
      %4451 = vmatprep.subr.bf16.mxu0 0
      %4452 = vmatpush1.bf16.msra.mxu0 %v4084
      %4453 = vmatprep.mubr.bf16.mxu0 %v3223
      %4454 = vmatmul.mubr.bf16.gmra.mrb[0].mxu0 %v3222
      %v4455 = vpop.f32.mrb[0].mxu0
      %v4456 = vadd.f32 %v4416, %v4455
      %v4457 = vpop.f32.mrb[0].mxu0
      %v4458 = vpop.f32.mrb[0].mxu0
      %v4459 = vpop.f32.mrb[0].mxu0
      %4460 = vdwg.mxu0
      %4461 = vmatprep.subr.bf16.mxu0 0
      %4462 = vmatpush1.bf16.msra.mxu0 %v4085
      %4463 = vmatprep.subr.bf16.mxu0 0
      %4464 = vmatpush1.bf16.msra.mxu0 %v4086
      %4465 = vmatprep.subr.bf16.mxu0 0
      %4466 = vmatpush1.bf16.msra.mxu0 %v4087
      %4467 = vmatprep.subr.bf16.mxu0 0
      %4468 = vmatpush1.bf16.msra.mxu0 %v4088
      %4469 = vmatprep.subr.bf16.mxu0 0
      %4470 = vmatpush1.bf16.msra.mxu0 %v4089
      %4471 = vmatprep.subr.bf16.mxu0 0
      %4472 = vmatpush1.bf16.msra.mxu0 %v4090
      %4473 = vmatprep.subr.bf16.mxu0 0
      %4474 = vmatpush1.bf16.msra.mxu0 %v4091
      %4475 = vmatprep.subr.bf16.mxu0 0
      %4476 = vmatpush1.bf16.msra.mxu0 %v4092
      %4477 = vmatprep.subr.bf16.mxu0 0
      %4478 = vmatpush1.bf16.msra.mxu0 %v4093
      %4479 = vmatprep.subr.bf16.mxu0 0
      %4480 = vmatpush1.bf16.msra.mxu0 %v4094
      %4481 = vmatprep.subr.bf16.mxu0 0
      %4482 = vmatpush1.bf16.msra.mxu0 %v4095
      %4483 = vmatprep.subr.bf16.mxu0 0
      %4484 = vmatpush1.bf16.msra.mxu0 %v4096
      %4485 = vmatprep.subr.bf16.mxu0 0
      %4486 = vmatpush1.bf16.msra.mxu0 %v4097
      %4487 = vmatprep.subr.bf16.mxu0 0
      %4488 = vmatpush1.bf16.msra.mxu0 %v4098
      %4489 = vmatprep.subr.bf16.mxu0 0
      %4490 = vmatpush1.bf16.msra.mxu0 %v4099
      %4491 = vmatprep.subr.bf16.mxu0 0
      %4492 = vmatpush1.bf16.msra.mxu0 %v4100
      %4493 = vmatprep.mubr.bf16.mxu0 %v3225
      %4494 = vmatmul.mubr.bf16.gmra.mrb[0].mxu0 %v3224
      %v4495 = vpop.f32.mrb[0].mxu0
      %v4496 = vadd.f32 %v4456, %v4495
      %v4497 = vpop.f32.mrb[0].mxu0
      %v4498 = vpop.f32.mrb[0].mxu0
      %v4499 = vpop.f32.mrb[0].mxu0
      %4500 = vdwg.mxu0
      %4501 = vmatprep.subr.bf16.mxu0 0
      %4502 = vmatpush1.bf16.msra.mxu0 %v4101
      %4503 = vmatprep.subr.bf16.mxu0 0
      %4504 = vmatpush1.bf16.msra.mxu0 %v4102
      %4505 = vmatprep.subr.bf16.mxu0 0
      %4506 = vmatpush1.bf16.msra.mxu0 %v4103
      %4507 = vmatprep.subr.bf16.mxu0 0
      %4508 = vmatpush1.bf16.msra.mxu0 %v4104
      %4509 = vmatprep.subr.bf16.mxu0 0
      %4510 = vmatpush1.bf16.msra.mxu0 %v4105
      %4511 = vmatprep.subr.bf16.mxu0 0
      %4512 = vmatpush1.bf16.msra.mxu0 %v4106
      %4513 = vmatprep.subr.bf16.mxu0 0
      %4514 = vmatpush1.bf16.msra.mxu0 %v4107
      %4515 = vmatprep.subr.bf16.mxu0 0
      %4516 = vmatpush1.bf16.msra.mxu0 %v4108
      %4517 = vmatprep.subr.bf16.mxu0 0
      %4518 = vmatpush1.bf16.msra.mxu0 %v4109
      %4519 = vmatprep.subr.bf16.mxu0 0
      %4520 = vmatpush1.bf16.msra.mxu0 %v4110
      %4521 = vmatprep.subr.bf16.mxu0 0
      %4522 = vmatpush1.bf16.msra.mxu0 %v4111
      %4523 = vmatprep.subr.bf16.mxu0 0
      %4524 = vmatpush1.bf16.msra.mxu0 %v4112
      %4525 = vmatprep.subr.bf16.mxu0 0
      %4526 = vmatpush1.bf16.msra.mxu0 %v4113
      %4527 = vmatprep.subr.bf16.mxu0 0
      %4528 = vmatpush1.bf16.msra.mxu0 %v4114
      %4529 = vmatprep.subr.bf16.mxu0 0
      %4530 = vmatpush1.bf16.msra.mxu0 %v4115
      %4531 = vmatprep.subr.bf16.mxu0 0
      %4532 = vmatpush1.bf16.msra.mxu0 %v4116
      %4533 = vmatprep.mubr.bf16.mxu0 %v3227
      %4534 = vmatmul.mubr.bf16.gmra.mrb[0].mxu0 %v3226
      %v4535 = vpop.f32.mrb[0].mxu0
      %v4536 = vadd.f32 %v4496, %v4535
      %v4537 = vpop.f32.mrb[0].mxu0
      %v4538 = vpop.f32.mrb[0].mxu0
      %v4539 = vpop.f32.mrb[0].mxu0
      %4540 = vdwg.mxu0
      %4541 = vmatprep.subr.bf16.mxu0 0
      %4542 = vmatpush1.bf16.msra.mxu0 %v4117
      %4543 = vmatprep.subr.bf16.mxu0 0
      %4544 = vmatpush1.bf16.msra.mxu0 %v4118
      %4545 = vmatprep.subr.bf16.mxu0 0
      %4546 = vmatpush1.bf16.msra.mxu0 %v4119
      %4547 = vmatprep.subr.bf16.mxu0 0
      %4548 = vmatpush1.bf16.msra.mxu0 %v4120
      %4549 = vmatprep.subr.bf16.mxu0 0
      %4550 = vmatpush1.bf16.msra.mxu0 %v4121
      %4551 = vmatprep.subr.bf16.mxu0 0
      %4552 = vmatpush1.bf16.msra.mxu0 %v4122
      %4553 = vmatprep.subr.bf16.mxu0 0
      %4554 = vmatpush1.bf16.msra.mxu0 %v4123
      %4555 = vmatprep.subr.bf16.mxu0 0
      %4556 = vmatpush1.bf16.msra.mxu0 %v4124
      %4557 = vmatprep.subr.bf16.mxu0 0
      %4558 = vmatpush1.bf16.msra.mxu0 %v4125
      %4559 = vmatprep.subr.bf16.mxu0 0
      %4560 = vmatpush1.bf16.msra.mxu0 %v4126
      %4561 = vmatprep.subr.bf16.mxu0 0
      %4562 = vmatpush1.bf16.msra.mxu0 %v4127
      %4563 = vmatprep.subr.bf16.mxu0 0
      %4564 = vmatpush1.bf16.msra.mxu0 %v4128
      %4565 = vmatprep.subr.bf16.mxu0 0
      %4566 = vmatpush1.bf16.msra.mxu0 %v4129
      %4567 = vmatprep.subr.bf16.mxu0 0
      %4568 = vmatpush1.bf16.msra.mxu0 %v4130
      %4569 = vmatprep.subr.bf16.mxu0 0
      %4570 = vmatpush1.bf16.msra.mxu0 %v4131
      %4571 = vmatprep.subr.bf16.mxu0 0
      %4572 = vmatpush1.bf16.msra.mxu0 %v4132
      %4573 = vmatprep.mubr.bf16.mxu0 %v3229
      %4574 = vmatmul.mubr.bf16.gmra.mrb[0].mxu0 %v3228
      %v4575 = vpop.f32.mrb[0].mxu0
      %v4576 = vadd.f32 %v4536, %v4575
      %v4577 = vpop.f32.mrb[0].mxu0
      %v4578 = vpop.f32.mrb[0].mxu0
      %v4579 = vpop.f32.mrb[0].mxu0
      %4580 = vdwg.mxu0
      %v4581 = vadd.f32 %v2589, %v4576
      %v4582 = vld [vmem:[%s15] sm:$0x1]
      %v4583 = vld [vmem:[%s16] sm:$0x1]
      %v4584 = vsel %vm715, %v4581, 0.0
      %4585 = vadd.xlane.f32.xlu0 %v4584
      %v4586 = vpop.xlane.xlu0 %4585
      %v4587 = vmul.f32 %v4586, %v2565
      %v4588 = vsub.f32 %v4581, %v4587
      %v4589 = vmul.f32 %v4588, %v4588
      %v4590 = vsel %vm715, %v4589, 0.0
      %4591 = vadd.xlane.f32.xlu0 %v4590
      %v4592 = vpop.xlane.xlu0 %4591
      %v4593 = vmul.f32 %v4592, %v2565
      %v4594 = vadd.f32 %v4593, 1e-05
      %v4595 = vrsqrt.pop %v4594
      %v4596 = vmul.f32 %v4588, %v4595
      %v4598 = vlaneseq
      %v4599 = vshrl.u32 %v4598, 7
      %v4600 = vsub.s32 0, %v4599
      %v4601 = vrot.slane %v4582, %v4600
      %v4603 = vmul.f32 %v4596, %v4601
      %v4605 = vlaneseq
      %v4606 = vshrl.u32 %v4605, 7
      %v4607 = vsub.s32 0, %v4606
      %v4608 = vrot.slane %v4583, %v4607
      %v4610 = vadd.f32 %v4603, %v4608
      %v4611 = vld [vmem:[%s17] sm:$0xff]
      %v4612 = vld [vmem:[%s17 + $0x8] sm:$0xff]
      %v4613 = vld [vmem:[%s17 + $0x10] sm:$0xff]
      %v4614 = vld [vmem:[%s17 + $0x18] sm:$0xff]
      %v4615 = vld [vmem:[%s18] sm:$0x1]
      %v4617 = vsel %vm715, %v4610, 0
      %4619 = vmatprep.subr.mxu0 0.0
      %4620 = vmatpush1.msra.mxu0 %v4611
      %4621 = vmatprep.subr.mxu0 0.0
      %4622 = vmatpush1.msra.mxu0 %v4612
      %4623 = vmatprep.subr.mxu0 0.0
      %4624 = vmatpush1.msra.mxu0 %v4613
      %4625 = vmatprep.subr.mxu0 0.0
      %4626 = vmatpush1.msra.mxu0 %v4614
      %4627 = vmatprep.subr.mxu0 0.0
      %4628 = vmatpush1.msra.mxu0 0.0
      %4629 = vmatprep.subr.mxu0 0.0
      %4630 = vmatpush1.msra.mxu0 0.0
      %4631 = vmatprep.subr.mxu0 0.0
      %4632 = vmatpush1.msra.mxu0 0.0
      %4633 = vmatprep.subr.mxu0 0.0
      %4634 = vmatpush1.msra.mxu0 0.0
      %4635 = vmatprep.subr.mxu0 0.0
      %4636 = vmatpush1.msra.mxu0 0.0
      %4637 = vmatprep.subr.mxu0 0.0
      %4638 = vmatpush1.msra.mxu0 0.0
      %4639 = vmatprep.subr.mxu0 0.0
      %4640 = vmatpush1.msra.mxu0 0.0
      %4641 = vmatprep.subr.mxu0 0.0
      %4642 = vmatpush1.msra.mxu0 0.0
      %4643 = vmatprep.subr.mxu0 0.0
      %4644 = vmatpush1.msra.mxu0 0.0
      %4645 = vmatprep.subr.mxu0 0.0
      %4646 = vmatpush1.msra.mxu0 0.0
      %4647 = vmatprep.subr.mxu0 0.0
      %4648 = vmatpush1.msra.mxu0 0.0
      %4649 = vmatprep.subr.mxu0 0.0
      %4650 = vmatpush1.msra.mxu0 0.0
      %4651 = vmatprep.subr.mxu0 0.0
      %4652 = vmatpush1.msra.mxu0 0.0
      %4653 = vmatprep.subr.mxu0 0.0
      %4654 = vmatpush1.msra.mxu0 0.0
      %4655 = vmatprep.subr.mxu0 0.0
      %4656 = vmatpush1.msra.mxu0 0.0
      %4657 = vmatprep.subr.mxu0 0.0
      %4658 = vmatpush1.msra.mxu0 0.0
      %4659 = vmatprep.subr.mxu0 0.0
      %4660 = vmatpush1.msra.mxu0 0.0
      %4661 = vmatprep.subr.mxu0 0.0
      %4662 = vmatpush1.msra.mxu0 0.0
      %4663 = vmatprep.subr.mxu0 0.0
      %4664 = vmatpush1.msra.mxu0 0.0
      %4665 = vmatprep.subr.mxu0 0.0
      %4666 = vmatpush1.msra.mxu0 0.0
      %4667 = vmatprep.subr.mxu0 0.0
      %4668 = vmatpush1.msra.mxu0 0.0
      %4669 = vmatprep.subr.mxu0 0.0
      %4670 = vmatpush1.msra.mxu0 0.0
      %4671 = vmatprep.subr.mxu0 0.0
      %4672 = vmatpush1.msra.mxu0 0.0
      %4673 = vmatprep.subr.mxu0 0.0
      %4674 = vmatpush1.msra.mxu0 0.0
      %4675 = vmatprep.subr.mxu0 0.0
      %4676 = vmatpush1.msra.mxu0 0.0
      %4677 = vmatprep.subr.mxu0 0.0
      %4678 = vmatpush1.msra.mxu0 0.0
      %4679 = vmatprep.subr.mxu0 0.0
      %4680 = vmatpush1.msra.mxu0 0.0
      %4681 = vmatprep.subr.mxu0 0.0
      %4682 = vmatpush1.msra.mxu0 0.0
      %4683 = vmatprep.mubr.f32.mxu0 0.0
      %4684 = vmatmul.mubr.f32.gmra.mrb[0].mxu0 %v4617
      %v4685 = vpop.f32.mrb[0].mxu0
      %v4686 = vadd.f32 %v4615, %v4685
      %v4687 = vpop.f32.mrb[0].mxu0
      %4688 = vdwg.mxu0
      %vm4689 = vcmask 778240
      %v4690 = vsel %vm4689, %v4686, -inf
      %4691 = vmax.xlane.f32.xlu0 %v4690
      %v4692 = vpop.xlane.xlu0 %4691
      %v4693 = vsub.f32 %v4686, %v4692
      %v4694 = vmul.f32 %v4693, 1.442695
      %v4695 = vpow.pop %v4694
      %v4696 = vsel %vm4689, %v4695, 0.0
      %4697 = vadd.xlane.f32.xlu0 %v4696
      %v4698 = vpop.xlane.xlu0 %4697
      %v4699 = vrcp.pop %v4698
      %v4700 = vmul.f32 %v4695, %v4699
      %v4701 = vld [vmem:[%s19] sm:$0xff]
      %v4702 = vld [vmem:[%s19 + $0x8] sm:$0xff]
      %v4703 = vld [vmem:[%s19 + $0x10] sm:$0xff]
      %v4704 = vld [vmem:[%s19 + $0x18] sm:$0xff]
      %v4705 = vld [vmem:[%s19 + $0x20] sm:$0xff]
      %v4706 = vld [vmem:[%s19 + $0x28] sm:$0xff]
      %v4707 = vld [vmem:[%s19 + $0x30] sm:$0xff]
      %v4708 = vld [vmem:[%s19 + $0x38] sm:$0xff]
      %v4709 = vld [vmem:[%s19 + $0x40] sm:$0xff]
      %v4710 = vld [vmem:[%s19 + $0x48] sm:$0xff]
      %v4711 = vld [vmem:[%s19 + $0x50] sm:$0xff]
      %v4712 = vld [vmem:[%s19 + $0x58] sm:$0xff]
      %v4713 = vld [vmem:[%s19 + $0x60] sm:$0xff]
      %v4714 = vld [vmem:[%s19 + $0x68] sm:$0xff]
      %v4715 = vld [vmem:[%s19 + $0x70] sm:$0xff]
      %v4716 = vld [vmem:[%s19 + $0x78] sm:$0xff]
      %v4717 = vld [vmem:[%s19 + $0x80] sm:$0xff]
      %v4718 = vld [vmem:[%s19 + $0x88] sm:$0xff]
      %v4719 = vld [vmem:[%s19 + $0x90] sm:$0xff]
      %v4720 = vld [vmem:[%s19 + $0x98] sm:$0xff]
      %v4721 = vld [vmem:[%s19 + $0xa0] sm:$0xff]
      %v4722 = vld [vmem:[%s19 + $0xa8] sm:$0xff]
      %v4723 = vld [vmem:[%s19 + $0xb0] sm:$0xff]
      %v4724 = vld [vmem:[%s19 + $0xb8] sm:$0xff]
      %vm4725 = vcmask 785408
      %v4727 = vsel %vm4725, %v4700, 0
      %4729 = vmatprep.subr.mxu0 %v4702
      %4730 = vmatpush1.msra.mxu0 %v4701
      %4731 = vmatprep.subr.mxu0 %v4704
      %4732 = vmatpush1.msra.mxu0 %v4703
      %4733 = vmatprep.subr.mxu0 %v4706
      %4734 = vmatpush1.msra.mxu0 %v4705
      %4735 = vmatprep.subr.mxu0 %v4708
      %4736 = vmatpush1.msra.mxu0 %v4707
      %4737 = vmatprep.subr.mxu0 %v4710
      %4738 = vmatpush1.msra.mxu0 %v4709
      %4739 = vmatprep.subr.mxu0 %v4712
      %4740 = vmatpush1.msra.mxu0 %v4711
      %4741 = vmatprep.subr.mxu0 %v4714
      %4742 = vmatpush1.msra.mxu0 %v4713
      %4743 = vmatprep.subr.mxu0 %v4716
      %4744 = vmatpush1.msra.mxu0 %v4715
      %4745 = vmatprep.subr.mxu0 %v4718
      %4746 = vmatpush1.msra.mxu0 %v4717
      %4747 = vmatprep.subr.mxu0 %v4720
      %4748 = vmatpush1.msra.mxu0 %v4719
      %4749 = vmatprep.subr.mxu0 %v4722
      %4750 = vmatpush1.msra.mxu0 %v4721
      %4751 = vmatprep.subr.mxu0 %v4724
      %4752 = vmatpush1.msra.mxu0 %v4723
      %4753 = vmatprep.subr.mxu0 0.0
      %4754 = vmatpush1.msra.mxu0 0.0
      %4755 = vmatprep.subr.mxu0 0.0
      %4756 = vmatpush1.msra.mxu0 0.0
      %4757 = vmatprep.subr.mxu0 0.0
      %4758 = vmatpush1.msra.mxu0 0.0
      %4759 = vmatprep.subr.mxu0 0.0
      %4760 = vmatpush1.msra.mxu0 0.0
      %4761 = vmatprep.subr.mxu0 0.0
      %4762 = vmatpush1.msra.mxu0 0.0
      %4763 = vmatprep.subr.mxu0 0.0
      %4764 = vmatpush1.msra.mxu0 0.0
      %4765 = vmatprep.subr.mxu0 0.0
      %4766 = vmatpush1.msra.mxu0 0.0
      %4767 = vmatprep.subr.mxu0 0.0
      %4768 = vmatpush1.msra.mxu0 0.0
      %4769 = vmatprep.subr.mxu0 0.0
      %4770 = vmatpush1.msra.mxu0 0.0
      %4771 = vmatprep.subr.mxu0 0.0
      %4772 = vmatpush1.msra.mxu0 0.0
      %4773 = vmatprep.subr.mxu0 0.0
      %4774 = vmatpush1.msra.mxu0 0.0
      %4775 = vmatprep.subr.mxu0 0.0
      %4776 = vmatpush1.msra.mxu0 0.0
      %4777 = vmatprep.subr.mxu0 0.0
      %4778 = vmatpush1.msra.mxu0 0.0
      %4779 = vmatprep.subr.mxu0 0.0
      %4780 = vmatpush1.msra.mxu0 0.0
      %4781 = vmatprep.subr.mxu0 0.0
      %4782 = vmatpush1.msra.mxu0 0.0
      %4783 = vmatprep.subr.mxu0 0.0
      %4784 = vmatpush1.msra.mxu0 0.0
      %4785 = vmatprep.subr.mxu0 0.0
      %4786 = vmatpush1.msra.mxu0 0.0
      %4787 = vmatprep.subr.mxu0 0.0
      %4788 = vmatpush1.msra.mxu0 0.0
      %4789 = vmatprep.subr.mxu0 0.0
      %4790 = vmatpush1.msra.mxu0 0.0
      %4791 = vmatprep.subr.mxu0 0.0
      %4792 = vmatpush1.msra.mxu0 0.0
      %4793 = vmatprep.mubr.f32.mxu0 0.0
      %4794 = vmatmul.mubr.f32.gmra.mrb[0].mxu0 %v4727
      %v4795 = vpop.f32.mrb[0].mxu0
      %v4796 = vadd.f32 0.0, %v4795
      %v4797 = vpop.f32.mrb[0].mxu0
      %v4798 = vadd.f32 0.0, %v4797
      %4799 = vdwg.mxu0
      %v4802 = vcombine.low %v4796, %v4798
      %v4804 = vunpack.c.l.s4 1966171168
      %v4805 = vunpack.c.0.s8 %v4804
      %v4806 = vlaneseq
      %v4807 = vshrl.u32 %v4806, 7
      %v4808 = vsub.s32 %v4805, %v4807
      %v4809 = vrot.slane %v4802, %v4808
      %v4811 = vunpack.c.l.s4 1966171168
      %v4812 = vunpack.c.0.s8 %v4811
      %v4813 = vlaneseq
      %v4814 = vshrl.u32 %v4813, 7
      %v4815 = vsub.s32 %v4812, %v4814
      %v4816 = vrot.slane %v4809, %v4815
      %v4818 = vlaneseq
      %vm4819 = vcmp.ge.s32.totalorder %v4818, 0
      %vm4820 = vcmp.lt.s32.totalorder %v4818, 192
      %vm4821 = vmand %vm4819, %vm4820
      %4822 = vst.msk [vmem:[%s624] sm:$0x3] %vm4821, %v4816
      %p4823 = scmp.lt.s32.totalorder %s31, 1
      %s4824 = scalar_select %p4823, %s31, 1
      %s4825 = smul.addr %s4824, 2
      %s4826 = scalar_lea.vmem %s20, %s4825
      // Predicated region
      $region101: #{prompt_sat_forward.1} parent=99 // pred_check
        %p4827 = pneg %p474
      $region102: #{prompt_sat_forward.1} parent=99 // pred_check_branch
        %4829 = sbr.rel (%p4827) target = $region104
      $region103: #{prompt_sat_forward.1} parent=99 // pred_region
        _
      $region104: #{prompt_sat_forward.1} parent=99 // pred_fallthru
        _
    $region100: #{prompt_sat_forward.1} parent=5 // pred_fallthru
      _
    %p4830 = scmp.le.s32.totalorder 2, %s26
    // Predicated region
    $region105: #{prompt_sat_forward.1} parent=5 // pred_check
      %p4831 = pneg %p4830
    $region106: #{prompt_sat_forward.1} parent=5 // pred_check_branch
      %4833 = sbr.rel (%p4831) target = $region108
    $region107: #{prompt_sat_forward.1} parent=5 // pred_region
      %s4834 = ssub.s32 %s26, 2
      // Predicated region
      $region109: #{prompt_sat_forward.1} parent=107 // pred_check
        %p4835 = pneg %p480
      $region110: #{prompt_sat_forward.1} parent=107 // pred_check_branch
        %4837 = sbr.rel (%p4835) target = $region112
      $region111: #{prompt_sat_forward.1} parent=107 // pred_region
        %p4838 = scmp.lt.s32.totalorder %s32, 1
        %s4839 = scalar_select %p4838, %s32, 1
        %s4840 = smul.addr %s4839, 2
        %s4841 = scalar_lea.vmem %s20, %s4840
      $region112: #{prompt_sat_forward.1} parent=107 // pred_fallthru
        _
    $region108: #{prompt_sat_forward.1} parent=5 // pred_fallthru
      _
  $region6: #{prompt_sat_forward.1} parent=0 // loop_footer
    %s30 = sadd.s32 1, %s26
  $region7: #{prompt_sat_forward.1} parent=0 // loop_footer_branch
    %25 = sbr.rel target = $region3
  $region8: #{prompt_sat_forward.1} parent=0 // loop_exit
    _

</llo_original>
